<compile_context>
chip_gen: v5e
topology: v5e:2x2
jax: 0.10.0
libtpu: 0.0.40
codegen_flags: <defaults>
</compile_context>

<pallas_src>
import jax
import jax.numpy as jnp
from jax.experimental import pallas as pl
from jax.experimental.pallas import tpu as pltpu

D_IN = 100
D_H1 = 256
D_H2 = 512
D_OUT = 28 * 28          # 784
D_OUT_PAD = 896          # 7 * 128 -> lane-dense output stores
TILE_B = 128             # batch rows per grid step


def generator_kernel(x_ref, w1_ref, b1_ref, w2_ref, b2_ref, w3_ref, b3_ref,
                     o_ref):
    # Linear(100 -> 256) + ReLU   (bf16 MXU operands, f32 accumulate)
    x = x_ref[...].astype(jnp.bfloat16)
    h1 = jnp.dot(x, w1_ref[...],
                 preferred_element_type=jnp.float32) + b1_ref[...]
    h1 = jnp.maximum(h1, 0.0)
    # Linear(256 -> 512) + ReLU
    h2 = jnp.dot(h1.astype(jnp.bfloat16), w2_ref[...],
                 preferred_element_type=jnp.float32) + b2_ref[...]
    h2 = jnp.maximum(h2, 0.0)
    # Linear(512 -> 784[pad 896]) + Tanh
    h3 = jnp.dot(h2.astype(jnp.bfloat16), w3_ref[...],
                 preferred_element_type=jnp.float32) + b3_ref[...]
    o_ref[...] = jnp.tanh(h3)


def generator_forward(x, params, *, tile_b=TILE_B):
    """x: (B, 100) float32 -> img: (B, 28, 28) float32."""
    w1, b1, w2, b2, w3, b3 = params
    B = x.shape[0]
    n_tiles = pl.cdiv(B, tile_b)
    Bp = n_tiles * tile_b
    if Bp != B:
        x = jnp.pad(x, ((0, Bp - B), (0, 0)))

    cost = pl.CostEstimate(
        flops=2 * Bp * (D_IN * D_H1 + D_H1 * D_H2 + D_H2 * D_OUT_PAD),
        transcendentals=Bp * D_OUT_PAD,
        bytes_accessed=(sum(int(a.size) * a.dtype.itemsize for a in params)
                        + int(x.size) * x.dtype.itemsize
                        + Bp * D_OUT_PAD * 4),
    )

    out = pl.pallas_call(
        generator_kernel,
        out_shape=jax.ShapeDtypeStruct((Bp, D_OUT_PAD), jnp.float32),
        grid_spec=pltpu.PrefetchScalarGridSpec(
            num_scalar_prefetch=0,
            grid=(n_tiles,),
            in_specs=[
                pl.BlockSpec((tile_b, D_IN), lambda i: (i, 0)),      # x tile
                pl.BlockSpec((D_IN, D_H1), lambda i: (0, 0)),        # w1 (resident)
                pl.BlockSpec((1, D_H1), lambda i: (0, 0)),           # b1
                pl.BlockSpec((D_H1, D_H2), lambda i: (0, 0)),        # w2
                pl.BlockSpec((1, D_H2), lambda i: (0, 0)),           # b2
                pl.BlockSpec((D_H2, D_OUT_PAD), lambda i: (0, 0)),   # w3
                pl.BlockSpec((1, D_OUT_PAD), lambda i: (0, 0)),      # b3
            ],
            out_specs=pl.BlockSpec((tile_b, D_OUT_PAD), lambda i: (i, 0)),
        ),
        compiler_params=pltpu.CompilerParams(
            dimension_semantics=("parallel",),   # shard batch tiles over TCs (v7x)
            vmem_limit_bytes=64 << 20,
        ),
        cost_estimate=cost,
    )(x, w1, b1, w2, b2, w3, b3)

    # drop batch padding + lane padding, then img.view(-1, 28, 28)
    return out[:B, :D_OUT].reshape(-1, 28, 28)


def init_params(key):
    """Deterministic init matching nn.Linear default (uniform +-1/sqrt(fan_in)).

    Weights stored transposed as (in_features, out_features) in bfloat16.
    Layer 3 is lane-padded from 784 to 896 output features with zero columns.
    Biases kept f32 as (1, out_features).
    """
    dims = [(D_IN, D_H1), (D_H1, D_H2), (D_H2, D_OUT)]
    params = []
    for li, (fan_in, fan_out) in enumerate(dims):
        key, kw, kb = jax.random.split(key, 3)
        bound = 1.0 / (fan_in ** 0.5)
        w = jax.random.uniform(kw, (fan_in, fan_out), jnp.float32,
                               minval=-bound, maxval=bound)
        b = jax.random.uniform(kb, (1, fan_out), jnp.float32,
                               minval=-bound, maxval=bound)
        if li == 2:  # pad 784 -> 896 with zeros (tanh(0)=0 in padding, sliced off)
            w = jnp.pad(w, ((0, 0), (0, D_OUT_PAD - fan_out)))
            b = jnp.pad(b, ((0, 0), (0, D_OUT_PAD - fan_out)))
        params.extend([w.astype(jnp.bfloat16), b])
    return tuple(params)


if __name__ == "__main__":
    key = jax.random.PRNGKey(0)
    key, kx = jax.random.split(key)

    # Batch big enough to amortize the weight stream and exercise 2 grid tiles
    # (200 -> padded to 256 = 2 x TILE_B rows).
    batch = 200
    x = jax.random.normal(kx, (batch, D_IN), dtype=jnp.float32)  # latent noise
    params = init_params(key)

    img = generator_forward(x, params)
    img = jax.block_until_ready(img)

    assert img.shape == (batch, 28, 28), img.shape
    assert img.dtype == jnp.float32

    # Reference with the same bf16-weight / f32-accumulate precision path.
    w1, b1, w2, b2, w3, b3 = params
    xb = x.astype(jnp.bfloat16)
    h = jnp.maximum(jnp.dot(xb, w1, preferred_element_type=jnp.float32) + b1, 0.0)
    h = jnp.maximum(jnp.dot(h.astype(jnp.bfloat16), w2,
                            preferred_element_type=jnp.float32) + b2, 0.0)
    ref = jnp.tanh(jnp.dot(h.astype(jnp.bfloat16), w3,
                           preferred_element_type=jnp.float32) + b3)
    ref = ref[:, :D_OUT].reshape(-1, 28, 28)
    err = float(jnp.max(jnp.abs(img - ref)))
    assert jnp.allclose(img, ref, atol=5e-3, rtol=0.0), err

    print("KERNEL_OK")
</pallas_src>

<mosaic_0001>
module attributes {stable_mosaic.version = 11 : i64} {
  func.func @generator_kernel(%arg0: i32, %arg1: memref<128x100xf32, #tpu.memory_space<vmem>>, %arg2: memref<100x256xbf16, #tpu.memory_space<vmem>>, %arg3: memref<1x256xf32, #tpu.memory_space<vmem>>, %arg4: memref<256x512xbf16, #tpu.memory_space<vmem>>, %arg5: memref<1x512xf32, #tpu.memory_space<vmem>>, %arg6: memref<512x896xbf16, #tpu.memory_space<vmem>>, %arg7: memref<1x896xf32, #tpu.memory_space<vmem>>, %arg8: memref<128x896xf32, #tpu.memory_space<vmem>>) attributes {dimension_semantics = [#tpu.dimension_semantics<parallel>], iteration_bounds = array<i64: 2>, scalar_prefetch = 0 : i64, scratch_operands = 0 : i64, tpu.core_type = #tpu.core_type<tc>, window_params = [{transform_indices = @transform_0, window_bounds = array<i64: 128, 100>}, {pipeline_mode = #tpu.pipeline_mode<synchronous>, transform_indices = @transform_1, window_bounds = array<i64: 100, 256>}, {pipeline_mode = #tpu.pipeline_mode<synchronous>, transform_indices = @transform_2, window_bounds = array<i64: 1, 256>}, {pipeline_mode = #tpu.pipeline_mode<synchronous>, transform_indices = @transform_3, window_bounds = array<i64: 256, 512>}, {pipeline_mode = #tpu.pipeline_mode<synchronous>, transform_indices = @transform_4, window_bounds = array<i64: 1, 512>}, {pipeline_mode = #tpu.pipeline_mode<synchronous>, transform_indices = @transform_5, window_bounds = array<i64: 512, 896>}, {pipeline_mode = #tpu.pipeline_mode<synchronous>, transform_indices = @transform_6, window_bounds = array<i64: 1, 896>}, {transform_indices = @transform_7, window_bounds = array<i64: 128, 896>}]} {
    %c0 = arith.constant 0 : index
    %c0_0 = arith.constant 0 : index
    %0 = vector.load %arg1[%c0, %c0_0] : memref<128x100xf32, #tpu.memory_space<vmem>>, vector<128x100xf32>
    %1 = arith.truncf %0 : vector<128x100xf32> to vector<128x100xbf16>
    %c0_1 = arith.constant 0 : index
    %c0_2 = arith.constant 0 : index
    %2 = vector.load %arg2[%c0_1, %c0_2] : memref<100x256xbf16, #tpu.memory_space<vmem>>, vector<100x256xbf16>
    %cst = arith.constant dense<0.000000e+00> : vector<128x256xf32>
    %3 = tpu.matmul %1, %2, %cst {dimension_numbers = #tpu.dot_dimension_numbers<[1], [0], [0], [1], [0, 0, 1, 1], [], []>} : vector<128x100xbf16>, vector<100x256xbf16>, vector<128x256xf32> -> vector<128x256xf32>
    %c0_3 = arith.constant 0 : index
    %c0_4 = arith.constant 0 : index
    %4 = vector.load %arg3[%c0_3, %c0_4] : memref<1x256xf32, #tpu.memory_space<vmem>>, vector<1x256xf32>
    %5 = vector.broadcast %4 : vector<1x256xf32> to vector<128x256xf32>
    %6 = arith.addf %3, %5 : vector<128x256xf32>
    %cst_5 = arith.constant 0.000000e+00 : f32
    %7 = vector.broadcast %cst_5 : f32 to vector<128x256xf32>
    %8 = arith.maximumf %6, %7 : vector<128x256xf32>
    %9 = arith.truncf %8 : vector<128x256xf32> to vector<128x256xbf16>
    %c0_6 = arith.constant 0 : index
    %c0_7 = arith.constant 0 : index
    %10 = vector.load %arg4[%c0_6, %c0_7] : memref<256x512xbf16, #tpu.memory_space<vmem>>, vector<256x512xbf16>
    %cst_8 = arith.constant dense<0.000000e+00> : vector<128x512xf32>
    %11 = tpu.matmul %9, %10, %cst_8 {dimension_numbers = #tpu.dot_dimension_numbers<[1], [0], [0], [1], [0, 0, 1, 1], [], []>} : vector<128x256xbf16>, vector<256x512xbf16>, vector<128x512xf32> -> vector<128x512xf32>
    %c0_9 = arith.constant 0 : index
    %c0_10 = arith.constant 0 : index
    %12 = vector.load %arg5[%c0_9, %c0_10] : memref<1x512xf32, #tpu.memory_space<vmem>>, vector<1x512xf32>
    %13 = vector.broadcast %12 : vector<1x512xf32> to vector<128x512xf32>
    %14 = arith.addf %11, %13 : vector<128x512xf32>
    %cst_11 = arith.constant 0.000000e+00 : f32
    %15 = vector.broadcast %cst_11 : f32 to vector<128x512xf32>
    %16 = arith.maximumf %14, %15 : vector<128x512xf32>
    %17 = arith.truncf %16 : vector<128x512xf32> to vector<128x512xbf16>
    %c0_12 = arith.constant 0 : index
    %c0_13 = arith.constant 0 : index
    %18 = vector.load %arg6[%c0_12, %c0_13] : memref<512x896xbf16, #tpu.memory_space<vmem>>, vector<512x896xbf16>
    %cst_14 = arith.constant dense<0.000000e+00> : vector<128x896xf32>
    %19 = tpu.matmul %17, %18, %cst_14 {dimension_numbers = #tpu.dot_dimension_numbers<[1], [0], [0], [1], [0, 0, 1, 1], [], []>} : vector<128x512xbf16>, vector<512x896xbf16>, vector<128x896xf32> -> vector<128x896xf32>
    %c0_15 = arith.constant 0 : index
    %c0_16 = arith.constant 0 : index
    %20 = vector.load %arg7[%c0_15, %c0_16] : memref<1x896xf32, #tpu.memory_space<vmem>>, vector<1x896xf32>
    %21 = vector.broadcast %20 : vector<1x896xf32> to vector<128x896xf32>
    %22 = arith.addf %19, %21 : vector<128x896xf32>
    %23 = math.tanh %22 : vector<128x896xf32>
    %c0_17 = arith.constant 0 : index
    %c0_18 = arith.constant 0 : index
    %24 = vector.load %arg8[%c0_17, %c0_18] : memref<128x896xf32, #tpu.memory_space<vmem>>, vector<128x896xf32>
    tpu.vector_store %arg8[%c0_17, %c0_18], %23 {strides = array<i32>} : memref<128x896xf32, #tpu.memory_space<vmem>>, vector<128x896xf32>,
    return
  }
  func.func @transform_0(%arg0: i32) -> (i32, i32) {
    %c0_i32 = arith.constant 0 : i32
    %c0_i32_0 = arith.constant 0 : i32
    return %arg0, %c0_i32 : i32, i32
  }
  func.func @transform_1(%arg0: i32) -> (i32, i32) {
    %c0_i32 = arith.constant 0 : i32
    %c0_i32_0 = arith.constant 0 : i32
    %c0_i32_1 = arith.constant 0 : i32
    return %c0_i32, %c0_i32_0 : i32, i32
  }
  func.func @transform_2(%arg0: i32) -> (i32, i32) {
    %c0_i32 = arith.constant 0 : i32
    %c0_i32_0 = arith.constant 0 : i32
    %c0_i32_1 = arith.constant 0 : i32
    return %c0_i32, %c0_i32_0 : i32, i32
  }
  func.func @transform_3(%arg0: i32) -> (i32, i32) {
    %c0_i32 = arith.constant 0 : i32
    %c0_i32_0 = arith.constant 0 : i32
    %c0_i32_1 = arith.constant 0 : i32
    return %c0_i32, %c0_i32_0 : i32, i32
  }
  func.func @transform_4(%arg0: i32) -> (i32, i32) {
    %c0_i32 = arith.constant 0 : i32
    %c0_i32_0 = arith.constant 0 : i32
    %c0_i32_1 = arith.constant 0 : i32
    return %c0_i32, %c0_i32_0 : i32, i32
  }
  func.func @transform_5(%arg0: i32) -> (i32, i32) {
    %c0_i32 = arith.constant 0 : i32
    %c0_i32_0 = arith.constant 0 : i32
    %c0_i32_1 = arith.constant 0 : i32
    return %c0_i32, %c0_i32_0 : i32, i32
  }
  func.func @transform_6(%arg0: i32) -> (i32, i32) {
    %c0_i32 = arith.constant 0 : i32
    %c0_i32_0 = arith.constant 0 : i32
    %c0_i32_1 = arith.constant 0 : i32
    return %c0_i32, %c0_i32_0 : i32, i32
  }
  func.func @transform_7(%arg0: i32) -> (i32, i32) {
    %c0_i32 = arith.constant 0 : i32
    %c0_i32_0 = arith.constant 0 : i32
    return %arg0, %c0_i32 : i32, i32
  }
}

</mosaic_0001>

<llo_original>
// kernel: tpu_custom_call.1
$region0: #{tpu_custom_call.1}
  #allocation0 [shape = 'u32[]', space=smem, size = 0x4, offset = 0x4, fixed_abs, tag = 'smem constant byte address 0x4 - core index']
  #allocation1 [shape = 'u32[72,128]{1,0:T(1,128)}', space=vmem, size = 0x9000, scoped, tag = 'internal scratch']
  %s0 = inlined_call_operand.vmem [shape: f32[256,100], index: 0, kind: input, shape index: {}]
  %s1 = inlined_call_operand.vmem [shape: bf16[100,256], index: 1, kind: input, shape index: {}]
  %s2 = inlined_call_operand.vmem [shape: f32[1,256], index: 2, kind: input, shape index: {}]
  %s3 = inlined_call_operand.hbm [shape: bf16[256,512], index: 3, kind: input, shape index: {}]
  %s4 = inlined_call_operand.vmem [shape: f32[1,512], index: 4, kind: input, shape index: {}]
  %s5 = inlined_call_operand.hbm [shape: bf16[512,896], index: 5, kind: input, shape index: {}]
  %s6 = inlined_call_operand.vmem [shape: f32[1,896], index: 6, kind: input, shape index: {}]
  %s7 = inlined_call_operand.hbm [shape: f32[256,896], index: 7, kind: output, shape index: {}]
  %s8 = sld [smem:[#allocation0]]
  $region69: #{tpu_custom_call.1} parent=0
    _
  %s10 = ssub.s32 1, %s8
  %s11 = scalar_select 0, %s10, %s8
  $region1: #{tpu_custom_call.1} parent=0
    #allocation2 [shape = 'u8[262144]{0}', space=vmem, size = 0x40000, scoped, tag = 'input window, operand 3, single buffered']
    #allocation3 [shape = 's32[2]{0}', space=sflag, size = 0x8, scoped, tag = 'scoped memory for tpu_custom_call.1']
    #allocation4 [shape = 's32[2]{0}', space=sflag, size = 0x8, scoped, tag = 'scoped memory for tpu_custom_call.1']
    #allocation5 [shape = 'u8[917504]{0}', space=vmem, size = 0xe0000, scoped, tag = 'input window, operand 5, single buffered']
    #allocation6 [shape = 's32[1]{0}', space=sflag, size = 0x4, scoped, tag = 'scoped memory for tpu_custom_call.1']
    #allocation7 [shape = 'u8[917504]{0}', space=vmem, size = 0xe0000, scoped, tag = 'output window, operand 0']
    %12 = vsyncpa [#allocation3], 0
    %13 = vsyncpa [#allocation6], 0
    %14 = vsyncpa [#allocation4], 0
    %s15 = scalar_lea.sflag [#allocation4], 1
    %16 = vsyncpa %s15, 0
    loop: start=0, step=1, limit=4
    $region2: #{tpu_custom_call.1} parent=1 // loop_pre_header
      _
    $region3: #{tpu_custom_call.1} parent=1 // loop_header
      %s18 = sphi 0, %s22
      %p19 = scmp.ge.s32.totalorder %s18, 4
      %s28 = sphi 0, %s30
      %s31 = sphi 0, %s28
      %s32 = sphi 0, %s31
      %s48 = sphi 0, %s32
      %s52 = sphi 0, %s52
      %s54 = sphi 0, %s52
      %s55 = sphi 0, %s54
      %s69 = sphi 0, %s55
      %s73 = sphi 0, %s73
      %s75 = sphi 0, %s73
      %s76 = sphi 0, %s75
      %s90 = sphi 0, %s76
      %s94 = sphi 0, %s94
      %s96 = sphi 0, %s94
      %s97 = sphi 0, %s96
      %s111 = sphi 0, %s97
      %s115 = sphi 0, %s115
      %s117 = sphi 0, %s115
      %s118 = sphi 0, %s117
      %s132 = sphi 0, %s118
      %s136 = sphi 0, %s136
      %s138 = sphi 0, %s136
      %s139 = sphi 0, %s138
      %s153 = sphi 0, %s139
      %s157 = sphi 0, %s157
      %s159 = sphi 0, %s157
      %s160 = sphi 0, %s159
      %s174 = sphi 0, %s160
      %s180 = sphi 0, %s182
      %s183 = sphi 0, %s180
      %s184 = sphi 0, %s183
      %s200 = sphi 0, %s184
    $region4: #{tpu_custom_call.1} parent=1 // loop_header_branch
      %21 = sbr.rel (%p19) target = $region8
    $region5: #{tpu_custom_call.1} parent=1 // loop_body
      %s23 = ssub.s32 %s18, 1
      %s24 = ssub.s32 %s18, 2
      %s25 = sadd.s32 %s18, 1
      %s26 = ssub.s32 %s18, %s25
      %p27 = scmp.eq.s32.totalorder %s26, 0
      %s29 = sadd.s32 %s28, 1
      %s30 = scalar_select %p27, %s28, %s29
      %p33 = pneg %p27
      %p34 = scmp.eq.s32.totalorder %s18, 1
      %p35 = por %p33, %p34
      %p36 = scmp.ne.s32.totalorder %s28, %s31
      %p37 = scmp.eq.s32.totalorder %s18, 0
      %p38 = por %p36, %p37
      %p39 = scmp.ne.s32.totalorder %s28, %s31
      %p40 = scmp.eq.s32.totalorder %s23, 1
      %p41 = por %p39, %p40
      %p42 = scmp.ne.s32.totalorder %s31, %s32
      %p43 = scmp.eq.s32.totalorder %s23, 0
      %p44 = por %p42, %p43
      %p45 = scmp.ne.s32.totalorder %s31, %s32
      %p46 = scmp.eq.s32.totalorder %s24, 1
      %p47 = por %p45, %p46
      %p49 = scmp.ne.s32.totalorder %s32, %s48
      %p50 = scmp.eq.s32.totalorder %s24, 0
      %p51 = por %p49, %p50
      %s53 = sadd.s32 %s52, 1
      %p56 = scmp.eq.s32.totalorder %s18, 1
      %p57 = scmp.ne.s32.totalorder %s52, %s54
      %p58 = scmp.eq.s32.totalorder %s18, 0
      %p59 = por %p57, %p58
      %p60 = scmp.ne.s32.totalorder %s52, %s54
      %p61 = scmp.eq.s32.totalorder %s23, 1
      %p62 = por %p60, %p61
      %p63 = scmp.ne.s32.totalorder %s54, %s55
      %p64 = scmp.eq.s32.totalorder %s23, 0
      %p65 = por %p63, %p64
      %p66 = scmp.ne.s32.totalorder %s54, %s55
      %p67 = scmp.eq.s32.totalorder %s24, 1
      %p68 = por %p66, %p67
      %p70 = scmp.ne.s32.totalorder %s55, %s69
      %p71 = scmp.eq.s32.totalorder %s24, 0
      %p72 = por %p70, %p71
      %s74 = sadd.s32 %s73, 1
      %p77 = scmp.eq.s32.totalorder %s18, 1
      %p78 = scmp.ne.s32.totalorder %s73, %s75
      %p79 = scmp.eq.s32.totalorder %s18, 0
      %p80 = por %p78, %p79
      %p81 = scmp.ne.s32.totalorder %s73, %s75
      %p82 = scmp.eq.s32.totalorder %s23, 1
      %p83 = por %p81, %p82
      %p84 = scmp.ne.s32.totalorder %s75, %s76
      %p85 = scmp.eq.s32.totalorder %s23, 0
      %p86 = por %p84, %p85
      %p87 = scmp.ne.s32.totalorder %s75, %s76
      %p88 = scmp.eq.s32.totalorder %s24, 1
      %p89 = por %p87, %p88
      %p91 = scmp.ne.s32.totalorder %s76, %s90
      %p92 = scmp.eq.s32.totalorder %s24, 0
      %p93 = por %p91, %p92
      %s95 = sadd.s32 %s94, 1
      %p98 = scmp.eq.s32.totalorder %s18, 1
      %p99 = scmp.ne.s32.totalorder %s94, %s96
      %p100 = scmp.eq.s32.totalorder %s18, 0
      %p101 = por %p99, %p100
      %p102 = scmp.ne.s32.totalorder %s94, %s96
      %p103 = scmp.eq.s32.totalorder %s23, 1
      %p104 = por %p102, %p103
      %p105 = scmp.ne.s32.totalorder %s96, %s97
      %p106 = scmp.eq.s32.totalorder %s23, 0
      %p107 = por %p105, %p106
      %p108 = scmp.ne.s32.totalorder %s96, %s97
      %p109 = scmp.eq.s32.totalorder %s24, 1
      %p110 = por %p108, %p109
      %p112 = scmp.ne.s32.totalorder %s97, %s111
      %p113 = scmp.eq.s32.totalorder %s24, 0
      %p114 = por %p112, %p113
      %s116 = sadd.s32 %s115, 1
      %p119 = scmp.eq.s32.totalorder %s18, 1
      %p120 = scmp.ne.s32.totalorder %s115, %s117
      %p121 = scmp.eq.s32.totalorder %s18, 0
      %p122 = por %p120, %p121
      %p123 = scmp.ne.s32.totalorder %s115, %s117
      %p124 = scmp.eq.s32.totalorder %s23, 1
      %p125 = por %p123, %p124
      %p126 = scmp.ne.s32.totalorder %s117, %s118
      %p127 = scmp.eq.s32.totalorder %s23, 0
      %p128 = por %p126, %p127
      %p129 = scmp.ne.s32.totalorder %s117, %s118
      %p130 = scmp.eq.s32.totalorder %s24, 1
      %p131 = por %p129, %p130
      %p133 = scmp.ne.s32.totalorder %s118, %s132
      %p134 = scmp.eq.s32.totalorder %s24, 0
      %p135 = por %p133, %p134
      %s137 = sadd.s32 %s136, 1
      %p140 = scmp.eq.s32.totalorder %s18, 1
      %p141 = scmp.ne.s32.totalorder %s136, %s138
      %p142 = scmp.eq.s32.totalorder %s18, 0
      %p143 = por %p141, %p142
      %p144 = scmp.ne.s32.totalorder %s136, %s138
      %p145 = scmp.eq.s32.totalorder %s23, 1
      %p146 = por %p144, %p145
      %p147 = scmp.ne.s32.totalorder %s138, %s139
      %p148 = scmp.eq.s32.totalorder %s23, 0
      %p149 = por %p147, %p148
      %p150 = scmp.ne.s32.totalorder %s138, %s139
      %p151 = scmp.eq.s32.totalorder %s24, 1
      %p152 = por %p150, %p151
      %p154 = scmp.ne.s32.totalorder %s139, %s153
      %p155 = scmp.eq.s32.totalorder %s24, 0
      %p156 = por %p154, %p155
      %s158 = sadd.s32 %s157, 1
      %p161 = scmp.eq.s32.totalorder %s18, 1
      %p162 = scmp.ne.s32.totalorder %s157, %s159
      %p163 = scmp.eq.s32.totalorder %s18, 0
      %p164 = por %p162, %p163
      %p165 = scmp.ne.s32.totalorder %s157, %s159
      %p166 = scmp.eq.s32.totalorder %s23, 1
      %p167 = por %p165, %p166
      %p168 = scmp.ne.s32.totalorder %s159, %s160
      %p169 = scmp.eq.s32.totalorder %s23, 0
      %p170 = por %p168, %p169
      %p171 = scmp.ne.s32.totalorder %s159, %s160
      %p172 = scmp.eq.s32.totalorder %s24, 1
      %p173 = por %p171, %p172
      %p175 = scmp.ne.s32.totalorder %s160, %s174
      %p176 = scmp.eq.s32.totalorder %s24, 0
      %p177 = por %p175, %p176
      %s178 = ssub.s32 %s18, %s25
      %p179 = scmp.eq.s32.totalorder %s178, 0
      %s181 = sadd.s32 %s180, 1
      %s182 = scalar_select %p179, %s180, %s181
      %p185 = pneg %p179
      %p186 = scmp.eq.s32.totalorder %s18, 1
      %p187 = por %p185, %p186
      %p188 = scmp.ne.s32.totalorder %s180, %s183
      %p189 = scmp.eq.s32.totalorder %s18, 0
      %p190 = por %p188, %p189
      %p191 = scmp.ne.s32.totalorder %s180, %s183
      %p192 = scmp.eq.s32.totalorder %s23, 1
      %p193 = por %p191, %p192
      %p194 = scmp.ne.s32.totalorder %s183, %s184
      %p195 = scmp.eq.s32.totalorder %s23, 0
      %p196 = por %p194, %p195
      %p197 = scmp.ne.s32.totalorder %s183, %s184
      %p198 = scmp.eq.s32.totalorder %s24, 1
      %p199 = por %p197, %p198
      %p201 = scmp.ne.s32.totalorder %s184, %s200
      %p202 = scmp.eq.s32.totalorder %s24, 0
      %p203 = por %p201, %p202
      %p204 = scmp.le.s32.totalorder 1, %s18
      %p205 = scmp.lt.s32.totalorder %s18, 3
      %p206 = pnand %p204, %p205
      %p207 = pneg %p206
      // Predicated region
      $region9: #{tpu_custom_call.1} parent=5 // pred_check
        _
      $region10: #{tpu_custom_call.1} parent=5 // pred_check_branch
        %209 = sbr.rel (%p206) target = $region12
      $region11: #{tpu_custom_call.1} parent=5 // pred_region
        %s210 = ssub.s32 %s18, 1
        // Predicated region
        $region13: #{tpu_custom_call.1} parent=11 // pred_check
          %p211 = pneg %p65
        $region14: #{tpu_custom_call.1} parent=11 // pred_check_branch
          %213 = sbr.rel (%p211) target = $region16
        $region15: #{tpu_custom_call.1} parent=11 // pred_region
          _
        $region16: #{tpu_custom_call.1} parent=11 // pred_fallthru
          _
        // Predicated region
        $region17: #{tpu_custom_call.1} parent=11 // pred_check
          %p214 = pneg %p86
        $region18: #{tpu_custom_call.1} parent=11 // pred_check_branch
          %216 = sbr.rel (%p214) target = $region20
        $region19: #{tpu_custom_call.1} parent=11 // pred_region
          _
        $region20: #{tpu_custom_call.1} parent=11 // pred_fallthru
          _
        // Predicated region
        $region21: #{tpu_custom_call.1} parent=11 // pred_check
          %p217 = pneg %p107
        $region22: #{tpu_custom_call.1} parent=11 // pred_check_branch
          %219 = sbr.rel (%p217) target = $region24
        $region23: #{tpu_custom_call.1} parent=11 // pred_region
          %221 = vsyncadd [#allocation3], 0
          %s222 = sshll.u32 %s3, 4
          %s223 = int_to_ptr.hbm [resolvable:$true] %s222
          %s224 = sshll.u32 [#allocation2], 4
          %s225 = int_to_ptr.vmem [resolvable:$true] %s224
          %230 = dma.hbm_to_vmem [thread:$0]  %s223, 8192, %s225, [#allocation3], 256, 256, 16
        $region24: #{tpu_custom_call.1} parent=11 // pred_fallthru
          _
        // Predicated region
        $region25: #{tpu_custom_call.1} parent=11 // pred_check
          %p231 = pneg %p128
        $region26: #{tpu_custom_call.1} parent=11 // pred_check_branch
          %233 = sbr.rel (%p231) target = $region28
        $region27: #{tpu_custom_call.1} parent=11 // pred_region
          _
        $region28: #{tpu_custom_call.1} parent=11 // pred_fallthru
          _
        // Predicated region
        $region29: #{tpu_custom_call.1} parent=11 // pred_check
          %p234 = pneg %p149
        $region30: #{tpu_custom_call.1} parent=11 // pred_check_branch
          %236 = sbr.rel (%p234) target = $region32
        $region31: #{tpu_custom_call.1} parent=11 // pred_region
          %238 = vsyncadd [#allocation6], 0
          %s239 = sshll.u32 %s5, 4
          %s240 = int_to_ptr.hbm [resolvable:$true] %s239
          %s241 = sshll.u32 [#allocation5], 4
          %s242 = int_to_ptr.vmem [resolvable:$true] %s241
          %247 = dma.hbm_to_vmem [thread:$0]  %s240, 28672, %s242, [#allocation6], 448, 448, 28
        $region32: #{tpu_custom_call.1} parent=11 // pred_fallthru
          _
        // Predicated region
        $region33: #{tpu_custom_call.1} parent=11 // pred_check
          %p248 = pneg %p170
        $region34: #{tpu_custom_call.1} parent=11 // pred_check_branch
          %250 = sbr.rel (%p248) target = $region36
        $region35: #{tpu_custom_call.1} parent=11 // pred_region
          _
        $region36: #{tpu_custom_call.1} parent=11 // pred_fallthru
          _
      $region12: #{tpu_custom_call.1} parent=5 // pred_fallthru
        _
      %p251 = scmp.lt.s32.totalorder %s18, 2
      // Predicated region
      $region37: #{tpu_custom_call.1} parent=5 // pred_check
        %p252 = pneg %p251
      $region38: #{tpu_custom_call.1} parent=5 // pred_check_branch
        %254 = sbr.rel (%p252) target = $region40
      $region39: #{tpu_custom_call.1} parent=5 // pred_region
        // Predicated region
        $region41: #{tpu_custom_call.1} parent=39 // pred_check
          %p255 = pneg %p38
        $region42: #{tpu_custom_call.1} parent=39 // pred_check_branch
          %257 = sbr.rel (%p255) target = $region44
        $region43: #{tpu_custom_call.1} parent=39 // pred_region
          %s258 = smul.u32 16, %s18
          %p259 = scmp.lt.s32.totalorder %s258, 31
          %s260 = scalar_select %p259, %s258, 31
          %s261 = smul.addr %s260, 8
          %s262 = scalar_lea.vmem %s0, %s261
          %s263 = smul.u32 16, %s18
        $region44: #{tpu_custom_call.1} parent=39 // pred_fallthru
          _
      $region40: #{tpu_custom_call.1} parent=5 // pred_fallthru
        _
      %p264 = scmp.le.s32.totalorder 1, %s18
      %p265 = scmp.lt.s32.totalorder %s18, 3
      %p266 = pnand %p264, %p265
      %p267 = pneg %p266
      // Predicated region
      $region45: #{tpu_custom_call.1} parent=5 // pred_check
        _
      $region46: #{tpu_custom_call.1} parent=5 // pred_check_branch
        %269 = sbr.rel (%p266) target = $region48
      $region47: #{tpu_custom_call.1} parent=5 // pred_region
        %s270 = ssub.s32 %s18, 1
        // Predicated region
        $region49: #{tpu_custom_call.1} parent=47 // pred_check
          %p271 = pneg %p107
        $region50: #{tpu_custom_call.1} parent=47 // pred_check_branch
          %273 = sbr.rel (%p271) target = $region52
        $region51: #{tpu_custom_call.1} parent=47 // pred_region
          %275 = dma.done [#allocation3], 8192
        $region52: #{tpu_custom_call.1} parent=47 // pred_fallthru
          _
        // Predicated region
        $region53: #{tpu_custom_call.1} parent=47 // pred_check
          %p276 = pneg %p149
        $region54: #{tpu_custom_call.1} parent=47 // pred_check_branch
          %278 = sbr.rel (%p276) target = $region56
        $region55: #{tpu_custom_call.1} parent=47 // pred_region
          %280 = dma.done [#allocation6], 28672
        $region56: #{tpu_custom_call.1} parent=47 // pred_fallthru
          _
        %s281 = smul.u32 16, %s23
        %p282 = scmp.lt.s32.totalorder %s281, 31
        %s283 = scalar_select %p282, %s281, 31
        %s284 = smul.addr %s283, 8
        %s285 = scalar_lea.vmem %s0, %s284
        %p286 = pneg %p44
        %p287 = pneg %p41
        %p288 = pneg %p65
        %p289 = pneg %p62
        %p290 = pneg %p86
        %p291 = pneg %p83
        %p292 = pneg %p107
        %p293 = pneg %p104
        %p294 = pneg %p128
        %p295 = pneg %p125
        %p296 = pneg %p149
        %p297 = pneg %p146
        %p298 = pneg %p170
        %p299 = pneg %p167
        %p300 = pneg %p196
        %p301 = pneg %p193
        %s302 = sand.u32 %s183, 1
        %s303 = scalar_lea.sflag [#allocation4], %s302
        %s304 = sand.u32 %s183, 1
        %s305 = smul.addr %s304, 896
        %s306 = scalar_lea.vmem [#allocation7], %s305
        %s307 = smul.u32 16, %s23
        %p308 = scmp.lt.s32.totalorder %s307, 31
        %s309 = scalar_select %p308, %s307, 31
        %s310 = smul.addr %s309, 8
        %s311 = scalar_lea.vmem %s0, %s310
        %s312 = smul.u32 16, %s23
        %s313 = smul.u32 16, %s23
        %v315 = vld [vmem:[%s311] sm:$0xff]
        %v316 = vld [vmem:[%s311 + $0x8] sm:$0xff]
        %v317 = vld [vmem:[%s311 + $0x10] sm:$0xff]
        %v318 = vld [vmem:[%s311 + $0x18] sm:$0xff]
        %v319 = vld [vmem:[%s311 + $0x20] sm:$0xff]
        %v320 = vld [vmem:[%s311 + $0x28] sm:$0xff]
        %v321 = vld [vmem:[%s311 + $0x30] sm:$0xff]
        %v322 = vld [vmem:[%s311 + $0x38] sm:$0xff]
        %v323 = vld [vmem:[%s311 + $0x40] sm:$0xff]
        %v324 = vld [vmem:[%s311 + $0x48] sm:$0xff]
        %v325 = vld [vmem:[%s311 + $0x50] sm:$0xff]
        %v326 = vld [vmem:[%s311 + $0x58] sm:$0xff]
        %v327 = vld [vmem:[%s311 + $0x60] sm:$0xff]
        %v328 = vld [vmem:[%s311 + $0x68] sm:$0xff]
        %v329 = vld [vmem:[%s311 + $0x70] sm:$0xff]
        %v330 = vld [vmem:[%s311 + $0x78] sm:$0xff]
        %v331 = vpack.c.bf16 %v316, %v315
        %v332 = vpack.c.bf16 %v318, %v317
        %v333 = vpack.c.bf16 %v320, %v319
        %v334 = vpack.c.bf16 %v322, %v321
        %v335 = vpack.c.bf16 %v324, %v323
        %v336 = vpack.c.bf16 %v326, %v325
        %v337 = vpack.c.bf16 %v328, %v327
        %v338 = vpack.c.bf16 %v330, %v329
        %v339 = vld [vmem:[%s1] sm:$0xff]
        %v340 = vld [vmem:[%s1 + $0x8] sm:$0xff]
        %v341 = vld [vmem:[%s1 + $0x10] sm:$0xff]
        %v342 = vld [vmem:[%s1 + $0x18] sm:$0xff]
        %v343 = vld [vmem:[%s1 + $0x20] sm:$0xff]
        %v344 = vld [vmem:[%s1 + $0x28] sm:$0xff]
        %v345 = vld [vmem:[%s1 + $0x30] sm:$0xff]
        %v346 = vld [vmem:[%s1 + $0x38] sm:$0xff]
        %v347 = vld [vmem:[%s1 + $0x40] sm:$0xff]
        %v348 = vld [vmem:[%s1 + $0x48] sm:$0xff]
        %v349 = vld [vmem:[%s1 + $0x50] sm:$0xff]
        %v350 = vld [vmem:[%s1 + $0x58] sm:$0xff]
        %v351 = vld [vmem:[%s1 + $0x60] sm:$0x33]
        %v352 = vld [vmem:[%s2] sm:$0x3]
        %v354 = vperm.slane %v352, 0
        %v355 = vperm.slane %v352, 1
        %v371 = vunpack.c.l.b16 %v339
        %v372 = vunpack.c.h.b16 %v339
        %v373 = vunpack.c.l.b16 %v340
        %v374 = vunpack.c.h.b16 %v340
        %v375 = vunpack.c.l.b16 %v341
        %v376 = vunpack.c.h.b16 %v341
        %v377 = vunpack.c.l.b16 %v342
        %v378 = vunpack.c.h.b16 %v342
        %v379 = vunpack.c.l.b16 %v343
        %v380 = vunpack.c.h.b16 %v343
        %v381 = vunpack.c.l.b16 %v344
        %v382 = vunpack.c.h.b16 %v344
        %v383 = vunpack.c.l.b16 %v345
        %v384 = vunpack.c.h.b16 %v345
        %v385 = vunpack.c.l.b16 %v346
        %v386 = vunpack.c.h.b16 %v346
        %v387 = vunpack.c.l.b16 %v347
        %v388 = vunpack.c.h.b16 %v347
        %v389 = vunpack.c.l.b16 %v348
        %v390 = vunpack.c.h.b16 %v348
        %v391 = vunpack.c.l.b16 %v349
        %v392 = vunpack.c.h.b16 %v349
        %v393 = vunpack.c.l.b16 %v350
        %v394 = vunpack.c.h.b16 %v350
        %v395 = vunpack.c.l.b16 %v351
        %v396 = vunpack.c.h.b16 %v351
        %v397 = vpack.c.b16 %v373, %v371
        %v398 = vpack.c.b16 %v374, %v372
        %v399 = vpack.c.b16 %v377, %v375
        %v400 = vpack.c.b16 %v378, %v376
        %v401 = vpack.c.b16 %v381, %v379
        %v402 = vpack.c.b16 %v382, %v380
        %v403 = vpack.c.b16 %v385, %v383
        %v404 = vpack.c.b16 %v386, %v384
        %v405 = vpack.c.b16 %v389, %v387
        %v406 = vpack.c.b16 %v390, %v388
        %v407 = vpack.c.b16 %v393, %v391
        %v408 = vpack.c.b16 %v394, %v392
        %v409 = vpack.c.b16 %v395, %v395
        %v410 = vpack.c.b16 %v396, %v396
        %vm423 = vcmask 818176
        %v425 = vsel %vm423, %v331, 0
        %v428 = vsel %vm423, %v332, 0
        %v431 = vsel %vm423, %v333, 0
        %v434 = vsel %vm423, %v334, 0
        %v437 = vsel %vm423, %v335, 0
        %v440 = vsel %vm423, %v336, 0
        %v443 = vsel %vm423, %v337, 0
        %v446 = vsel %vm423, %v338, 0
        %vm448 = vcmask 1041408
        %v450 = vsel %vm448, %v409, 0
        %v453 = vsel %vm448, %v410, 0
        %455 = vmatpush.bf16.msra.mxu0 0
        %456 = vmatpush.bf16.msra.mxu0 %v450
        %457 = vmatpush.bf16.msra.mxu0 %v407
        %458 = vmatpush.bf16.msra.mxu0 %v405
        %459 = vmatpush.bf16.msra.mxu0 %v403
        %460 = vmatpush.bf16.msra.mxu0 %v401
        %461 = vmatpush.bf16.msra.mxu0 %v399
        %462 = vmatpush.bf16.msra.mxu0 %v397
        %463 = vmatmul.bf16.gmra.mxu0 %v425
        %v464 = vpop.f32.mrf.mxu0
        %v465 = vadd.f32 %v354, %v464
        %v466 = vpop.f32.mrf.mxu0
        %v467 = vadd.f32 %v354, %v466
        %468 = vmatmul.bf16.gmra.mxu0 %v428
        %v469 = vpop.f32.mrf.mxu0
        %v470 = vadd.f32 %v354, %v469
        %v471 = vpop.f32.mrf.mxu0
        %v472 = vadd.f32 %v354, %v471
        %473 = vmatmul.bf16.gmra.mxu0 %v431
        %v474 = vpop.f32.mrf.mxu0
        %v475 = vadd.f32 %v354, %v474
        %v476 = vpop.f32.mrf.mxu0
        %v477 = vadd.f32 %v354, %v476
        %478 = vmatmul.bf16.gmra.mxu0 %v434
        %v479 = vpop.f32.mrf.mxu0
        %v480 = vadd.f32 %v354, %v479
        %v481 = vpop.f32.mrf.mxu0
        %v482 = vadd.f32 %v354, %v481
        %483 = vmatmul.bf16.gmra.mxu0 %v437
        %v484 = vpop.f32.mrf.mxu0
        %v485 = vadd.f32 %v354, %v484
        %v486 = vpop.f32.mrf.mxu0
        %v487 = vadd.f32 %v354, %v486
        %488 = vmatmul.bf16.gmra.mxu0 %v440
        %v489 = vpop.f32.mrf.mxu0
        %v490 = vadd.f32 %v354, %v489
        %v491 = vpop.f32.mrf.mxu0
        %v492 = vadd.f32 %v354, %v491
        %493 = vmatmul.bf16.gmra.mxu0 %v443
        %v494 = vpop.f32.mrf.mxu0
        %v495 = vadd.f32 %v354, %v494
        %v496 = vpop.f32.mrf.mxu0
        %v497 = vadd.f32 %v354, %v496
        %498 = vmatmul.bf16.gmra.mxu0 %v446
        %v499 = vpop.f32.mrf.mxu0
        %v500 = vadd.f32 %v354, %v499
        %v501 = vpop.f32.mrf.mxu0
        %v502 = vadd.f32 %v354, %v501
        %503 = vdwg.mxu0
        %504 = vmatpush.bf16.msra.mxu0 0
        %505 = vmatpush.bf16.msra.mxu0 %v453
        %506 = vmatpush.bf16.msra.mxu0 %v408
        %507 = vmatpush.bf16.msra.mxu0 %v406
        %508 = vmatpush.bf16.msra.mxu0 %v404
        %509 = vmatpush.bf16.msra.mxu0 %v402
        %510 = vmatpush.bf16.msra.mxu0 %v400
        %511 = vmatpush.bf16.msra.mxu0 %v398
        %512 = vmatmul.bf16.gmra.mxu0 %v425
        %v513 = vpop.f32.mrf.mxu0
        %v514 = vadd.f32 %v355, %v513
        %v515 = vpop.f32.mrf.mxu0
        %v516 = vadd.f32 %v355, %v515
        %517 = vmatmul.bf16.gmra.mxu0 %v428
        %v518 = vpop.f32.mrf.mxu0
        %v519 = vadd.f32 %v355, %v518
        %v520 = vpop.f32.mrf.mxu0
        %v521 = vadd.f32 %v355, %v520
        %522 = vmatmul.bf16.gmra.mxu0 %v431
        %v523 = vpop.f32.mrf.mxu0
        %v524 = vadd.f32 %v355, %v523
        %v525 = vpop.f32.mrf.mxu0
        %v526 = vadd.f32 %v355, %v525
        %527 = vmatmul.bf16.gmra.mxu0 %v434
        %v528 = vpop.f32.mrf.mxu0
        %v529 = vadd.f32 %v355, %v528
        %v530 = vpop.f32.mrf.mxu0
        %v531 = vadd.f32 %v355, %v530
        %532 = vmatmul.bf16.gmra.mxu0 %v437
        %v533 = vpop.f32.mrf.mxu0
        %v534 = vadd.f32 %v355, %v533
        %v535 = vpop.f32.mrf.mxu0
        %v536 = vadd.f32 %v355, %v535
        %537 = vmatmul.bf16.gmra.mxu0 %v440
        %v538 = vpop.f32.mrf.mxu0
        %v539 = vadd.f32 %v355, %v538
        %v540 = vpop.f32.mrf.mxu0
        %v541 = vadd.f32 %v355, %v540
        %542 = vmatmul.bf16.gmra.mxu0 %v443
        %v543 = vpop.f32.mrf.mxu0
        %v544 = vadd.f32 %v355, %v543
        %v545 = vpop.f32.mrf.mxu0
        %v546 = vadd.f32 %v355, %v545
        %547 = vmatmul.bf16.gmra.mxu0 %v446
        %v548 = vpop.f32.mrf.mxu0
        %v549 = vadd.f32 %v355, %v548
        %v550 = vpop.f32.mrf.mxu0
        %v551 = vadd.f32 %v355, %v550
        %552 = vdwg.mxu0
        %v553 = vmax.f32 %v465, 0.0
        %v554 = vmax.f32 %v514, 0.0
        %v555 = vmax.f32 %v467, 0.0
        %v556 = vmax.f32 %v516, 0.0
        %v557 = vmax.f32 %v470, 0.0
        %v558 = vmax.f32 %v519, 0.0
        %v559 = vmax.f32 %v472, 0.0
        %v560 = vmax.f32 %v521, 0.0
        %v561 = vmax.f32 %v475, 0.0
        %v562 = vmax.f32 %v524, 0.0
        %v563 = vmax.f32 %v477, 0.0
        %v564 = vmax.f32 %v526, 0.0
        %v565 = vmax.f32 %v480, 0.0
        %v566 = vmax.f32 %v529, 0.0
        %v567 = vmax.f32 %v482, 0.0
        %v568 = vmax.f32 %v531, 0.0
        %v569 = vmax.f32 %v485, 0.0
        %v570 = vmax.f32 %v534, 0.0
        %v571 = vmax.f32 %v487, 0.0
        %v572 = vmax.f32 %v536, 0.0
        %v573 = vmax.f32 %v490, 0.0
        %v574 = vmax.f32 %v539, 0.0
        %v575 = vmax.f32 %v492, 0.0
        %v576 = vmax.f32 %v541, 0.0
        %v577 = vmax.f32 %v495, 0.0
        %v578 = vmax.f32 %v544, 0.0
        %v579 = vmax.f32 %v497, 0.0
        %v580 = vmax.f32 %v546, 0.0
        %v581 = vmax.f32 %v500, 0.0
        %v582 = vmax.f32 %v549, 0.0
        %v583 = vmax.f32 %v502, 0.0
        %v584 = vmax.f32 %v551, 0.0
        %v585 = vpack.c.bf16 %v555, %v553
        %v586 = vpack.c.bf16 %v556, %v554
        %v587 = vpack.c.bf16 %v559, %v557
        %v588 = vpack.c.bf16 %v560, %v558
        %v589 = vpack.c.bf16 %v563, %v561
        %v590 = vpack.c.bf16 %v564, %v562
        %v591 = vpack.c.bf16 %v567, %v565
        %v592 = vpack.c.bf16 %v568, %v566
        %v593 = vpack.c.bf16 %v571, %v569
        %v594 = vpack.c.bf16 %v572, %v570
        %v595 = vpack.c.bf16 %v575, %v573
        %v596 = vpack.c.bf16 %v576, %v574
        %v597 = vpack.c.bf16 %v579, %v577
        %v598 = vpack.c.bf16 %v580, %v578
        %v599 = vpack.c.bf16 %v583, %v581
        %v600 = vpack.c.bf16 %v584, %v582
        %v601 = vld [vmem:[#allocation2] sm:$0xff]
        %v602 = vld [vmem:[#allocation2 + $0x8] sm:$0xff]
        %v603 = vld [vmem:[#allocation2 + $0x10] sm:$0xff]
        %v604 = vld [vmem:[#allocation2 + $0x18] sm:$0xff]
        %v605 = vld [vmem:[#allocation2 + $0x20] sm:$0xff]
        %v606 = vld [vmem:[#allocation2 + $0x28] sm:$0xff]
        %v607 = vld [vmem:[#allocation2 + $0x30] sm:$0xff]
        %v608 = vld [vmem:[#allocation2 + $0x38] sm:$0xff]
        %v609 = vld [vmem:[#allocation2 + $0x40] sm:$0xff]
        %v610 = vld [vmem:[#allocation2 + $0x48] sm:$0xff]
        %v611 = vld [vmem:[#allocation2 + $0x50] sm:$0xff]
        %v612 = vld [vmem:[#allocation2 + $0x58] sm:$0xff]
        %v613 = vld [vmem:[#allocation2 + $0x60] sm:$0xff]
        %v614 = vld [vmem:[#allocation2 + $0x68] sm:$0xff]
        %v615 = vld [vmem:[#allocation2 + $0x70] sm:$0xff]
        %v616 = vld [vmem:[#allocation2 + $0x78] sm:$0xff]
        %v617 = vld [vmem:[#allocation2 + $0x80] sm:$0xff]
        %v618 = vld [vmem:[#allocation2 + $0x88] sm:$0xff]
        %v619 = vld [vmem:[#allocation2 + $0x90] sm:$0xff]
        %v620 = vld [vmem:[#allocation2 + $0x98] sm:$0xff]
        %v621 = vld [vmem:[#allocation2 + $0xa0] sm:$0xff]
        %v622 = vld [vmem:[#allocation2 + $0xa8] sm:$0xff]
        %v623 = vld [vmem:[#allocation2 + $0xb0] sm:$0xff]
        %v624 = vld [vmem:[#allocation2 + $0xb8] sm:$0xff]
        %v625 = vld [vmem:[#allocation2 + $0xc0] sm:$0xff]
        %v626 = vld [vmem:[#allocation2 + $0xc8] sm:$0xff]
        %v627 = vld [vmem:[#allocation2 + $0xd0] sm:$0xff]
        %v628 = vld [vmem:[#allocation2 + $0xd8] sm:$0xff]
        %v629 = vld [vmem:[#allocation2 + $0xe0] sm:$0xff]
        %v630 = vld [vmem:[#allocation2 + $0xe8] sm:$0xff]
        %v631 = vld [vmem:[#allocation2 + $0xf0] sm:$0xff]
        %v632 = vld [vmem:[#allocation2 + $0xf8] sm:$0xff]
        %v633 = vld [vmem:[#allocation2 + $0x100] sm:$0xff]
        %v634 = vld [vmem:[#allocation2 + $0x108] sm:$0xff]
        %v635 = vld [vmem:[#allocation2 + $0x110] sm:$0xff]
        %v636 = vld [vmem:[#allocation2 + $0x118] sm:$0xff]
        %v637 = vld [vmem:[#allocation2 + $0x120] sm:$0xff]
        %v638 = vld [vmem:[#allocation2 + $0x128] sm:$0xff]
        %v639 = vld [vmem:[#allocation2 + $0x130] sm:$0xff]
        %v640 = vld [vmem:[#allocation2 + $0x138] sm:$0xff]
        %v641 = vld [vmem:[#allocation2 + $0x140] sm:$0xff]
        %v642 = vld [vmem:[#allocation2 + $0x148] sm:$0xff]
        %v643 = vld [vmem:[#allocation2 + $0x150] sm:$0xff]
        %v644 = vld [vmem:[#allocation2 + $0x158] sm:$0xff]
        %v645 = vld [vmem:[#allocation2 + $0x160] sm:$0xff]
        %v646 = vld [vmem:[#allocation2 + $0x168] sm:$0xff]
        %v647 = vld [vmem:[#allocation2 + $0x170] sm:$0xff]
        %v648 = vld [vmem:[#allocation2 + $0x178] sm:$0xff]
        %v649 = vld [vmem:[#allocation2 + $0x180] sm:$0xff]
        %v650 = vld [vmem:[#allocation2 + $0x188] sm:$0xff]
        %v651 = vld [vmem:[#allocation2 + $0x190] sm:$0xff]
        %v652 = vld [vmem:[#allocation2 + $0x198] sm:$0xff]
        %v653 = vld [vmem:[#allocation2 + $0x1a0] sm:$0xff]
        %v654 = vld [vmem:[#allocation2 + $0x1a8] sm:$0xff]
        %v655 = vld [vmem:[#allocation2 + $0x1b0] sm:$0xff]
        %v656 = vld [vmem:[#allocation2 + $0x1b8] sm:$0xff]
        %v657 = vld [vmem:[#allocation2 + $0x1c0] sm:$0xff]
        %v658 = vld [vmem:[#allocation2 + $0x1c8] sm:$0xff]
        %v659 = vld [vmem:[#allocation2 + $0x1d0] sm:$0xff]
        %v660 = vld [vmem:[#allocation2 + $0x1d8] sm:$0xff]
        %v661 = vld [vmem:[#allocation2 + $0x1e0] sm:$0xff]
        %v662 = vld [vmem:[#allocation2 + $0x1e8] sm:$0xff]
        %v663 = vld [vmem:[#allocation2 + $0x1f0] sm:$0xff]
        %v664 = vld [vmem:[#allocation2 + $0x1f8] sm:$0xff]
        %v665 = vld [vmem:[%s4] sm:$0xf]
        %v667 = vperm.slane %v665, 0
        %v668 = vperm.slane %v665, 1
        %v669 = vperm.slane %v665, 2
        %v670 = vperm.slane %v665, 3
        %v739 = vunpack.c.l.b16 %v601
        %v740 = vunpack.c.h.b16 %v601
        %v741 = vunpack.c.l.b16 %v602
        %v742 = vunpack.c.h.b16 %v602
        %v743 = vunpack.c.l.b16 %v603
        %v744 = vunpack.c.h.b16 %v603
        %v745 = vunpack.c.l.b16 %v604
        %v746 = vunpack.c.h.b16 %v604
        %v747 = vunpack.c.l.b16 %v605
        %v748 = vunpack.c.h.b16 %v605
        %v749 = vunpack.c.l.b16 %v606
        %v750 = vunpack.c.h.b16 %v606
        %v751 = vunpack.c.l.b16 %v607
        %v752 = vunpack.c.h.b16 %v607
        %v753 = vunpack.c.l.b16 %v608
        %v754 = vunpack.c.h.b16 %v608
        %v755 = vunpack.c.l.b16 %v609
        %v756 = vunpack.c.h.b16 %v609
        %v757 = vunpack.c.l.b16 %v610
        %v758 = vunpack.c.h.b16 %v610
        %v759 = vunpack.c.l.b16 %v611
        %v760 = vunpack.c.h.b16 %v611
        %v761 = vunpack.c.l.b16 %v612
        %v762 = vunpack.c.h.b16 %v612
        %v763 = vunpack.c.l.b16 %v613
        %v764 = vunpack.c.h.b16 %v613
        %v765 = vunpack.c.l.b16 %v614
        %v766 = vunpack.c.h.b16 %v614
        %v767 = vunpack.c.l.b16 %v615
        %v768 = vunpack.c.h.b16 %v615
        %v769 = vunpack.c.l.b16 %v616
        %v770 = vunpack.c.h.b16 %v616
        %v771 = vunpack.c.l.b16 %v617
        %v772 = vunpack.c.h.b16 %v617
        %v773 = vunpack.c.l.b16 %v618
        %v774 = vunpack.c.h.b16 %v618
        %v775 = vunpack.c.l.b16 %v619
        %v776 = vunpack.c.h.b16 %v619
        %v777 = vunpack.c.l.b16 %v620
        %v778 = vunpack.c.h.b16 %v620
        %v779 = vunpack.c.l.b16 %v621
        %v780 = vunpack.c.h.b16 %v621
        %v781 = vunpack.c.l.b16 %v622
        %v782 = vunpack.c.h.b16 %v622
        %v783 = vunpack.c.l.b16 %v623
        %v784 = vunpack.c.h.b16 %v623
        %v785 = vunpack.c.l.b16 %v624
        %v786 = vunpack.c.h.b16 %v624
        %v787 = vunpack.c.l.b16 %v625
        %v788 = vunpack.c.h.b16 %v625
        %v789 = vunpack.c.l.b16 %v626
        %v790 = vunpack.c.h.b16 %v626
        %v791 = vunpack.c.l.b16 %v627
        %v792 = vunpack.c.h.b16 %v627
        %v793 = vunpack.c.l.b16 %v628
        %v794 = vunpack.c.h.b16 %v628
        %v795 = vunpack.c.l.b16 %v629
        %v796 = vunpack.c.h.b16 %v629
        %v797 = vunpack.c.l.b16 %v630
        %v798 = vunpack.c.h.b16 %v630
        %v799 = vunpack.c.l.b16 %v631
        %v800 = vunpack.c.h.b16 %v631
        %v801 = vunpack.c.l.b16 %v632
        %v802 = vunpack.c.h.b16 %v632
        %v803 = vunpack.c.l.b16 %v633
        %v804 = vunpack.c.h.b16 %v633
        %v805 = vunpack.c.l.b16 %v634
        %v806 = vunpack.c.h.b16 %v634
        %v807 = vunpack.c.l.b16 %v635
        %v808 = vunpack.c.h.b16 %v635
        %v809 = vunpack.c.l.b16 %v636
        %v810 = vunpack.c.h.b16 %v636
        %v811 = vunpack.c.l.b16 %v637
        %v812 = vunpack.c.h.b16 %v637
        %v813 = vunpack.c.l.b16 %v638
        %v814 = vunpack.c.h.b16 %v638
        %v815 = vunpack.c.l.b16 %v639
        %v816 = vunpack.c.h.b16 %v639
        %v817 = vunpack.c.l.b16 %v640
        %v818 = vunpack.c.h.b16 %v640
        %v819 = vunpack.c.l.b16 %v641
        %v820 = vunpack.c.h.b16 %v641
        %v821 = vunpack.c.l.b16 %v642
        %v822 = vunpack.c.h.b16 %v642
        %v823 = vunpack.c.l.b16 %v643
        %v824 = vunpack.c.h.b16 %v643
        %v825 = vunpack.c.l.b16 %v644
        %v826 = vunpack.c.h.b16 %v644
        %v827 = vunpack.c.l.b16 %v645
        %v828 = vunpack.c.h.b16 %v645
        %v829 = vunpack.c.l.b16 %v646
        %v830 = vunpack.c.h.b16 %v646
        %v831 = vunpack.c.l.b16 %v647
        %v832 = vunpack.c.h.b16 %v647
        %v833 = vunpack.c.l.b16 %v648
        %v834 = vunpack.c.h.b16 %v648
        %v835 = vunpack.c.l.b16 %v649
        %v836 = vunpack.c.h.b16 %v649
        %v837 = vunpack.c.l.b16 %v650
        %v838 = vunpack.c.h.b16 %v650
        %v839 = vunpack.c.l.b16 %v651
        %v840 = vunpack.c.h.b16 %v651
        %v841 = vunpack.c.l.b16 %v652
        %v842 = vunpack.c.h.b16 %v652
        %v843 = vunpack.c.l.b16 %v653
        %v844 = vunpack.c.h.b16 %v653
        %v845 = vunpack.c.l.b16 %v654
        %v846 = vunpack.c.h.b16 %v654
        %v847 = vunpack.c.l.b16 %v655
        %v848 = vunpack.c.h.b16 %v655
        %v849 = vunpack.c.l.b16 %v656
        %v850 = vunpack.c.h.b16 %v656
        %v851 = vunpack.c.l.b16 %v657
        %v852 = vunpack.c.h.b16 %v657
        %v853 = vunpack.c.l.b16 %v658
        %v854 = vunpack.c.h.b16 %v658
        %v855 = vunpack.c.l.b16 %v659
        %v856 = vunpack.c.h.b16 %v659
        %v857 = vunpack.c.l.b16 %v660
        %v858 = vunpack.c.h.b16 %v660
        %v859 = vunpack.c.l.b16 %v661
        %v860 = vunpack.c.h.b16 %v661
        %v861 = vunpack.c.l.b16 %v662
        %v862 = vunpack.c.h.b16 %v662
        %v863 = vunpack.c.l.b16 %v663
        %v864 = vunpack.c.h.b16 %v663
        %v865 = vunpack.c.l.b16 %v664
        %v866 = vunpack.c.h.b16 %v664
        %v867 = vpack.c.b16 %v743, %v739
        %v868 = vpack.c.b16 %v744, %v740
        %v869 = vpack.c.b16 %v745, %v741
        %v870 = vpack.c.b16 %v746, %v742
        %v871 = vpack.c.b16 %v751, %v747
        %v872 = vpack.c.b16 %v752, %v748
        %v873 = vpack.c.b16 %v753, %v749
        %v874 = vpack.c.b16 %v754, %v750
        %v875 = vpack.c.b16 %v759, %v755
        %v876 = vpack.c.b16 %v760, %v756
        %v877 = vpack.c.b16 %v761, %v757
        %v878 = vpack.c.b16 %v762, %v758
        %v879 = vpack.c.b16 %v767, %v763
        %v880 = vpack.c.b16 %v768, %v764
        %v881 = vpack.c.b16 %v769, %v765
        %v882 = vpack.c.b16 %v770, %v766
        %v883 = vpack.c.b16 %v775, %v771
        %v884 = vpack.c.b16 %v776, %v772
        %v885 = vpack.c.b16 %v777, %v773
        %v886 = vpack.c.b16 %v778, %v774
        %v887 = vpack.c.b16 %v783, %v779
        %v888 = vpack.c.b16 %v784, %v780
        %v889 = vpack.c.b16 %v785, %v781
        %v890 = vpack.c.b16 %v786, %v782
        %v891 = vpack.c.b16 %v791, %v787
        %v892 = vpack.c.b16 %v792, %v788
        %v893 = vpack.c.b16 %v793, %v789
        %v894 = vpack.c.b16 %v794, %v790
        %v895 = vpack.c.b16 %v799, %v795
        %v896 = vpack.c.b16 %v800, %v796
        %v897 = vpack.c.b16 %v801, %v797
        %v898 = vpack.c.b16 %v802, %v798
        %v899 = vpack.c.b16 %v807, %v803
        %v900 = vpack.c.b16 %v808, %v804
        %v901 = vpack.c.b16 %v809, %v805
        %v902 = vpack.c.b16 %v810, %v806
        %v903 = vpack.c.b16 %v815, %v811
        %v904 = vpack.c.b16 %v816, %v812
        %v905 = vpack.c.b16 %v817, %v813
        %v906 = vpack.c.b16 %v818, %v814
        %v907 = vpack.c.b16 %v823, %v819
        %v908 = vpack.c.b16 %v824, %v820
        %v909 = vpack.c.b16 %v825, %v821
        %v910 = vpack.c.b16 %v826, %v822
        %v911 = vpack.c.b16 %v831, %v827
        %v912 = vpack.c.b16 %v832, %v828
        %v913 = vpack.c.b16 %v833, %v829
        %v914 = vpack.c.b16 %v834, %v830
        %v915 = vpack.c.b16 %v839, %v835
        %v916 = vpack.c.b16 %v840, %v836
        %v917 = vpack.c.b16 %v841, %v837
        %v918 = vpack.c.b16 %v842, %v838
        %v919 = vpack.c.b16 %v847, %v843
        %v920 = vpack.c.b16 %v848, %v844
        %v921 = vpack.c.b16 %v849, %v845
        %v922 = vpack.c.b16 %v850, %v846
        %v923 = vpack.c.b16 %v855, %v851
        %v924 = vpack.c.b16 %v856, %v852
        %v925 = vpack.c.b16 %v857, %v853
        %v926 = vpack.c.b16 %v858, %v854
        %v927 = vpack.c.b16 %v863, %v859
        %v928 = vpack.c.b16 %v864, %v860
        %v929 = vpack.c.b16 %v865, %v861
        %v930 = vpack.c.b16 %v866, %v862
        %995 = vmatpush.bf16.msra.mxu0 %v895
        %996 = vmatpush.bf16.msra.mxu0 %v891
        %997 = vmatpush.bf16.msra.mxu0 %v887
        %998 = vmatpush.bf16.msra.mxu0 %v883
        %999 = vmatpush.bf16.msra.mxu0 %v879
        %1000 = vmatpush.bf16.msra.mxu0 %v875
        %1001 = vmatpush.bf16.msra.mxu0 %v871
        %1002 = vmatpush.bf16.msra.mxu0 %v867
        %1003 = vmatmul.bf16.gmra.mxu0 %v585
        %v1004 = vpop.f32.mrf.mxu0
        %v1005 = vadd.f32 %v667, %v1004
        %v1006 = vpop.f32.mrf.mxu0
        %v1007 = vadd.f32 %v667, %v1006
        %1008 = vmatmul.bf16.gmra.mxu0 %v587
        %v1009 = vpop.f32.mrf.mxu0
        %v1010 = vadd.f32 %v667, %v1009
        %v1011 = vpop.f32.mrf.mxu0
        %v1012 = vadd.f32 %v667, %v1011
        %1013 = vmatmul.bf16.gmra.mxu0 %v589
        %v1014 = vpop.f32.mrf.mxu0
        %v1015 = vadd.f32 %v667, %v1014
        %v1016 = vpop.f32.mrf.mxu0
        %v1017 = vadd.f32 %v667, %v1016
        %1018 = vmatmul.bf16.gmra.mxu0 %v591
        %v1019 = vpop.f32.mrf.mxu0
        %v1020 = vadd.f32 %v667, %v1019
        %v1021 = vpop.f32.mrf.mxu0
        %v1022 = vadd.f32 %v667, %v1021
        %1023 = vmatmul.bf16.gmra.mxu0 %v593
        %v1024 = vpop.f32.mrf.mxu0
        %v1025 = vadd.f32 %v667, %v1024
        %v1026 = vpop.f32.mrf.mxu0
        %v1027 = vadd.f32 %v667, %v1026
        %1028 = vmatmul.bf16.gmra.mxu0 %v595
        %v1029 = vpop.f32.mrf.mxu0
        %v1030 = vadd.f32 %v667, %v1029
        %v1031 = vpop.f32.mrf.mxu0
        %v1032 = vadd.f32 %v667, %v1031
        %1033 = vmatmul.bf16.gmra.mxu0 %v597
        %v1034 = vpop.f32.mrf.mxu0
        %v1035 = vadd.f32 %v667, %v1034
        %v1036 = vpop.f32.mrf.mxu0
        %v1037 = vadd.f32 %v667, %v1036
        %1038 = vmatmul.bf16.gmra.mxu0 %v599
        %v1039 = vpop.f32.mrf.mxu0
        %v1040 = vadd.f32 %v667, %v1039
        %v1041 = vpop.f32.mrf.mxu0
        %v1042 = vadd.f32 %v667, %v1041
        %1043 = vdwg.mxu0
        %1044 = vmatpush.bf16.msra.mxu0 %v927
        %1045 = vmatpush.bf16.msra.mxu0 %v923
        %1046 = vmatpush.bf16.msra.mxu0 %v919
        %1047 = vmatpush.bf16.msra.mxu0 %v915
        %1048 = vmatpush.bf16.msra.mxu0 %v911
        %1049 = vmatpush.bf16.msra.mxu0 %v907
        %1050 = vmatpush.bf16.msra.mxu0 %v903
        %1051 = vmatpush.bf16.msra.mxu0 %v899
        %1052 = vmatmul.bf16.gmra.mxu0 %v586
        %v1053 = vpop.f32.mrf.mxu0
        %v1054 = vadd.f32 %v1005, %v1053
        %v1055 = vpop.f32.mrf.mxu0
        %v1056 = vadd.f32 %v1007, %v1055
        %1057 = vmatmul.bf16.gmra.mxu0 %v588
        %v1058 = vpop.f32.mrf.mxu0
        %v1059 = vadd.f32 %v1010, %v1058
        %v1060 = vpop.f32.mrf.mxu0
        %v1061 = vadd.f32 %v1012, %v1060
        %1062 = vmatmul.bf16.gmra.mxu0 %v590
        %v1063 = vpop.f32.mrf.mxu0
        %v1064 = vadd.f32 %v1015, %v1063
        %v1065 = vpop.f32.mrf.mxu0
        %v1066 = vadd.f32 %v1017, %v1065
        %1067 = vmatmul.bf16.gmra.mxu0 %v592
        %v1068 = vpop.f32.mrf.mxu0
        %v1069 = vadd.f32 %v1020, %v1068
        %v1070 = vpop.f32.mrf.mxu0
        %v1071 = vadd.f32 %v1022, %v1070
        %1072 = vmatmul.bf16.gmra.mxu0 %v594
        %v1073 = vpop.f32.mrf.mxu0
        %v1074 = vadd.f32 %v1025, %v1073
        %v1075 = vpop.f32.mrf.mxu0
        %v1076 = vadd.f32 %v1027, %v1075
        %1077 = vmatmul.bf16.gmra.mxu0 %v596
        %v1078 = vpop.f32.mrf.mxu0
        %v1079 = vadd.f32 %v1030, %v1078
        %v1080 = vpop.f32.mrf.mxu0
        %v1081 = vadd.f32 %v1032, %v1080
        %1082 = vmatmul.bf16.gmra.mxu0 %v598
        %v1083 = vpop.f32.mrf.mxu0
        %v1084 = vadd.f32 %v1035, %v1083
        %v1085 = vpop.f32.mrf.mxu0
        %v1086 = vadd.f32 %v1037, %v1085
        %1087 = vmatmul.bf16.gmra.mxu0 %v600
        %v1088 = vpop.f32.mrf.mxu0
        %v1089 = vadd.f32 %v1040, %v1088
        %v1090 = vpop.f32.mrf.mxu0
        %v1091 = vadd.f32 %v1042, %v1090
        %1092 = vdwg.mxu0
        %1093 = vmatpush.bf16.msra.mxu0 %v896
        %1094 = vmatpush.bf16.msra.mxu0 %v892
        %1095 = vmatpush.bf16.msra.mxu0 %v888
        %1096 = vmatpush.bf16.msra.mxu0 %v884
        %1097 = vmatpush.bf16.msra.mxu0 %v880
        %1098 = vmatpush.bf16.msra.mxu0 %v876
        %1099 = vmatpush.bf16.msra.mxu0 %v872
        %1100 = vmatpush.bf16.msra.mxu0 %v868
        %1101 = vmatmul.bf16.gmra.mxu0 %v585
        %v1102 = vpop.f32.mrf.mxu0
        %v1103 = vadd.f32 %v668, %v1102
        %v1104 = vpop.f32.mrf.mxu0
        %v1105 = vadd.f32 %v668, %v1104
        %1106 = vmatmul.bf16.gmra.mxu0 %v587
        %v1107 = vpop.f32.mrf.mxu0
        %v1108 = vadd.f32 %v668, %v1107
        %v1109 = vpop.f32.mrf.mxu0
        %v1110 = vadd.f32 %v668, %v1109
        %1111 = vmatmul.bf16.gmra.mxu0 %v589
        %v1112 = vpop.f32.mrf.mxu0
        %v1113 = vadd.f32 %v668, %v1112
        %v1114 = vpop.f32.mrf.mxu0
        %v1115 = vadd.f32 %v668, %v1114
        %1116 = vmatmul.bf16.gmra.mxu0 %v591
        %v1117 = vpop.f32.mrf.mxu0
        %v1118 = vadd.f32 %v668, %v1117
        %v1119 = vpop.f32.mrf.mxu0
        %v1120 = vadd.f32 %v668, %v1119
        %1121 = vmatmul.bf16.gmra.mxu0 %v593
        %v1122 = vpop.f32.mrf.mxu0
        %v1123 = vadd.f32 %v668, %v1122
        %v1124 = vpop.f32.mrf.mxu0
        %v1125 = vadd.f32 %v668, %v1124
        %1126 = vmatmul.bf16.gmra.mxu0 %v595
        %v1127 = vpop.f32.mrf.mxu0
        %v1128 = vadd.f32 %v668, %v1127
        %v1129 = vpop.f32.mrf.mxu0
        %v1130 = vadd.f32 %v668, %v1129
        %1131 = vmatmul.bf16.gmra.mxu0 %v597
        %v1132 = vpop.f32.mrf.mxu0
        %v1133 = vadd.f32 %v668, %v1132
        %v1134 = vpop.f32.mrf.mxu0
        %v1135 = vadd.f32 %v668, %v1134
        %1136 = vmatmul.bf16.gmra.mxu0 %v599
        %v1137 = vpop.f32.mrf.mxu0
        %v1138 = vadd.f32 %v668, %v1137
        %v1139 = vpop.f32.mrf.mxu0
        %v1140 = vadd.f32 %v668, %v1139
        %1141 = vdwg.mxu0
        %1142 = vmatpush.bf16.msra.mxu0 %v928
        %1143 = vmatpush.bf16.msra.mxu0 %v924
        %1144 = vmatpush.bf16.msra.mxu0 %v920
        %1145 = vmatpush.bf16.msra.mxu0 %v916
        %1146 = vmatpush.bf16.msra.mxu0 %v912
        %1147 = vmatpush.bf16.msra.mxu0 %v908
        %1148 = vmatpush.bf16.msra.mxu0 %v904
        %1149 = vmatpush.bf16.msra.mxu0 %v900
        %1150 = vmatmul.bf16.gmra.mxu0 %v586
        %v1151 = vpop.f32.mrf.mxu0
        %v1152 = vadd.f32 %v1103, %v1151
        %v1153 = vpop.f32.mrf.mxu0
        %v1154 = vadd.f32 %v1105, %v1153
        %1155 = vmatmul.bf16.gmra.mxu0 %v588
        %v1156 = vpop.f32.mrf.mxu0
        %v1157 = vadd.f32 %v1108, %v1156
        %v1158 = vpop.f32.mrf.mxu0
        %v1159 = vadd.f32 %v1110, %v1158
        %1160 = vmatmul.bf16.gmra.mxu0 %v590
        %v1161 = vpop.f32.mrf.mxu0
        %v1162 = vadd.f32 %v1113, %v1161
        %v1163 = vpop.f32.mrf.mxu0
        %v1164 = vadd.f32 %v1115, %v1163
        %1165 = vmatmul.bf16.gmra.mxu0 %v592
        %v1166 = vpop.f32.mrf.mxu0
        %v1167 = vadd.f32 %v1118, %v1166
        %v1168 = vpop.f32.mrf.mxu0
        %v1169 = vadd.f32 %v1120, %v1168
        %1170 = vmatmul.bf16.gmra.mxu0 %v594
        %v1171 = vpop.f32.mrf.mxu0
        %v1172 = vadd.f32 %v1123, %v1171
        %v1173 = vpop.f32.mrf.mxu0
        %v1174 = vadd.f32 %v1125, %v1173
        %1175 = vmatmul.bf16.gmra.mxu0 %v596
        %v1176 = vpop.f32.mrf.mxu0
        %v1177 = vadd.f32 %v1128, %v1176
        %v1178 = vpop.f32.mrf.mxu0
        %v1179 = vadd.f32 %v1130, %v1178
        %1180 = vmatmul.bf16.gmra.mxu0 %v598
        %v1181 = vpop.f32.mrf.mxu0
        %v1182 = vadd.f32 %v1133, %v1181
        %v1183 = vpop.f32.mrf.mxu0
        %v1184 = vadd.f32 %v1135, %v1183
        %1185 = vmatmul.bf16.gmra.mxu0 %v600
        %v1186 = vpop.f32.mrf.mxu0
        %v1187 = vadd.f32 %v1138, %v1186
        %v1188 = vpop.f32.mrf.mxu0
        %v1189 = vadd.f32 %v1140, %v1188
        %1190 = vdwg.mxu0
        %1191 = vmatpush.bf16.msra.mxu0 %v897
        %1192 = vmatpush.bf16.msra.mxu0 %v893
        %1193 = vmatpush.bf16.msra.mxu0 %v889
        %1194 = vmatpush.bf16.msra.mxu0 %v885
        %1195 = vmatpush.bf16.msra.mxu0 %v881
        %1196 = vmatpush.bf16.msra.mxu0 %v877
        %1197 = vmatpush.bf16.msra.mxu0 %v873
        %1198 = vmatpush.bf16.msra.mxu0 %v869
        %1199 = vmatmul.bf16.gmra.mxu0 %v585
        %v1200 = vpop.f32.mrf.mxu0
        %v1201 = vadd.f32 %v669, %v1200
        %v1202 = vpop.f32.mrf.mxu0
        %v1203 = vadd.f32 %v669, %v1202
        %1204 = vmatmul.bf16.gmra.mxu0 %v587
        %v1205 = vpop.f32.mrf.mxu0
        %v1206 = vadd.f32 %v669, %v1205
        %v1207 = vpop.f32.mrf.mxu0
        %v1208 = vadd.f32 %v669, %v1207
        %1209 = vmatmul.bf16.gmra.mxu0 %v589
        %v1210 = vpop.f32.mrf.mxu0
        %v1211 = vadd.f32 %v669, %v1210
        %v1212 = vpop.f32.mrf.mxu0
        %v1213 = vadd.f32 %v669, %v1212
        %1214 = vmatmul.bf16.gmra.mxu0 %v591
        %v1215 = vpop.f32.mrf.mxu0
        %v1216 = vadd.f32 %v669, %v1215
        %v1217 = vpop.f32.mrf.mxu0
        %v1218 = vadd.f32 %v669, %v1217
        %1219 = vmatmul.bf16.gmra.mxu0 %v593
        %v1220 = vpop.f32.mrf.mxu0
        %v1221 = vadd.f32 %v669, %v1220
        %v1222 = vpop.f32.mrf.mxu0
        %v1223 = vadd.f32 %v669, %v1222
        %1224 = vmatmul.bf16.gmra.mxu0 %v595
        %v1225 = vpop.f32.mrf.mxu0
        %v1226 = vadd.f32 %v669, %v1225
        %v1227 = vpop.f32.mrf.mxu0
        %v1228 = vadd.f32 %v669, %v1227
        %1229 = vmatmul.bf16.gmra.mxu0 %v597
        %v1230 = vpop.f32.mrf.mxu0
        %v1231 = vadd.f32 %v669, %v1230
        %v1232 = vpop.f32.mrf.mxu0
        %v1233 = vadd.f32 %v669, %v1232
        %1234 = vmatmul.bf16.gmra.mxu0 %v599
        %v1235 = vpop.f32.mrf.mxu0
        %v1236 = vadd.f32 %v669, %v1235
        %v1237 = vpop.f32.mrf.mxu0
        %v1238 = vadd.f32 %v669, %v1237
        %1239 = vdwg.mxu0
        %1240 = vmatpush.bf16.msra.mxu0 %v929
        %1241 = vmatpush.bf16.msra.mxu0 %v925
        %1242 = vmatpush.bf16.msra.mxu0 %v921
        %1243 = vmatpush.bf16.msra.mxu0 %v917
        %1244 = vmatpush.bf16.msra.mxu0 %v913
        %1245 = vmatpush.bf16.msra.mxu0 %v909
        %1246 = vmatpush.bf16.msra.mxu0 %v905
        %1247 = vmatpush.bf16.msra.mxu0 %v901
        %1248 = vmatmul.bf16.gmra.mxu0 %v586
        %v1249 = vpop.f32.mrf.mxu0
        %v1250 = vadd.f32 %v1201, %v1249
        %v1251 = vpop.f32.mrf.mxu0
        %v1252 = vadd.f32 %v1203, %v1251
        %1253 = vmatmul.bf16.gmra.mxu0 %v588
        %v1254 = vpop.f32.mrf.mxu0
        %v1255 = vadd.f32 %v1206, %v1254
        %v1256 = vpop.f32.mrf.mxu0
        %v1257 = vadd.f32 %v1208, %v1256
        %1258 = vmatmul.bf16.gmra.mxu0 %v590
        %v1259 = vpop.f32.mrf.mxu0
        %v1260 = vadd.f32 %v1211, %v1259
        %v1261 = vpop.f32.mrf.mxu0
        %v1262 = vadd.f32 %v1213, %v1261
        %1263 = vmatmul.bf16.gmra.mxu0 %v592
        %v1264 = vpop.f32.mrf.mxu0
        %v1265 = vadd.f32 %v1216, %v1264
        %v1266 = vpop.f32.mrf.mxu0
        %v1267 = vadd.f32 %v1218, %v1266
        %1268 = vmatmul.bf16.gmra.mxu0 %v594
        %v1269 = vpop.f32.mrf.mxu0
        %v1270 = vadd.f32 %v1221, %v1269
        %v1271 = vpop.f32.mrf.mxu0
        %v1272 = vadd.f32 %v1223, %v1271
        %1273 = vmatmul.bf16.gmra.mxu0 %v596
        %v1274 = vpop.f32.mrf.mxu0
        %v1275 = vadd.f32 %v1226, %v1274
        %v1276 = vpop.f32.mrf.mxu0
        %v1277 = vadd.f32 %v1228, %v1276
        %1278 = vmatmul.bf16.gmra.mxu0 %v598
        %v1279 = vpop.f32.mrf.mxu0
        %v1280 = vadd.f32 %v1231, %v1279
        %v1281 = vpop.f32.mrf.mxu0
        %v1282 = vadd.f32 %v1233, %v1281
        %1283 = vmatmul.bf16.gmra.mxu0 %v600
        %v1284 = vpop.f32.mrf.mxu0
        %v1285 = vadd.f32 %v1236, %v1284
        %v1286 = vpop.f32.mrf.mxu0
        %v1287 = vadd.f32 %v1238, %v1286
        %1288 = vdwg.mxu0
        %1289 = vmatpush.bf16.msra.mxu0 %v898
        %1290 = vmatpush.bf16.msra.mxu0 %v894
        %1291 = vmatpush.bf16.msra.mxu0 %v890
        %1292 = vmatpush.bf16.msra.mxu0 %v886
        %1293 = vmatpush.bf16.msra.mxu0 %v882
        %1294 = vmatpush.bf16.msra.mxu0 %v878
        %1295 = vmatpush.bf16.msra.mxu0 %v874
        %1296 = vmatpush.bf16.msra.mxu0 %v870
        %1297 = vmatmul.bf16.gmra.mxu0 %v585
        %v1298 = vpop.f32.mrf.mxu0
        %v1299 = vadd.f32 %v670, %v1298
        %v1300 = vpop.f32.mrf.mxu0
        %v1301 = vadd.f32 %v670, %v1300
        %1302 = vmatmul.bf16.gmra.mxu0 %v587
        %v1303 = vpop.f32.mrf.mxu0
        %v1304 = vadd.f32 %v670, %v1303
        %v1305 = vpop.f32.mrf.mxu0
        %v1306 = vadd.f32 %v670, %v1305
        %1307 = vmatmul.bf16.gmra.mxu0 %v589
        %v1308 = vpop.f32.mrf.mxu0
        %v1309 = vadd.f32 %v670, %v1308
        %v1310 = vpop.f32.mrf.mxu0
        %v1311 = vadd.f32 %v670, %v1310
        %1312 = vmatmul.bf16.gmra.mxu0 %v591
        %v1313 = vpop.f32.mrf.mxu0
        %v1314 = vadd.f32 %v670, %v1313
        %v1315 = vpop.f32.mrf.mxu0
        %v1316 = vadd.f32 %v670, %v1315
        %1317 = vmatmul.bf16.gmra.mxu0 %v593
        %v1318 = vpop.f32.mrf.mxu0
        %v1319 = vadd.f32 %v670, %v1318
        %v1320 = vpop.f32.mrf.mxu0
        %v1321 = vadd.f32 %v670, %v1320
        %1322 = vmatmul.bf16.gmra.mxu0 %v595
        %v1323 = vpop.f32.mrf.mxu0
        %v1324 = vadd.f32 %v670, %v1323
        %v1325 = vpop.f32.mrf.mxu0
        %v1326 = vadd.f32 %v670, %v1325
        %1327 = vmatmul.bf16.gmra.mxu0 %v597
        %v1328 = vpop.f32.mrf.mxu0
        %v1329 = vadd.f32 %v670, %v1328
        %v1330 = vpop.f32.mrf.mxu0
        %v1331 = vadd.f32 %v670, %v1330
        %1332 = vmatmul.bf16.gmra.mxu0 %v599
        %v1333 = vpop.f32.mrf.mxu0
        %v1334 = vadd.f32 %v670, %v1333
        %v1335 = vpop.f32.mrf.mxu0
        %v1336 = vadd.f32 %v670, %v1335
        %1337 = vdwg.mxu0
        %1338 = vmatpush.bf16.msra.mxu0 %v930
        %1339 = vmatpush.bf16.msra.mxu0 %v926
        %1340 = vmatpush.bf16.msra.mxu0 %v922
        %1341 = vmatpush.bf16.msra.mxu0 %v918
        %1342 = vmatpush.bf16.msra.mxu0 %v914
        %1343 = vmatpush.bf16.msra.mxu0 %v910
        %1344 = vmatpush.bf16.msra.mxu0 %v906
        %1345 = vmatpush.bf16.msra.mxu0 %v902
        %1346 = vmatmul.bf16.gmra.mxu0 %v586
        %v1347 = vpop.f32.mrf.mxu0
        %v1348 = vadd.f32 %v1299, %v1347
        %v1349 = vpop.f32.mrf.mxu0
        %v1350 = vadd.f32 %v1301, %v1349
        %1351 = vmatmul.bf16.gmra.mxu0 %v588
        %v1352 = vpop.f32.mrf.mxu0
        %v1353 = vadd.f32 %v1304, %v1352
        %v1354 = vpop.f32.mrf.mxu0
        %v1355 = vadd.f32 %v1306, %v1354
        %1356 = vmatmul.bf16.gmra.mxu0 %v590
        %v1357 = vpop.f32.mrf.mxu0
        %v1358 = vadd.f32 %v1309, %v1357
        %v1359 = vpop.f32.mrf.mxu0
        %v1360 = vadd.f32 %v1311, %v1359
        %1361 = vmatmul.bf16.gmra.mxu0 %v592
        %v1362 = vpop.f32.mrf.mxu0
        %v1363 = vadd.f32 %v1314, %v1362
        %v1364 = vpop.f32.mrf.mxu0
        %v1365 = vadd.f32 %v1316, %v1364
        %1366 = vmatmul.bf16.gmra.mxu0 %v594
        %v1367 = vpop.f32.mrf.mxu0
        %v1368 = vadd.f32 %v1319, %v1367
        %v1369 = vpop.f32.mrf.mxu0
        %v1370 = vadd.f32 %v1321, %v1369
        %1371 = vmatmul.bf16.gmra.mxu0 %v596
        %v1372 = vpop.f32.mrf.mxu0
        %v1373 = vadd.f32 %v1324, %v1372
        %v1374 = vpop.f32.mrf.mxu0
        %v1375 = vadd.f32 %v1326, %v1374
        %1376 = vmatmul.bf16.gmra.mxu0 %v598
        %v1377 = vpop.f32.mrf.mxu0
        %v1378 = vadd.f32 %v1329, %v1377
        %v1379 = vpop.f32.mrf.mxu0
        %v1380 = vadd.f32 %v1331, %v1379
        %1381 = vmatmul.bf16.gmra.mxu0 %v600
        %v1382 = vpop.f32.mrf.mxu0
        %v1383 = vadd.f32 %v1334, %v1382
        %v1384 = vpop.f32.mrf.mxu0
        %v1385 = vadd.f32 %v1336, %v1384
        %1386 = vdwg.mxu0
        %v1387 = vmax.f32 %v1054, 0.0
        %v1388 = vmax.f32 %v1152, 0.0
        %v1389 = vmax.f32 %v1250, 0.0
        %v1390 = vmax.f32 %v1348, 0.0
        %v1391 = vmax.f32 %v1056, 0.0
        %v1392 = vmax.f32 %v1154, 0.0
        %v1393 = vmax.f32 %v1252, 0.0
        %v1394 = vmax.f32 %v1350, 0.0
        %v1395 = vmax.f32 %v1059, 0.0
        %v1396 = vmax.f32 %v1157, 0.0
        %v1397 = vmax.f32 %v1255, 0.0
        %v1398 = vmax.f32 %v1353, 0.0
        %v1399 = vmax.f32 %v1061, 0.0
        %v1400 = vmax.f32 %v1159, 0.0
        %v1401 = vmax.f32 %v1257, 0.0
        %v1402 = vmax.f32 %v1355, 0.0
        %v1403 = vmax.f32 %v1064, 0.0
        %v1404 = vmax.f32 %v1162, 0.0
        %v1405 = vmax.f32 %v1260, 0.0
        %v1406 = vmax.f32 %v1358, 0.0
        %v1407 = vmax.f32 %v1066, 0.0
        %v1408 = vmax.f32 %v1164, 0.0
        %v1409 = vmax.f32 %v1262, 0.0
        %v1410 = vmax.f32 %v1360, 0.0
        %v1411 = vmax.f32 %v1069, 0.0
        %v1412 = vmax.f32 %v1167, 0.0
        %v1413 = vmax.f32 %v1265, 0.0
        %v1414 = vmax.f32 %v1363, 0.0
        %v1415 = vmax.f32 %v1071, 0.0
        %v1416 = vmax.f32 %v1169, 0.0
        %v1417 = vmax.f32 %v1267, 0.0
        %v1418 = vmax.f32 %v1365, 0.0
        %v1419 = vmax.f32 %v1074, 0.0
        %v1420 = vmax.f32 %v1172, 0.0
        %v1421 = vmax.f32 %v1270, 0.0
        %v1422 = vmax.f32 %v1368, 0.0
        %v1423 = vmax.f32 %v1076, 0.0
        %v1424 = vmax.f32 %v1174, 0.0
        %v1425 = vmax.f32 %v1272, 0.0
        %v1426 = vmax.f32 %v1370, 0.0
        %v1427 = vmax.f32 %v1079, 0.0
        %v1428 = vmax.f32 %v1177, 0.0
        %v1429 = vmax.f32 %v1275, 0.0
        %v1430 = vmax.f32 %v1373, 0.0
        %v1431 = vmax.f32 %v1081, 0.0
        %v1432 = vmax.f32 %v1179, 0.0
        %v1433 = vmax.f32 %v1277, 0.0
        %v1434 = vmax.f32 %v1375, 0.0
        %v1435 = vmax.f32 %v1084, 0.0
        %v1436 = vmax.f32 %v1182, 0.0
        %v1437 = vmax.f32 %v1280, 0.0
        %v1438 = vmax.f32 %v1378, 0.0
        %v1439 = vmax.f32 %v1086, 0.0
        %v1440 = vmax.f32 %v1184, 0.0
        %v1441 = vmax.f32 %v1282, 0.0
        %v1442 = vmax.f32 %v1380, 0.0
        %v1443 = vmax.f32 %v1089, 0.0
        %v1444 = vmax.f32 %v1187, 0.0
        %v1445 = vmax.f32 %v1285, 0.0
        %v1446 = vmax.f32 %v1383, 0.0
        %v1447 = vmax.f32 %v1091, 0.0
        %v1448 = vmax.f32 %v1189, 0.0
        %v1449 = vmax.f32 %v1287, 0.0
        %v1450 = vmax.f32 %v1385, 0.0
        %v1451 = vpack.c.bf16 %v1391, %v1387
        %v1452 = vpack.c.bf16 %v1392, %v1388
        %v1453 = vpack.c.bf16 %v1393, %v1389
        %v1454 = vpack.c.bf16 %v1394, %v1390
        %v1455 = vpack.c.bf16 %v1399, %v1395
        %v1456 = vpack.c.bf16 %v1400, %v1396
        %v1457 = vpack.c.bf16 %v1401, %v1397
        %v1458 = vpack.c.bf16 %v1402, %v1398
        %v1459 = vpack.c.bf16 %v1407, %v1403
        %v1460 = vpack.c.bf16 %v1408, %v1404
        %v1461 = vpack.c.bf16 %v1409, %v1405
        %v1462 = vpack.c.bf16 %v1410, %v1406
        %v1463 = vpack.c.bf16 %v1415, %v1411
        %v1464 = vpack.c.bf16 %v1416, %v1412
        %v1465 = vpack.c.bf16 %v1417, %v1413
        %v1466 = vpack.c.bf16 %v1418, %v1414
        %v1467 = vpack.c.bf16 %v1423, %v1419
        %v1468 = vpack.c.bf16 %v1424, %v1420
        %v1469 = vpack.c.bf16 %v1425, %v1421
        %v1470 = vpack.c.bf16 %v1426, %v1422
        %v1471 = vpack.c.bf16 %v1431, %v1427
        %v1472 = vpack.c.bf16 %v1432, %v1428
        %v1473 = vpack.c.bf16 %v1433, %v1429
        %v1474 = vpack.c.bf16 %v1434, %v1430
        %v1475 = vpack.c.bf16 %v1439, %v1435
        %v1476 = vpack.c.bf16 %v1440, %v1436
        %v1477 = vpack.c.bf16 %v1441, %v1437
        %v1478 = vpack.c.bf16 %v1442, %v1438
        %v1479 = vpack.c.bf16 %v1447, %v1443
        %v1480 = vpack.c.bf16 %v1448, %v1444
        %v1481 = vpack.c.bf16 %v1449, %v1445
        %v1482 = vpack.c.bf16 %v1450, %v1446
        %v1483 = vld [vmem:[#allocation5] sm:$0xff]
        %v1484 = vld [vmem:[#allocation5 + $0x8] sm:$0xff]
        %v1485 = vld [vmem:[#allocation5 + $0x10] sm:$0xff]
        %v1486 = vld [vmem:[#allocation5 + $0x18] sm:$0xf]
        %v1487 = vld [vmem:[#allocation5 + $0x1c] sm:$0xff]
        %v1488 = vld [vmem:[#allocation5 + $0x24] sm:$0xff]
        %v1489 = vld [vmem:[#allocation5 + $0x2c] sm:$0xff]
        %v1490 = vld [vmem:[#allocation5 + $0x34] sm:$0xf]
        %v1491 = vld [vmem:[#allocation5 + $0x38] sm:$0xff]
        %v1492 = vld [vmem:[#allocation5 + $0x40] sm:$0xff]
        %v1493 = vld [vmem:[#allocation5 + $0x48] sm:$0xff]
        %v1494 = vld [vmem:[#allocation5 + $0x50] sm:$0xf]
        %v1495 = vld [vmem:[#allocation5 + $0x54] sm:$0xff]
        %v1496 = vld [vmem:[#allocation5 + $0x5c] sm:$0xff]
        %v1497 = vld [vmem:[#allocation5 + $0x64] sm:$0xff]
        %v1498 = vld [vmem:[#allocation5 + $0x6c] sm:$0xf]
        %v1499 = vld [vmem:[#allocation5 + $0x70] sm:$0xff]
        %v1500 = vld [vmem:[#allocation5 + $0x78] sm:$0xff]
        %v1501 = vld [vmem:[#allocation5 + $0x80] sm:$0xff]
        %v1502 = vld [vmem:[#allocation5 + $0x88] sm:$0xf]
        %v1503 = vld [vmem:[#allocation5 + $0x8c] sm:$0xff]
        %v1504 = vld [vmem:[#allocation5 + $0x94] sm:$0xff]
        %v1505 = vld [vmem:[#allocation5 + $0x9c] sm:$0xff]
        %v1506 = vld [vmem:[#allocation5 + $0xa4] sm:$0xf]
        %v1507 = vld [vmem:[#allocation5 + $0xa8] sm:$0xff]
        %v1508 = vld [vmem:[#allocation5 + $0xb0] sm:$0xff]
        %v1509 = vld [vmem:[#allocation5 + $0xb8] sm:$0xff]
        %v1510 = vld [vmem:[#allocation5 + $0xc0] sm:$0xf]
        %v1511 = vld [vmem:[#allocation5 + $0xc4] sm:$0xff]
        %v1512 = vld [vmem:[#allocation5 + $0xcc] sm:$0xff]
        %v1513 = vld [vmem:[#allocation5 + $0xd4] sm:$0xff]
        %v1514 = vld [vmem:[#allocation5 + $0xdc] sm:$0xf]
        %v1515 = vld [vmem:[#allocation5 + $0xe0] sm:$0xff]
        %v1516 = vld [vmem:[#allocation5 + $0xe8] sm:$0xff]
        %v1517 = vld [vmem:[#allocation5 + $0xf0] sm:$0xff]
        %v1518 = vld [vmem:[#allocation5 + $0xf8] sm:$0xf]
        %v1519 = vld [vmem:[#allocation5 + $0xfc] sm:$0xff]
        %v1520 = vld [vmem:[#allocation5 + $0x104] sm:$0xff]
        %v1521 = vld [vmem:[#allocation5 + $0x10c] sm:$0xff]
        %v1522 = vld [vmem:[#allocation5 + $0x114] sm:$0xf]
        %v1523 = vld [vmem:[#allocation5 + $0x118] sm:$0xff]
        %v1524 = vld [vmem:[#allocation5 + $0x120] sm:$0xff]
        %v1525 = vld [vmem:[#allocation5 + $0x128] sm:$0xff]
        %v1526 = vld [vmem:[#allocation5 + $0x130] sm:$0xf]
        %v1527 = vld [vmem:[#allocation5 + $0x134] sm:$0xff]
        %v1528 = vld [vmem:[#allocation5 + $0x13c] sm:$0xff]
        %v1529 = vld [vmem:[#allocation5 + $0x144] sm:$0xff]
        %v1530 = vld [vmem:[#allocation5 + $0x14c] sm:$0xf]
        %v1531 = vld [vmem:[#allocation5 + $0x150] sm:$0xff]
        %v1532 = vld [vmem:[#allocation5 + $0x158] sm:$0xff]
        %v1533 = vld [vmem:[#allocation5 + $0x160] sm:$0xff]
        %v1534 = vld [vmem:[#allocation5 + $0x168] sm:$0xf]
        %v1535 = vld [vmem:[#allocation5 + $0x16c] sm:$0xff]
        %v1536 = vld [vmem:[#allocation5 + $0x174] sm:$0xff]
        %v1537 = vld [vmem:[#allocation5 + $0x17c] sm:$0xff]
        %v1538 = vld [vmem:[#allocation5 + $0x184] sm:$0xf]
        %v1539 = vld [vmem:[#allocation5 + $0x188] sm:$0xff]
        %v1540 = vld [vmem:[#allocation5 + $0x190] sm:$0xff]
        %v1541 = vld [vmem:[#allocation5 + $0x198] sm:$0xff]
        %v1542 = vld [vmem:[#allocation5 + $0x1a0] sm:$0xf]
        %v1543 = vld [vmem:[#allocation5 + $0x1a4] sm:$0xff]
        %v1544 = vld [vmem:[#allocation5 + $0x1ac] sm:$0xff]
        %v1545 = vld [vmem:[#allocation5 + $0x1b4] sm:$0xff]
        %v1546 = vld [vmem:[#allocation5 + $0x1bc] sm:$0xf]
        %v1547 = vld [vmem:[#allocation5 + $0x1c0] sm:$0xff]
        %v1548 = vld [vmem:[#allocation5 + $0x1c8] sm:$0xff]
        %v1549 = vld [vmem:[#allocation5 + $0x1d0] sm:$0xff]
        %v1550 = vld [vmem:[#allocation5 + $0x1d8] sm:$0xf]
        %v1551 = vld [vmem:[#allocation5 + $0x1dc] sm:$0xff]
        %v1552 = vld [vmem:[#allocation5 + $0x1e4] sm:$0xff]
        %v1553 = vld [vmem:[#allocation5 + $0x1ec] sm:$0xff]
        %v1554 = vld [vmem:[#allocation5 + $0x1f4] sm:$0xf]
        %v1555 = vld [vmem:[#allocation5 + $0x1f8] sm:$0xff]
        %v1556 = vld [vmem:[#allocation5 + $0x200] sm:$0xff]
        %v1557 = vld [vmem:[#allocation5 + $0x208] sm:$0xff]
        %v1558 = vld [vmem:[#allocation5 + $0x210] sm:$0xf]
        %v1559 = vld [vmem:[#allocation5 + $0x214] sm:$0xff]
        %v1560 = vld [vmem:[#allocation5 + $0x21c] sm:$0xff]
        %v1561 = vld [vmem:[#allocation5 + $0x224] sm:$0xff]
        %v1562 = vld [vmem:[#allocation5 + $0x22c] sm:$0xf]
        %v1563 = vld [vmem:[#allocation5 + $0x230] sm:$0xff]
        %v1564 = vld [vmem:[#allocation5 + $0x238] sm:$0xff]
        %v1565 = vld [vmem:[#allocation5 + $0x240] sm:$0xff]
        %v1566 = vld [vmem:[#allocation5 + $0x248] sm:$0xf]
        %v1567 = vld [vmem:[#allocation5 + $0x24c] sm:$0xff]
        %v1568 = vld [vmem:[#allocation5 + $0x254] sm:$0xff]
        %v1569 = vld [vmem:[#allocation5 + $0x25c] sm:$0xff]
        %v1570 = vld [vmem:[#allocation5 + $0x264] sm:$0xf]
        %v1571 = vld [vmem:[#allocation5 + $0x268] sm:$0xff]
        %v1572 = vld [vmem:[#allocation5 + $0x270] sm:$0xff]
        %v1573 = vld [vmem:[#allocation5 + $0x278] sm:$0xff]
        %v1574 = vld [vmem:[#allocation5 + $0x280] sm:$0xf]
        %v1575 = vld [vmem:[#allocation5 + $0x284] sm:$0xff]
        %v1576 = vld [vmem:[#allocation5 + $0x28c] sm:$0xff]
        %v1577 = vld [vmem:[#allocation5 + $0x294] sm:$0xff]
        %v1578 = vld [vmem:[#allocation5 + $0x29c] sm:$0xf]
        %v1579 = vld [vmem:[#allocation5 + $0x2a0] sm:$0xff]
        %v1580 = vld [vmem:[#allocation5 + $0x2a8] sm:$0xff]
        %v1581 = vld [vmem:[#allocation5 + $0x2b0] sm:$0xff]
        %v1582 = vld [vmem:[#allocation5 + $0x2b8] sm:$0xf]
        %v1583 = vld [vmem:[#allocation5 + $0x2bc] sm:$0xff]
        %v1584 = vld [vmem:[#allocation5 + $0x2c4] sm:$0xff]
        %v1585 = vld [vmem:[#allocation5 + $0x2cc] sm:$0xff]
        %v1586 = vld [vmem:[#allocation5 + $0x2d4] sm:$0xf]
        %v1587 = vld [vmem:[#allocation5 + $0x2d8] sm:$0xff]
        %v1588 = vld [vmem:[#allocation5 + $0x2e0] sm:$0xff]
        %v1589 = vld [vmem:[#allocation5 + $0x2e8] sm:$0xff]
        %v1590 = vld [vmem:[#allocation5 + $0x2f0] sm:$0xf]
        %v1591 = vld [vmem:[#allocation5 + $0x2f4] sm:$0xff]
        %v1592 = vld [vmem:[#allocation5 + $0x2fc] sm:$0xff]
        %v1593 = vld [vmem:[#allocation5 + $0x304] sm:$0xff]
        %v1594 = vld [vmem:[#allocation5 + $0x30c] sm:$0xf]
        %v1595 = vld [vmem:[#allocation5 + $0x310] sm:$0xff]
        %v1596 = vld [vmem:[#allocation5 + $0x318] sm:$0xff]
        %v1597 = vld [vmem:[#allocation5 + $0x320] sm:$0xff]
        %v1598 = vld [vmem:[#allocation5 + $0x328] sm:$0xf]
        %v1599 = vld [vmem:[#allocation5 + $0x32c] sm:$0xff]
        %v1600 = vld [vmem:[#allocation5 + $0x334] sm:$0xff]
        %v1601 = vld [vmem:[#allocation5 + $0x33c] sm:$0xff]
        %v1602 = vld [vmem:[#allocation5 + $0x344] sm:$0xf]
        %v1603 = vld [vmem:[#allocation5 + $0x348] sm:$0xff]
        %v1604 = vld [vmem:[#allocation5 + $0x350] sm:$0xff]
        %v1605 = vld [vmem:[#allocation5 + $0x358] sm:$0xff]
        %v1606 = vld [vmem:[#allocation5 + $0x360] sm:$0xf]
        %v1607 = vld [vmem:[#allocation5 + $0x364] sm:$0xff]
        %v1608 = vld [vmem:[#allocation5 + $0x36c] sm:$0xff]
        %v1609 = vld [vmem:[#allocation5 + $0x374] sm:$0xff]
        %v1610 = vld [vmem:[#allocation5 + $0x37c] sm:$0xf]
        %v1611 = vld [vmem:[#allocation5 + $0x380] sm:$0xff]
        %v1612 = vld [vmem:[#allocation5 + $0x388] sm:$0xff]
        %v1613 = vld [vmem:[#allocation5 + $0x390] sm:$0xff]
        %v1614 = vld [vmem:[#allocation5 + $0x398] sm:$0xf]
        %v1615 = vld [vmem:[#allocation5 + $0x39c] sm:$0xff]
        %v1616 = vld [vmem:[#allocation5 + $0x3a4] sm:$0xff]
        %v1617 = vld [vmem:[#allocation5 + $0x3ac] sm:$0xff]
        %v1618 = vld [vmem:[#allocation5 + $0x3b4] sm:$0xf]
        %v1619 = vld [vmem:[#allocation5 + $0x3b8] sm:$0xff]
        %v1620 = vld [vmem:[#allocation5 + $0x3c0] sm:$0xff]
        %v1621 = vld [vmem:[#allocation5 + $0x3c8] sm:$0xff]
        %v1622 = vld [vmem:[#allocation5 + $0x3d0] sm:$0xf]
        %v1623 = vld [vmem:[#allocation5 + $0x3d4] sm:$0xff]
        %v1624 = vld [vmem:[#allocation5 + $0x3dc] sm:$0xff]
        %v1625 = vld [vmem:[#allocation5 + $0x3e4] sm:$0xff]
        %v1626 = vld [vmem:[#allocation5 + $0x3ec] sm:$0xf]
        %v1627 = vld [vmem:[#allocation5 + $0x3f0] sm:$0xff]
        %v1628 = vld [vmem:[#allocation5 + $0x3f8] sm:$0xff]
        %v1629 = vld [vmem:[#allocation5 + $0x400] sm:$0xff]
        %v1630 = vld [vmem:[#allocation5 + $0x408] sm:$0xf]
        %v1631 = vld [vmem:[#allocation5 + $0x40c] sm:$0xff]
        %v1632 = vld [vmem:[#allocation5 + $0x414] sm:$0xff]
        %v1633 = vld [vmem:[#allocation5 + $0x41c] sm:$0xff]
        %v1634 = vld [vmem:[#allocation5 + $0x424] sm:$0xf]
        %v1635 = vld [vmem:[#allocation5 + $0x428] sm:$0xff]
        %v1636 = vld [vmem:[#allocation5 + $0x430] sm:$0xff]
        %v1637 = vld [vmem:[#allocation5 + $0x438] sm:$0xff]
        %v1638 = vld [vmem:[#allocation5 + $0x440] sm:$0xf]
        %v1639 = vld [vmem:[#allocation5 + $0x444] sm:$0xff]
        %v1640 = vld [vmem:[#allocation5 + $0x44c] sm:$0xff]
        %v1641 = vld [vmem:[#allocation5 + $0x454] sm:$0xff]
        %v1642 = vld [vmem:[#allocation5 + $0x45c] sm:$0xf]
        %v1643 = vld [vmem:[#allocation5 + $0x460] sm:$0xff]
        %v1644 = vld [vmem:[#allocation5 + $0x468] sm:$0xff]
        %v1645 = vld [vmem:[#allocation5 + $0x470] sm:$0xff]
        %v1646 = vld [vmem:[#allocation5 + $0x478] sm:$0xf]
        %v1647 = vld [vmem:[#allocation5 + $0x47c] sm:$0xff]
        %v1648 = vld [vmem:[#allocation5 + $0x484] sm:$0xff]
        %v1649 = vld [vmem:[#allocation5 + $0x48c] sm:$0xff]
        %v1650 = vld [vmem:[#allocation5 + $0x494] sm:$0xf]
        %v1651 = vld [vmem:[#allocation5 + $0x498] sm:$0xff]
        %v1652 = vld [vmem:[#allocation5 + $0x4a0] sm:$0xff]
        %v1653 = vld [vmem:[#allocation5 + $0x4a8] sm:$0xff]
        %v1654 = vld [vmem:[#allocation5 + $0x4b0] sm:$0xf]
        %v1655 = vld [vmem:[#allocation5 + $0x4b4] sm:$0xff]
        %v1656 = vld [vmem:[#allocation5 + $0x4bc] sm:$0xff]
        %v1657 = vld [vmem:[#allocation5 + $0x4c4] sm:$0xff]
        %v1658 = vld [vmem:[#allocation5 + $0x4cc] sm:$0xf]
        %v1659 = vld [vmem:[#allocation5 + $0x4d0] sm:$0xff]
        %v1660 = vld [vmem:[#allocation5 + $0x4d8] sm:$0xff]
        %v1661 = vld [vmem:[#allocation5 + $0x4e0] sm:$0xff]
        %v1662 = vld [vmem:[#allocation5 + $0x4e8] sm:$0xf]
        %v1663 = vld [vmem:[#allocation5 + $0x4ec] sm:$0xff]
        %v1664 = vld [vmem:[#allocation5 + $0x4f4] sm:$0xff]
        %v1665 = vld [vmem:[#allocation5 + $0x4fc] sm:$0xff]
        %v1666 = vld [vmem:[#allocation5 + $0x504] sm:$0xf]
        %v1667 = vld [vmem:[#allocation5 + $0x508] sm:$0xff]
        %v1668 = vld [vmem:[#allocation5 + $0x510] sm:$0xff]
        %v1669 = vld [vmem:[#allocation5 + $0x518] sm:$0xff]
        %v1670 = vld [vmem:[#allocation5 + $0x520] sm:$0xf]
        %v1671 = vld [vmem:[#allocation5 + $0x524] sm:$0xff]
        %v1672 = vld [vmem:[#allocation5 + $0x52c] sm:$0xff]
        %v1673 = vld [vmem:[#allocation5 + $0x534] sm:$0xff]
        %v1674 = vld [vmem:[#allocation5 + $0x53c] sm:$0xf]
        %v1675 = vld [vmem:[#allocation5 + $0x540] sm:$0xff]
        %v1676 = vld [vmem:[#allocation5 + $0x548] sm:$0xff]
        %v1677 = vld [vmem:[#allocation5 + $0x550] sm:$0xff]
        %v1678 = vld [vmem:[#allocation5 + $0x558] sm:$0xf]
        %v1679 = vld [vmem:[#allocation5 + $0x55c] sm:$0xff]
        %v1680 = vld [vmem:[#allocation5 + $0x564] sm:$0xff]
        %v1681 = vld [vmem:[#allocation5 + $0x56c] sm:$0xff]
        %v1682 = vld [vmem:[#allocation5 + $0x574] sm:$0xf]
        %v1683 = vld [vmem:[#allocation5 + $0x578] sm:$0xff]
        %v1684 = vld [vmem:[#allocation5 + $0x580] sm:$0xff]
        %v1685 = vld [vmem:[#allocation5 + $0x588] sm:$0xff]
        %v1686 = vld [vmem:[#allocation5 + $0x590] sm:$0xf]
        %v1687 = vld [vmem:[#allocation5 + $0x594] sm:$0xff]
        %v1688 = vld [vmem:[#allocation5 + $0x59c] sm:$0xff]
        %v1689 = vld [vmem:[#allocation5 + $0x5a4] sm:$0xff]
        %v1690 = vld [vmem:[#allocation5 + $0x5ac] sm:$0xf]
        %v1691 = vld [vmem:[#allocation5 + $0x5b0] sm:$0xff]
        %v1692 = vld [vmem:[#allocation5 + $0x5b8] sm:$0xff]
        %v1693 = vld [vmem:[#allocation5 + $0x5c0] sm:$0xff]
        %v1694 = vld [vmem:[#allocation5 + $0x5c8] sm:$0xf]
        %v1695 = vld [vmem:[#allocation5 + $0x5cc] sm:$0xff]
        %v1696 = vld [vmem:[#allocation5 + $0x5d4] sm:$0xff]
        %v1697 = vld [vmem:[#allocation5 + $0x5dc] sm:$0xff]
        %v1698 = vld [vmem:[#allocation5 + $0x5e4] sm:$0xf]
        %v1699 = vld [vmem:[#allocation5 + $0x5e8] sm:$0xff]
        %v1700 = vld [vmem:[#allocation5 + $0x5f0] sm:$0xff]
        %v1701 = vld [vmem:[#allocation5 + $0x5f8] sm:$0xff]
        %v1702 = vld [vmem:[#allocation5 + $0x600] sm:$0xf]
        %v1703 = vld [vmem:[#allocation5 + $0x604] sm:$0xff]
        %v1704 = vld [vmem:[#allocation5 + $0x60c] sm:$0xff]
        %v1705 = vld [vmem:[#allocation5 + $0x614] sm:$0xff]
        %v1706 = vld [vmem:[#allocation5 + $0x61c] sm:$0xf]
        %v1707 = vld [vmem:[#allocation5 + $0x620] sm:$0xff]
        %v1708 = vld [vmem:[#allocation5 + $0x628] sm:$0xff]
        %v1709 = vld [vmem:[#allocation5 + $0x630] sm:$0xff]
        %v1710 = vld [vmem:[#allocation5 + $0x638] sm:$0xf]
        %v1711 = vld [vmem:[#allocation5 + $0x63c] sm:$0xff]
        %v1712 = vld [vmem:[#allocation5 + $0x644] sm:$0xff]
        %v1713 = vld [vmem:[#allocation5 + $0x64c] sm:$0xff]
        %v1714 = vld [vmem:[#allocation5 + $0x654] sm:$0xf]
        %v1715 = vld [vmem:[#allocation5 + $0x658] sm:$0xff]
        %v1716 = vld [vmem:[#allocation5 + $0x660] sm:$0xff]
        %v1717 = vld [vmem:[#allocation5 + $0x668] sm:$0xff]
        %v1718 = vld [vmem:[#allocation5 + $0x670] sm:$0xf]
        %v1719 = vld [vmem:[#allocation5 + $0x674] sm:$0xff]
        %v1720 = vld [vmem:[#allocation5 + $0x67c] sm:$0xff]
        %v1721 = vld [vmem:[#allocation5 + $0x684] sm:$0xff]
        %v1722 = vld [vmem:[#allocation5 + $0x68c] sm:$0xf]
        %v1723 = vld [vmem:[#allocation5 + $0x690] sm:$0xff]
        %v1724 = vld [vmem:[#allocation5 + $0x698] sm:$0xff]
        %v1725 = vld [vmem:[#allocation5 + $0x6a0] sm:$0xff]
        %v1726 = vld [vmem:[#allocation5 + $0x6a8] sm:$0xf]
        %v1727 = vld [vmem:[#allocation5 + $0x6ac] sm:$0xff]
        %v1728 = vld [vmem:[#allocation5 + $0x6b4] sm:$0xff]
        %v1729 = vld [vmem:[#allocation5 + $0x6bc] sm:$0xff]
        %v1730 = vld [vmem:[#allocation5 + $0x6c4] sm:$0xf]
        %v1731 = vld [vmem:[#allocation5 + $0x6c8] sm:$0xff]
        %v1732 = vld [vmem:[#allocation5 + $0x6d0] sm:$0xff]
        %v1733 = vld [vmem:[#allocation5 + $0x6d8] sm:$0xff]
        %v1734 = vld [vmem:[#allocation5 + $0x6e0] sm:$0xf]
        %v1735 = vld [vmem:[#allocation5 + $0x6e4] sm:$0xff]
        %v1736 = vld [vmem:[#allocation5 + $0x6ec] sm:$0xff]
        %v1737 = vld [vmem:[#allocation5 + $0x6f4] sm:$0xff]
        %v1738 = vld [vmem:[#allocation5 + $0x6fc] sm:$0xf]
        %v1739 = vld [vmem:[%s6] sm:$0xff]
        %v1741 = vperm.slane %v1739, 0
        %v1742 = vperm.slane %v1739, 1
        %v1743 = vperm.slane %v1739, 2
        %v1744 = vperm.slane %v1739, 3
        %v1745 = vperm.slane %v1739, 4
        %v1746 = vperm.slane %v1739, 5
        %v1747 = vperm.slane %v1739, 6
        %v2011 = vunpack.c.l.b16 %v1483
        %v2012 = vunpack.c.h.b16 %v1483
        %v2013 = vunpack.c.l.b16 %v1484
        %v2014 = vunpack.c.h.b16 %v1484
        %v2015 = vunpack.c.l.b16 %v1485
        %v2016 = vunpack.c.h.b16 %v1485
        %v2017 = vunpack.c.l.b16 %v1486
        %v2018 = vunpack.c.l.b16 %v1487
        %v2019 = vunpack.c.h.b16 %v1487
        %v2020 = vunpack.c.l.b16 %v1488
        %v2021 = vunpack.c.h.b16 %v1488
        %v2022 = vunpack.c.l.b16 %v1489
        %v2023 = vunpack.c.h.b16 %v1489
        %v2024 = vunpack.c.l.b16 %v1490
        %v2025 = vunpack.c.l.b16 %v1491
        %v2026 = vunpack.c.h.b16 %v1491
        %v2027 = vunpack.c.l.b16 %v1492
        %v2028 = vunpack.c.h.b16 %v1492
        %v2029 = vunpack.c.l.b16 %v1493
        %v2030 = vunpack.c.h.b16 %v1493
        %v2031 = vunpack.c.l.b16 %v1494
        %v2032 = vunpack.c.l.b16 %v1495
        %v2033 = vunpack.c.h.b16 %v1495
        %v2034 = vunpack.c.l.b16 %v1496
        %v2035 = vunpack.c.h.b16 %v1496
        %v2036 = vunpack.c.l.b16 %v1497
        %v2037 = vunpack.c.h.b16 %v1497
        %v2038 = vunpack.c.l.b16 %v1498
        %v2039 = vunpack.c.l.b16 %v1499
        %v2040 = vunpack.c.h.b16 %v1499
        %v2041 = vunpack.c.l.b16 %v1500
        %v2042 = vunpack.c.h.b16 %v1500
        %v2043 = vunpack.c.l.b16 %v1501
        %v2044 = vunpack.c.h.b16 %v1501
        %v2045 = vunpack.c.l.b16 %v1502
        %v2046 = vunpack.c.l.b16 %v1503
        %v2047 = vunpack.c.h.b16 %v1503
        %v2048 = vunpack.c.l.b16 %v1504
        %v2049 = vunpack.c.h.b16 %v1504
        %v2050 = vunpack.c.l.b16 %v1505
        %v2051 = vunpack.c.h.b16 %v1505
        %v2052 = vunpack.c.l.b16 %v1506
        %v2053 = vunpack.c.l.b16 %v1507
        %v2054 = vunpack.c.h.b16 %v1507
        %v2055 = vunpack.c.l.b16 %v1508
        %v2056 = vunpack.c.h.b16 %v1508
        %v2057 = vunpack.c.l.b16 %v1509
        %v2058 = vunpack.c.h.b16 %v1509
        %v2059 = vunpack.c.l.b16 %v1510
        %v2060 = vunpack.c.l.b16 %v1511
        %v2061 = vunpack.c.h.b16 %v1511
        %v2062 = vunpack.c.l.b16 %v1512
        %v2063 = vunpack.c.h.b16 %v1512
        %v2064 = vunpack.c.l.b16 %v1513
        %v2065 = vunpack.c.h.b16 %v1513
        %v2066 = vunpack.c.l.b16 %v1514
        %v2067 = vunpack.c.l.b16 %v1515
        %v2068 = vunpack.c.h.b16 %v1515
        %v2069 = vunpack.c.l.b16 %v1516
        %v2070 = vunpack.c.h.b16 %v1516
        %v2071 = vunpack.c.l.b16 %v1517
        %v2072 = vunpack.c.h.b16 %v1517
        %v2073 = vunpack.c.l.b16 %v1518
        %v2074 = vunpack.c.l.b16 %v1519
        %v2075 = vunpack.c.h.b16 %v1519
        %v2076 = vunpack.c.l.b16 %v1520
        %v2077 = vunpack.c.h.b16 %v1520
        %v2078 = vunpack.c.l.b16 %v1521
        %v2079 = vunpack.c.h.b16 %v1521
        %v2080 = vunpack.c.l.b16 %v1522
        %v2081 = vunpack.c.l.b16 %v1523
        %v2082 = vunpack.c.h.b16 %v1523
        %v2083 = vunpack.c.l.b16 %v1524
        %v2084 = vunpack.c.h.b16 %v1524
        %v2085 = vunpack.c.l.b16 %v1525
        %v2086 = vunpack.c.h.b16 %v1525
        %v2087 = vunpack.c.l.b16 %v1526
        %v2088 = vunpack.c.l.b16 %v1527
        %v2089 = vunpack.c.h.b16 %v1527
        %v2090 = vunpack.c.l.b16 %v1528
        %v2091 = vunpack.c.h.b16 %v1528
        %v2092 = vunpack.c.l.b16 %v1529
        %v2093 = vunpack.c.h.b16 %v1529
        %v2094 = vunpack.c.l.b16 %v1530
        %v2095 = vunpack.c.l.b16 %v1531
        %v2096 = vunpack.c.h.b16 %v1531
        %v2097 = vunpack.c.l.b16 %v1532
        %v2098 = vunpack.c.h.b16 %v1532
        %v2099 = vunpack.c.l.b16 %v1533
        %v2100 = vunpack.c.h.b16 %v1533
        %v2101 = vunpack.c.l.b16 %v1534
        %v2102 = vunpack.c.l.b16 %v1535
        %v2103 = vunpack.c.h.b16 %v1535
        %v2104 = vunpack.c.l.b16 %v1536
        %v2105 = vunpack.c.h.b16 %v1536
        %v2106 = vunpack.c.l.b16 %v1537
        %v2107 = vunpack.c.h.b16 %v1537
        %v2108 = vunpack.c.l.b16 %v1538
        %v2109 = vunpack.c.l.b16 %v1539
        %v2110 = vunpack.c.h.b16 %v1539
        %v2111 = vunpack.c.l.b16 %v1540
        %v2112 = vunpack.c.h.b16 %v1540
        %v2113 = vunpack.c.l.b16 %v1541
        %v2114 = vunpack.c.h.b16 %v1541
        %v2115 = vunpack.c.l.b16 %v1542
        %v2116 = vunpack.c.l.b16 %v1543
        %v2117 = vunpack.c.h.b16 %v1543
        %v2118 = vunpack.c.l.b16 %v1544
        %v2119 = vunpack.c.h.b16 %v1544
        %v2120 = vunpack.c.l.b16 %v1545
        %v2121 = vunpack.c.h.b16 %v1545
        %v2122 = vunpack.c.l.b16 %v1546
        %v2123 = vunpack.c.l.b16 %v1547
        %v2124 = vunpack.c.h.b16 %v1547
        %v2125 = vunpack.c.l.b16 %v1548
        %v2126 = vunpack.c.h.b16 %v1548
        %v2127 = vunpack.c.l.b16 %v1549
        %v2128 = vunpack.c.h.b16 %v1549
        %v2129 = vunpack.c.l.b16 %v1550
        %v2130 = vunpack.c.l.b16 %v1551
        %v2131 = vunpack.c.h.b16 %v1551
        %v2132 = vunpack.c.l.b16 %v1552
        %v2133 = vunpack.c.h.b16 %v1552
        %v2134 = vunpack.c.l.b16 %v1553
        %v2135 = vunpack.c.h.b16 %v1553
        %v2136 = vunpack.c.l.b16 %v1554
        %v2137 = vunpack.c.l.b16 %v1555
        %v2138 = vunpack.c.h.b16 %v1555
        %v2139 = vunpack.c.l.b16 %v1556
        %v2140 = vunpack.c.h.b16 %v1556
        %v2141 = vunpack.c.l.b16 %v1557
        %v2142 = vunpack.c.h.b16 %v1557
        %v2143 = vunpack.c.l.b16 %v1558
        %v2144 = vunpack.c.l.b16 %v1559
        %v2145 = vunpack.c.h.b16 %v1559
        %v2146 = vunpack.c.l.b16 %v1560
        %v2147 = vunpack.c.h.b16 %v1560
        %v2148 = vunpack.c.l.b16 %v1561
        %v2149 = vunpack.c.h.b16 %v1561
        %v2150 = vunpack.c.l.b16 %v1562
        %v2151 = vunpack.c.l.b16 %v1563
        %v2152 = vunpack.c.h.b16 %v1563
        %v2153 = vunpack.c.l.b16 %v1564
        %v2154 = vunpack.c.h.b16 %v1564
        %v2155 = vunpack.c.l.b16 %v1565
        %v2156 = vunpack.c.h.b16 %v1565
        %v2157 = vunpack.c.l.b16 %v1566
        %v2158 = vunpack.c.l.b16 %v1567
        %v2159 = vunpack.c.h.b16 %v1567
        %v2160 = vunpack.c.l.b16 %v1568
        %v2161 = vunpack.c.h.b16 %v1568
        %v2162 = vunpack.c.l.b16 %v1569
        %v2163 = vunpack.c.h.b16 %v1569
        %v2164 = vunpack.c.l.b16 %v1570
        %v2165 = vunpack.c.l.b16 %v1571
        %v2166 = vunpack.c.h.b16 %v1571
        %v2167 = vunpack.c.l.b16 %v1572
        %v2168 = vunpack.c.h.b16 %v1572
        %v2169 = vunpack.c.l.b16 %v1573
        %v2170 = vunpack.c.h.b16 %v1573
        %v2171 = vunpack.c.l.b16 %v1574
        %v2172 = vunpack.c.l.b16 %v1575
        %v2173 = vunpack.c.h.b16 %v1575
        %v2174 = vunpack.c.l.b16 %v1576
        %v2175 = vunpack.c.h.b16 %v1576
        %v2176 = vunpack.c.l.b16 %v1577
        %v2177 = vunpack.c.h.b16 %v1577
        %v2178 = vunpack.c.l.b16 %v1578
        %v2179 = vunpack.c.l.b16 %v1579
        %v2180 = vunpack.c.h.b16 %v1579
        %v2181 = vunpack.c.l.b16 %v1580
        %v2182 = vunpack.c.h.b16 %v1580
        %v2183 = vunpack.c.l.b16 %v1581
        %v2184 = vunpack.c.h.b16 %v1581
        %v2185 = vunpack.c.l.b16 %v1582
        %v2186 = vunpack.c.l.b16 %v1583
        %v2187 = vunpack.c.h.b16 %v1583
        %v2188 = vunpack.c.l.b16 %v1584
        %v2189 = vunpack.c.h.b16 %v1584
        %v2190 = vunpack.c.l.b16 %v1585
        %v2191 = vunpack.c.h.b16 %v1585
        %v2192 = vunpack.c.l.b16 %v1586
        %v2193 = vunpack.c.l.b16 %v1587
        %v2194 = vunpack.c.h.b16 %v1587
        %v2195 = vunpack.c.l.b16 %v1588
        %v2196 = vunpack.c.h.b16 %v1588
        %v2197 = vunpack.c.l.b16 %v1589
        %v2198 = vunpack.c.h.b16 %v1589
        %v2199 = vunpack.c.l.b16 %v1590
        %v2200 = vunpack.c.l.b16 %v1591
        %v2201 = vunpack.c.h.b16 %v1591
        %v2202 = vunpack.c.l.b16 %v1592
        %v2203 = vunpack.c.h.b16 %v1592
        %v2204 = vunpack.c.l.b16 %v1593
        %v2205 = vunpack.c.h.b16 %v1593
        %v2206 = vunpack.c.l.b16 %v1594
        %v2207 = vunpack.c.l.b16 %v1595
        %v2208 = vunpack.c.h.b16 %v1595
        %v2209 = vunpack.c.l.b16 %v1596
        %v2210 = vunpack.c.h.b16 %v1596
        %v2211 = vunpack.c.l.b16 %v1597
        %v2212 = vunpack.c.h.b16 %v1597
        %v2213 = vunpack.c.l.b16 %v1598
        %v2214 = vunpack.c.l.b16 %v1599
        %v2215 = vunpack.c.h.b16 %v1599
        %v2216 = vunpack.c.l.b16 %v1600
        %v2217 = vunpack.c.h.b16 %v1600
        %v2218 = vunpack.c.l.b16 %v1601
        %v2219 = vunpack.c.h.b16 %v1601
        %v2220 = vunpack.c.l.b16 %v1602
        %v2221 = vunpack.c.l.b16 %v1603
        %v2222 = vunpack.c.h.b16 %v1603
        %v2223 = vunpack.c.l.b16 %v1604
        %v2224 = vunpack.c.h.b16 %v1604
        %v2225 = vunpack.c.l.b16 %v1605
        %v2226 = vunpack.c.h.b16 %v1605
        %v2227 = vunpack.c.l.b16 %v1606
        %v2228 = vunpack.c.l.b16 %v1607
        %v2229 = vunpack.c.h.b16 %v1607
        %v2230 = vunpack.c.l.b16 %v1608
        %v2231 = vunpack.c.h.b16 %v1608
        %v2232 = vunpack.c.l.b16 %v1609
        %v2233 = vunpack.c.h.b16 %v1609
        %v2234 = vunpack.c.l.b16 %v1610
        %v2235 = vunpack.c.l.b16 %v1611
        %v2236 = vunpack.c.h.b16 %v1611
        %v2237 = vunpack.c.l.b16 %v1612
        %v2238 = vunpack.c.h.b16 %v1612
        %v2239 = vunpack.c.l.b16 %v1613
        %v2240 = vunpack.c.h.b16 %v1613
        %v2241 = vunpack.c.l.b16 %v1614
        %v2242 = vunpack.c.l.b16 %v1615
        %v2243 = vunpack.c.h.b16 %v1615
        %v2244 = vunpack.c.l.b16 %v1616
        %v2245 = vunpack.c.h.b16 %v1616
        %v2246 = vunpack.c.l.b16 %v1617
        %v2247 = vunpack.c.h.b16 %v1617
        %v2248 = vunpack.c.l.b16 %v1618
        %v2249 = vunpack.c.l.b16 %v1619
        %v2250 = vunpack.c.h.b16 %v1619
        %v2251 = vunpack.c.l.b16 %v1620
        %v2252 = vunpack.c.h.b16 %v1620
        %v2253 = vunpack.c.l.b16 %v1621
        %v2254 = vunpack.c.h.b16 %v1621
        %v2255 = vunpack.c.l.b16 %v1622
        %v2256 = vunpack.c.l.b16 %v1623
        %v2257 = vunpack.c.h.b16 %v1623
        %v2258 = vunpack.c.l.b16 %v1624
        %v2259 = vunpack.c.h.b16 %v1624
        %v2260 = vunpack.c.l.b16 %v1625
        %v2261 = vunpack.c.h.b16 %v1625
        %v2262 = vunpack.c.l.b16 %v1626
        %v2263 = vunpack.c.l.b16 %v1627
        %v2264 = vunpack.c.h.b16 %v1627
        %v2265 = vunpack.c.l.b16 %v1628
        %v2266 = vunpack.c.h.b16 %v1628
        %v2267 = vunpack.c.l.b16 %v1629
        %v2268 = vunpack.c.h.b16 %v1629
        %v2269 = vunpack.c.l.b16 %v1630
        %v2270 = vunpack.c.l.b16 %v1631
        %v2271 = vunpack.c.h.b16 %v1631
        %v2272 = vunpack.c.l.b16 %v1632
        %v2273 = vunpack.c.h.b16 %v1632
        %v2274 = vunpack.c.l.b16 %v1633
        %v2275 = vunpack.c.h.b16 %v1633
        %v2276 = vunpack.c.l.b16 %v1634
        %v2277 = vunpack.c.l.b16 %v1635
        %v2278 = vunpack.c.h.b16 %v1635
        %v2279 = vunpack.c.l.b16 %v1636
        %v2280 = vunpack.c.h.b16 %v1636
        %v2281 = vunpack.c.l.b16 %v1637
        %v2282 = vunpack.c.h.b16 %v1637
        %v2283 = vunpack.c.l.b16 %v1638
        %v2284 = vunpack.c.l.b16 %v1639
        %v2285 = vunpack.c.h.b16 %v1639
        %v2286 = vunpack.c.l.b16 %v1640
        %v2287 = vunpack.c.h.b16 %v1640
        %v2288 = vunpack.c.l.b16 %v1641
        %v2289 = vunpack.c.h.b16 %v1641
        %v2290 = vunpack.c.l.b16 %v1642
        %v2291 = vunpack.c.l.b16 %v1643
        %v2292 = vunpack.c.h.b16 %v1643
        %v2293 = vunpack.c.l.b16 %v1644
        %v2294 = vunpack.c.h.b16 %v1644
        %v2295 = vunpack.c.l.b16 %v1645
        %v2296 = vunpack.c.h.b16 %v1645
        %v2297 = vunpack.c.l.b16 %v1646
        %v2298 = vunpack.c.l.b16 %v1647
        %v2299 = vunpack.c.h.b16 %v1647
        %v2300 = vunpack.c.l.b16 %v1648
        %v2301 = vunpack.c.h.b16 %v1648
        %v2302 = vunpack.c.l.b16 %v1649
        %v2303 = vunpack.c.h.b16 %v1649
        %v2304 = vunpack.c.l.b16 %v1650
        %v2305 = vunpack.c.l.b16 %v1651
        %v2306 = vunpack.c.h.b16 %v1651
        %v2307 = vunpack.c.l.b16 %v1652
        %v2308 = vunpack.c.h.b16 %v1652
        %v2309 = vunpack.c.l.b16 %v1653
        %v2310 = vunpack.c.h.b16 %v1653
        %v2311 = vunpack.c.l.b16 %v1654
        %v2312 = vunpack.c.l.b16 %v1655
        %v2313 = vunpack.c.h.b16 %v1655
        %v2314 = vunpack.c.l.b16 %v1656
        %v2315 = vunpack.c.h.b16 %v1656
        %v2316 = vunpack.c.l.b16 %v1657
        %v2317 = vunpack.c.h.b16 %v1657
        %v2318 = vunpack.c.l.b16 %v1658
        %v2319 = vunpack.c.l.b16 %v1659
        %v2320 = vunpack.c.h.b16 %v1659
        %v2321 = vunpack.c.l.b16 %v1660
        %v2322 = vunpack.c.h.b16 %v1660
        %v2323 = vunpack.c.l.b16 %v1661
        %v2324 = vunpack.c.h.b16 %v1661
        %v2325 = vunpack.c.l.b16 %v1662
        %v2326 = vunpack.c.l.b16 %v1663
        %v2327 = vunpack.c.h.b16 %v1663
        %v2328 = vunpack.c.l.b16 %v1664
        %v2329 = vunpack.c.h.b16 %v1664
        %v2330 = vunpack.c.l.b16 %v1665
        %v2331 = vunpack.c.h.b16 %v1665
        %v2332 = vunpack.c.l.b16 %v1666
        %v2333 = vunpack.c.l.b16 %v1667
        %v2334 = vunpack.c.h.b16 %v1667
        %v2335 = vunpack.c.l.b16 %v1668
        %v2336 = vunpack.c.h.b16 %v1668
        %v2337 = vunpack.c.l.b16 %v1669
        %v2338 = vunpack.c.h.b16 %v1669
        %v2339 = vunpack.c.l.b16 %v1670
        %v2340 = vunpack.c.l.b16 %v1671
        %v2341 = vunpack.c.h.b16 %v1671
        %v2342 = vunpack.c.l.b16 %v1672
        %v2343 = vunpack.c.h.b16 %v1672
        %v2344 = vunpack.c.l.b16 %v1673
        %v2345 = vunpack.c.h.b16 %v1673
        %v2346 = vunpack.c.l.b16 %v1674
        %v2347 = vunpack.c.l.b16 %v1675
        %v2348 = vunpack.c.h.b16 %v1675
        %v2349 = vunpack.c.l.b16 %v1676
        %v2350 = vunpack.c.h.b16 %v1676
        %v2351 = vunpack.c.l.b16 %v1677
        %v2352 = vunpack.c.h.b16 %v1677
        %v2353 = vunpack.c.l.b16 %v1678
        %v2354 = vunpack.c.l.b16 %v1679
        %v2355 = vunpack.c.h.b16 %v1679
        %v2356 = vunpack.c.l.b16 %v1680
        %v2357 = vunpack.c.h.b16 %v1680
        %v2358 = vunpack.c.l.b16 %v1681
        %v2359 = vunpack.c.h.b16 %v1681
        %v2360 = vunpack.c.l.b16 %v1682
        %v2361 = vunpack.c.l.b16 %v1683
        %v2362 = vunpack.c.h.b16 %v1683
        %v2363 = vunpack.c.l.b16 %v1684
        %v2364 = vunpack.c.h.b16 %v1684
        %v2365 = vunpack.c.l.b16 %v1685
        %v2366 = vunpack.c.h.b16 %v1685
        %v2367 = vunpack.c.l.b16 %v1686
        %v2368 = vunpack.c.l.b16 %v1687
        %v2369 = vunpack.c.h.b16 %v1687
        %v2370 = vunpack.c.l.b16 %v1688
        %v2371 = vunpack.c.h.b16 %v1688
        %v2372 = vunpack.c.l.b16 %v1689
        %v2373 = vunpack.c.h.b16 %v1689
        %v2374 = vunpack.c.l.b16 %v1690
        %v2375 = vunpack.c.l.b16 %v1691
        %v2376 = vunpack.c.h.b16 %v1691
        %v2377 = vunpack.c.l.b16 %v1692
        %v2378 = vunpack.c.h.b16 %v1692
        %v2379 = vunpack.c.l.b16 %v1693
        %v2380 = vunpack.c.h.b16 %v1693
        %v2381 = vunpack.c.l.b16 %v1694
        %v2382 = vunpack.c.l.b16 %v1695
        %v2383 = vunpack.c.h.b16 %v1695
        %v2384 = vunpack.c.l.b16 %v1696
        %v2385 = vunpack.c.h.b16 %v1696
        %v2386 = vunpack.c.l.b16 %v1697
        %v2387 = vunpack.c.h.b16 %v1697
        %v2388 = vunpack.c.l.b16 %v1698
        %v2389 = vunpack.c.l.b16 %v1699
        %v2390 = vunpack.c.h.b16 %v1699
        %v2391 = vunpack.c.l.b16 %v1700
        %v2392 = vunpack.c.h.b16 %v1700
        %v2393 = vunpack.c.l.b16 %v1701
        %v2394 = vunpack.c.h.b16 %v1701
        %v2395 = vunpack.c.l.b16 %v1702
        %v2396 = vunpack.c.l.b16 %v1703
        %v2397 = vunpack.c.h.b16 %v1703
        %v2398 = vunpack.c.l.b16 %v1704
        %v2399 = vunpack.c.h.b16 %v1704
        %v2400 = vunpack.c.l.b16 %v1705
        %v2401 = vunpack.c.h.b16 %v1705
        %v2402 = vunpack.c.l.b16 %v1706
        %v2403 = vunpack.c.l.b16 %v1707
        %v2404 = vunpack.c.h.b16 %v1707
        %v2405 = vunpack.c.l.b16 %v1708
        %v2406 = vunpack.c.h.b16 %v1708
        %v2407 = vunpack.c.l.b16 %v1709
        %v2408 = vunpack.c.h.b16 %v1709
        %v2409 = vunpack.c.l.b16 %v1710
        %v2410 = vunpack.c.l.b16 %v1711
        %v2411 = vunpack.c.h.b16 %v1711
        %v2412 = vunpack.c.l.b16 %v1712
        %v2413 = vunpack.c.h.b16 %v1712
        %v2414 = vunpack.c.l.b16 %v1713
        %v2415 = vunpack.c.h.b16 %v1713
        %v2416 = vunpack.c.l.b16 %v1714
        %v2417 = vunpack.c.l.b16 %v1715
        %v2418 = vunpack.c.h.b16 %v1715
        %v2419 = vunpack.c.l.b16 %v1716
        %v2420 = vunpack.c.h.b16 %v1716
        %v2421 = vunpack.c.l.b16 %v1717
        %v2422 = vunpack.c.h.b16 %v1717
        %v2423 = vunpack.c.l.b16 %v1718
        %v2424 = vunpack.c.l.b16 %v1719
        %v2425 = vunpack.c.h.b16 %v1719
        %v2426 = vunpack.c.l.b16 %v1720
        %v2427 = vunpack.c.h.b16 %v1720
        %v2428 = vunpack.c.l.b16 %v1721
        %v2429 = vunpack.c.h.b16 %v1721
        %v2430 = vunpack.c.l.b16 %v1722
        %v2431 = vunpack.c.l.b16 %v1723
        %v2432 = vunpack.c.h.b16 %v1723
        %v2433 = vunpack.c.l.b16 %v1724
        %v2434 = vunpack.c.h.b16 %v1724
        %v2435 = vunpack.c.l.b16 %v1725
        %v2436 = vunpack.c.h.b16 %v1725
        %v2437 = vunpack.c.l.b16 %v1726
        %v2438 = vunpack.c.l.b16 %v1727
        %v2439 = vunpack.c.h.b16 %v1727
        %v2440 = vunpack.c.l.b16 %v1728
        %v2441 = vunpack.c.h.b16 %v1728
        %v2442 = vunpack.c.l.b16 %v1729
        %v2443 = vunpack.c.h.b16 %v1729
        %v2444 = vunpack.c.l.b16 %v1730
        %v2445 = vunpack.c.l.b16 %v1731
        %v2446 = vunpack.c.h.b16 %v1731
        %v2447 = vunpack.c.l.b16 %v1732
        %v2448 = vunpack.c.h.b16 %v1732
        %v2449 = vunpack.c.l.b16 %v1733
        %v2450 = vunpack.c.h.b16 %v1733
        %v2451 = vunpack.c.l.b16 %v1734
        %v2452 = vunpack.c.l.b16 %v1735
        %v2453 = vunpack.c.h.b16 %v1735
        %v2454 = vunpack.c.l.b16 %v1736
        %v2455 = vunpack.c.h.b16 %v1736
        %v2456 = vunpack.c.l.b16 %v1737
        %v2457 = vunpack.c.h.b16 %v1737
        %v2458 = vunpack.c.l.b16 %v1738
        %v2459 = vpack.c.b16 %v2018, %v2011
        %v2460 = vpack.c.b16 %v2019, %v2012
        %v2461 = vpack.c.b16 %v2020, %v2013
        %v2462 = vpack.c.b16 %v2021, %v2014
        %v2463 = vpack.c.b16 %v2022, %v2015
        %v2464 = vpack.c.b16 %v2023, %v2016
        %v2465 = vpack.c.b16 %v2024, %v2017
        %v2466 = vpack.c.b16 %v2032, %v2025
        %v2467 = vpack.c.b16 %v2033, %v2026
        %v2468 = vpack.c.b16 %v2034, %v2027
        %v2469 = vpack.c.b16 %v2035, %v2028
        %v2470 = vpack.c.b16 %v2036, %v2029
        %v2471 = vpack.c.b16 %v2037, %v2030
        %v2472 = vpack.c.b16 %v2038, %v2031
        %v2473 = vpack.c.b16 %v2046, %v2039
        %v2474 = vpack.c.b16 %v2047, %v2040
        %v2475 = vpack.c.b16 %v2048, %v2041
        %v2476 = vpack.c.b16 %v2049, %v2042
        %v2477 = vpack.c.b16 %v2050, %v2043
        %v2478 = vpack.c.b16 %v2051, %v2044
        %v2479 = vpack.c.b16 %v2052, %v2045
        %v2480 = vpack.c.b16 %v2060, %v2053
        %v2481 = vpack.c.b16 %v2061, %v2054
        %v2482 = vpack.c.b16 %v2062, %v2055
        %v2483 = vpack.c.b16 %v2063, %v2056
        %v2484 = vpack.c.b16 %v2064, %v2057
        %v2485 = vpack.c.b16 %v2065, %v2058
        %v2486 = vpack.c.b16 %v2066, %v2059
        %v2487 = vpack.c.b16 %v2074, %v2067
        %v2488 = vpack.c.b16 %v2075, %v2068
        %v2489 = vpack.c.b16 %v2076, %v2069
        %v2490 = vpack.c.b16 %v2077, %v2070
        %v2491 = vpack.c.b16 %v2078, %v2071
        %v2492 = vpack.c.b16 %v2079, %v2072
        %v2493 = vpack.c.b16 %v2080, %v2073
        %v2494 = vpack.c.b16 %v2088, %v2081
        %v2495 = vpack.c.b16 %v2089, %v2082
        %v2496 = vpack.c.b16 %v2090, %v2083
        %v2497 = vpack.c.b16 %v2091, %v2084
        %v2498 = vpack.c.b16 %v2092, %v2085
        %v2499 = vpack.c.b16 %v2093, %v2086
        %v2500 = vpack.c.b16 %v2094, %v2087
        %v2501 = vpack.c.b16 %v2102, %v2095
        %v2502 = vpack.c.b16 %v2103, %v2096
        %v2503 = vpack.c.b16 %v2104, %v2097
        %v2504 = vpack.c.b16 %v2105, %v2098
        %v2505 = vpack.c.b16 %v2106, %v2099
        %v2506 = vpack.c.b16 %v2107, %v2100
        %v2507 = vpack.c.b16 %v2108, %v2101
        %v2508 = vpack.c.b16 %v2116, %v2109
        %v2509 = vpack.c.b16 %v2117, %v2110
        %v2510 = vpack.c.b16 %v2118, %v2111
        %v2511 = vpack.c.b16 %v2119, %v2112
        %v2512 = vpack.c.b16 %v2120, %v2113
        %v2513 = vpack.c.b16 %v2121, %v2114
        %v2514 = vpack.c.b16 %v2122, %v2115
        %v2515 = vpack.c.b16 %v2130, %v2123
        %v2516 = vpack.c.b16 %v2131, %v2124
        %v2517 = vpack.c.b16 %v2132, %v2125
        %v2518 = vpack.c.b16 %v2133, %v2126
        %v2519 = vpack.c.b16 %v2134, %v2127
        %v2520 = vpack.c.b16 %v2135, %v2128
        %v2521 = vpack.c.b16 %v2136, %v2129
        %v2522 = vpack.c.b16 %v2144, %v2137
        %v2523 = vpack.c.b16 %v2145, %v2138
        %v2524 = vpack.c.b16 %v2146, %v2139
        %v2525 = vpack.c.b16 %v2147, %v2140
        %v2526 = vpack.c.b16 %v2148, %v2141
        %v2527 = vpack.c.b16 %v2149, %v2142
        %v2528 = vpack.c.b16 %v2150, %v2143
        %v2529 = vpack.c.b16 %v2158, %v2151
        %v2530 = vpack.c.b16 %v2159, %v2152
        %v2531 = vpack.c.b16 %v2160, %v2153
        %v2532 = vpack.c.b16 %v2161, %v2154
        %v2533 = vpack.c.b16 %v2162, %v2155
        %v2534 = vpack.c.b16 %v2163, %v2156
        %v2535 = vpack.c.b16 %v2164, %v2157
        %v2536 = vpack.c.b16 %v2172, %v2165
        %v2537 = vpack.c.b16 %v2173, %v2166
        %v2538 = vpack.c.b16 %v2174, %v2167
        %v2539 = vpack.c.b16 %v2175, %v2168
        %v2540 = vpack.c.b16 %v2176, %v2169
        %v2541 = vpack.c.b16 %v2177, %v2170
        %v2542 = vpack.c.b16 %v2178, %v2171
        %v2543 = vpack.c.b16 %v2186, %v2179
        %v2544 = vpack.c.b16 %v2187, %v2180
        %v2545 = vpack.c.b16 %v2188, %v2181
        %v2546 = vpack.c.b16 %v2189, %v2182
        %v2547 = vpack.c.b16 %v2190, %v2183
        %v2548 = vpack.c.b16 %v2191, %v2184
        %v2549 = vpack.c.b16 %v2192, %v2185
        %v2550 = vpack.c.b16 %v2200, %v2193
        %v2551 = vpack.c.b16 %v2201, %v2194
        %v2552 = vpack.c.b16 %v2202, %v2195
        %v2553 = vpack.c.b16 %v2203, %v2196
        %v2554 = vpack.c.b16 %v2204, %v2197
        %v2555 = vpack.c.b16 %v2205, %v2198
        %v2556 = vpack.c.b16 %v2206, %v2199
        %v2557 = vpack.c.b16 %v2214, %v2207
        %v2558 = vpack.c.b16 %v2215, %v2208
        %v2559 = vpack.c.b16 %v2216, %v2209
        %v2560 = vpack.c.b16 %v2217, %v2210
        %v2561 = vpack.c.b16 %v2218, %v2211
        %v2562 = vpack.c.b16 %v2219, %v2212
        %v2563 = vpack.c.b16 %v2220, %v2213
        %v2564 = vpack.c.b16 %v2228, %v2221
        %v2565 = vpack.c.b16 %v2229, %v2222
        %v2566 = vpack.c.b16 %v2230, %v2223
        %v2567 = vpack.c.b16 %v2231, %v2224
        %v2568 = vpack.c.b16 %v2232, %v2225
        %v2569 = vpack.c.b16 %v2233, %v2226
        %v2570 = vpack.c.b16 %v2234, %v2227
        %v2571 = vpack.c.b16 %v2242, %v2235
        %v2572 = vpack.c.b16 %v2243, %v2236
        %v2573 = vpack.c.b16 %v2244, %v2237
        %v2574 = vpack.c.b16 %v2245, %v2238
        %v2575 = vpack.c.b16 %v2246, %v2239
        %v2576 = vpack.c.b16 %v2247, %v2240
        %v2577 = vpack.c.b16 %v2248, %v2241
        %v2578 = vpack.c.b16 %v2256, %v2249
        %v2579 = vpack.c.b16 %v2257, %v2250
        %v2580 = vpack.c.b16 %v2258, %v2251
        %v2581 = vpack.c.b16 %v2259, %v2252
        %v2582 = vpack.c.b16 %v2260, %v2253
        %v2583 = vpack.c.b16 %v2261, %v2254
        %v2584 = vpack.c.b16 %v2262, %v2255
        %v2585 = vpack.c.b16 %v2270, %v2263
        %v2586 = vpack.c.b16 %v2271, %v2264
        %v2587 = vpack.c.b16 %v2272, %v2265
        %v2588 = vpack.c.b16 %v2273, %v2266
        %v2589 = vpack.c.b16 %v2274, %v2267
        %v2590 = vpack.c.b16 %v2275, %v2268
        %v2591 = vpack.c.b16 %v2276, %v2269
        %v2592 = vpack.c.b16 %v2284, %v2277
        %v2593 = vpack.c.b16 %v2285, %v2278
        %v2594 = vpack.c.b16 %v2286, %v2279
        %v2595 = vpack.c.b16 %v2287, %v2280
        %v2596 = vpack.c.b16 %v2288, %v2281
        %v2597 = vpack.c.b16 %v2289, %v2282
        %v2598 = vpack.c.b16 %v2290, %v2283
        %v2599 = vpack.c.b16 %v2298, %v2291
        %v2600 = vpack.c.b16 %v2299, %v2292
        %v2601 = vpack.c.b16 %v2300, %v2293
        %v2602 = vpack.c.b16 %v2301, %v2294
        %v2603 = vpack.c.b16 %v2302, %v2295
        %v2604 = vpack.c.b16 %v2303, %v2296
        %v2605 = vpack.c.b16 %v2304, %v2297
        %v2606 = vpack.c.b16 %v2312, %v2305
        %v2607 = vpack.c.b16 %v2313, %v2306
        %v2608 = vpack.c.b16 %v2314, %v2307
        %v2609 = vpack.c.b16 %v2315, %v2308
        %v2610 = vpack.c.b16 %v2316, %v2309
        %v2611 = vpack.c.b16 %v2317, %v2310
        %v2612 = vpack.c.b16 %v2318, %v2311
        %v2613 = vpack.c.b16 %v2326, %v2319
        %v2614 = vpack.c.b16 %v2327, %v2320
        %v2615 = vpack.c.b16 %v2328, %v2321
        %v2616 = vpack.c.b16 %v2329, %v2322
        %v2617 = vpack.c.b16 %v2330, %v2323
        %v2618 = vpack.c.b16 %v2331, %v2324
        %v2619 = vpack.c.b16 %v2332, %v2325
        %v2620 = vpack.c.b16 %v2340, %v2333
        %v2621 = vpack.c.b16 %v2341, %v2334
        %v2622 = vpack.c.b16 %v2342, %v2335
        %v2623 = vpack.c.b16 %v2343, %v2336
        %v2624 = vpack.c.b16 %v2344, %v2337
        %v2625 = vpack.c.b16 %v2345, %v2338
        %v2626 = vpack.c.b16 %v2346, %v2339
        %v2627 = vpack.c.b16 %v2354, %v2347
        %v2628 = vpack.c.b16 %v2355, %v2348
        %v2629 = vpack.c.b16 %v2356, %v2349
        %v2630 = vpack.c.b16 %v2357, %v2350
        %v2631 = vpack.c.b16 %v2358, %v2351
        %v2632 = vpack.c.b16 %v2359, %v2352
        %v2633 = vpack.c.b16 %v2360, %v2353
        %v2634 = vpack.c.b16 %v2368, %v2361
        %v2635 = vpack.c.b16 %v2369, %v2362
        %v2636 = vpack.c.b16 %v2370, %v2363
        %v2637 = vpack.c.b16 %v2371, %v2364
        %v2638 = vpack.c.b16 %v2372, %v2365
        %v2639 = vpack.c.b16 %v2373, %v2366
        %v2640 = vpack.c.b16 %v2374, %v2367
        %v2641 = vpack.c.b16 %v2382, %v2375
        %v2642 = vpack.c.b16 %v2383, %v2376
        %v2643 = vpack.c.b16 %v2384, %v2377
        %v2644 = vpack.c.b16 %v2385, %v2378
        %v2645 = vpack.c.b16 %v2386, %v2379
        %v2646 = vpack.c.b16 %v2387, %v2380
        %v2647 = vpack.c.b16 %v2388, %v2381
        %v2648 = vpack.c.b16 %v2396, %v2389
        %v2649 = vpack.c.b16 %v2397, %v2390
        %v2650 = vpack.c.b16 %v2398, %v2391
        %v2651 = vpack.c.b16 %v2399, %v2392
        %v2652 = vpack.c.b16 %v2400, %v2393
        %v2653 = vpack.c.b16 %v2401, %v2394
        %v2654 = vpack.c.b16 %v2402, %v2395
        %v2655 = vpack.c.b16 %v2410, %v2403
        %v2656 = vpack.c.b16 %v2411, %v2404
        %v2657 = vpack.c.b16 %v2412, %v2405
        %v2658 = vpack.c.b16 %v2413, %v2406
        %v2659 = vpack.c.b16 %v2414, %v2407
        %v2660 = vpack.c.b16 %v2415, %v2408
        %v2661 = vpack.c.b16 %v2416, %v2409
        %v2662 = vpack.c.b16 %v2424, %v2417
        %v2663 = vpack.c.b16 %v2425, %v2418
        %v2664 = vpack.c.b16 %v2426, %v2419
        %v2665 = vpack.c.b16 %v2427, %v2420
        %v2666 = vpack.c.b16 %v2428, %v2421
        %v2667 = vpack.c.b16 %v2429, %v2422
        %v2668 = vpack.c.b16 %v2430, %v2423
        %v2669 = vpack.c.b16 %v2438, %v2431
        %v2670 = vpack.c.b16 %v2439, %v2432
        %v2671 = vpack.c.b16 %v2440, %v2433
        %v2672 = vpack.c.b16 %v2441, %v2434
        %v2673 = vpack.c.b16 %v2442, %v2435
        %v2674 = vpack.c.b16 %v2443, %v2436
        %v2675 = vpack.c.b16 %v2444, %v2437
        %v2676 = vpack.c.b16 %v2452, %v2445
        %v2677 = vpack.c.b16 %v2453, %v2446
        %v2678 = vpack.c.b16 %v2454, %v2447
        %v2679 = vpack.c.b16 %v2455, %v2448
        %v2680 = vpack.c.b16 %v2456, %v2449
        %v2681 = vpack.c.b16 %v2457, %v2450
        %v2682 = vpack.c.b16 %v2458, %v2451
        %2907 = vmatpush.bf16.msra.mxu0 %v2508
        %2908 = vmatpush.bf16.msra.mxu0 %v2501
        %2909 = vmatpush.bf16.msra.mxu0 %v2494
        %2910 = vmatpush.bf16.msra.mxu0 %v2487
        %2911 = vmatpush.bf16.msra.mxu0 %v2480
        %2912 = vmatpush.bf16.msra.mxu0 %v2473
        %2913 = vmatpush.bf16.msra.mxu0 %v2466
        %2914 = vmatpush.bf16.msra.mxu0 %v2459
        %2915 = vmatmul.bf16.gmra.mxu0 %v1451
        %v2916 = vpop.f32.mrf.mxu0
        %v2917 = vadd.f32 %v1741, %v2916
        %v2918 = vpop.f32.mrf.mxu0
        %v2919 = vadd.f32 %v1741, %v2918
        %2920 = vmatmul.bf16.gmra.mxu0 %v1455
        %v2921 = vpop.f32.mrf.mxu0
        %v2922 = vadd.f32 %v1741, %v2921
        %v2923 = vpop.f32.mrf.mxu0
        %v2924 = vadd.f32 %v1741, %v2923
        %2925 = vmatmul.bf16.gmra.mxu0 %v1459
        %v2926 = vpop.f32.mrf.mxu0
        %v2927 = vadd.f32 %v1741, %v2926
        %v2928 = vpop.f32.mrf.mxu0
        %v2929 = vadd.f32 %v1741, %v2928
        %2930 = vmatmul.bf16.gmra.mxu0 %v1463
        %v2931 = vpop.f32.mrf.mxu0
        %v2932 = vadd.f32 %v1741, %v2931
        %v2933 = vpop.f32.mrf.mxu0
        %v2934 = vadd.f32 %v1741, %v2933
        %2935 = vmatmul.bf16.gmra.mxu0 %v1467
        %v2936 = vpop.f32.mrf.mxu0
        %v2937 = vadd.f32 %v1741, %v2936
        %v2938 = vpop.f32.mrf.mxu0
        %v2939 = vadd.f32 %v1741, %v2938
        %2940 = vmatmul.bf16.gmra.mxu0 %v1471
        %v2941 = vpop.f32.mrf.mxu0
        %v2942 = vadd.f32 %v1741, %v2941
        %v2943 = vpop.f32.mrf.mxu0
        %v2944 = vadd.f32 %v1741, %v2943
        %2945 = vmatmul.bf16.gmra.mxu0 %v1475
        %v2946 = vpop.f32.mrf.mxu0
        %v2947 = vadd.f32 %v1741, %v2946
        %v2948 = vpop.f32.mrf.mxu0
        %v2949 = vadd.f32 %v1741, %v2948
        %2950 = vmatmul.bf16.gmra.mxu0 %v1479
        %v2951 = vpop.f32.mrf.mxu0
        %v2952 = vadd.f32 %v1741, %v2951
        %v2953 = vpop.f32.mrf.mxu0
        %v2954 = vadd.f32 %v1741, %v2953
        %2955 = vdwg.mxu0
        %2956 = vmatpush.bf16.msra.mxu0 %v2564
        %2957 = vmatpush.bf16.msra.mxu0 %v2557
        %2958 = vmatpush.bf16.msra.mxu0 %v2550
        %2959 = vmatpush.bf16.msra.mxu0 %v2543
        %2960 = vmatpush.bf16.msra.mxu0 %v2536
        %2961 = vmatpush.bf16.msra.mxu0 %v2529
        %2962 = vmatpush.bf16.msra.mxu0 %v2522
        %2963 = vmatpush.bf16.msra.mxu0 %v2515
        %2964 = vmatmul.bf16.gmra.mxu0 %v1452
        %v2965 = vpop.f32.mrf.mxu0
        %v2966 = vadd.f32 %v2917, %v2965
        %v2967 = vpop.f32.mrf.mxu0
        %v2968 = vadd.f32 %v2919, %v2967
        %2969 = vmatmul.bf16.gmra.mxu0 %v1456
        %v2970 = vpop.f32.mrf.mxu0
        %v2971 = vadd.f32 %v2922, %v2970
        %v2972 = vpop.f32.mrf.mxu0
        %v2973 = vadd.f32 %v2924, %v2972
        %2974 = vmatmul.bf16.gmra.mxu0 %v1460
        %v2975 = vpop.f32.mrf.mxu0
        %v2976 = vadd.f32 %v2927, %v2975
        %v2977 = vpop.f32.mrf.mxu0
        %v2978 = vadd.f32 %v2929, %v2977
        %2979 = vmatmul.bf16.gmra.mxu0 %v1464
        %v2980 = vpop.f32.mrf.mxu0
        %v2981 = vadd.f32 %v2932, %v2980
        %v2982 = vpop.f32.mrf.mxu0
        %v2983 = vadd.f32 %v2934, %v2982
        %2984 = vmatmul.bf16.gmra.mxu0 %v1468
        %v2985 = vpop.f32.mrf.mxu0
        %v2986 = vadd.f32 %v2937, %v2985
        %v2987 = vpop.f32.mrf.mxu0
        %v2988 = vadd.f32 %v2939, %v2987
        %2989 = vmatmul.bf16.gmra.mxu0 %v1472
        %v2990 = vpop.f32.mrf.mxu0
        %v2991 = vadd.f32 %v2942, %v2990
        %v2992 = vpop.f32.mrf.mxu0
        %v2993 = vadd.f32 %v2944, %v2992
        %2994 = vmatmul.bf16.gmra.mxu0 %v1476
        %v2995 = vpop.f32.mrf.mxu0
        %v2996 = vadd.f32 %v2947, %v2995
        %v2997 = vpop.f32.mrf.mxu0
        %v2998 = vadd.f32 %v2949, %v2997
        %2999 = vmatmul.bf16.gmra.mxu0 %v1480
        %v3000 = vpop.f32.mrf.mxu0
        %v3001 = vadd.f32 %v2952, %v3000
        %v3002 = vpop.f32.mrf.mxu0
        %v3003 = vadd.f32 %v2954, %v3002
        %3004 = vdwg.mxu0
        %3005 = vmatpush.bf16.msra.mxu0 %v2620
        %3006 = vmatpush.bf16.msra.mxu0 %v2613
        %3007 = vmatpush.bf16.msra.mxu0 %v2606
        %3008 = vmatpush.bf16.msra.mxu0 %v2599
        %3009 = vmatpush.bf16.msra.mxu0 %v2592
        %3010 = vmatpush.bf16.msra.mxu0 %v2585
        %3011 = vmatpush.bf16.msra.mxu0 %v2578
        %3012 = vmatpush.bf16.msra.mxu0 %v2571
        %3013 = vmatmul.bf16.gmra.mxu0 %v1453
        %v3014 = vpop.f32.mrf.mxu0
        %v3015 = vadd.f32 %v2966, %v3014
        %v3016 = vpop.f32.mrf.mxu0
        %v3017 = vadd.f32 %v2968, %v3016
        %3018 = vmatmul.bf16.gmra.mxu0 %v1457
        %v3019 = vpop.f32.mrf.mxu0
        %v3020 = vadd.f32 %v2971, %v3019
        %v3021 = vpop.f32.mrf.mxu0
        %v3022 = vadd.f32 %v2973, %v3021
        %3023 = vmatmul.bf16.gmra.mxu0 %v1461
        %v3024 = vpop.f32.mrf.mxu0
        %v3025 = vadd.f32 %v2976, %v3024
        %v3026 = vpop.f32.mrf.mxu0
        %v3027 = vadd.f32 %v2978, %v3026
        %3028 = vmatmul.bf16.gmra.mxu0 %v1465
        %v3029 = vpop.f32.mrf.mxu0
        %v3030 = vadd.f32 %v2981, %v3029
        %v3031 = vpop.f32.mrf.mxu0
        %v3032 = vadd.f32 %v2983, %v3031
        %3033 = vmatmul.bf16.gmra.mxu0 %v1469
        %v3034 = vpop.f32.mrf.mxu0
        %v3035 = vadd.f32 %v2986, %v3034
        %v3036 = vpop.f32.mrf.mxu0
        %v3037 = vadd.f32 %v2988, %v3036
        %3038 = vmatmul.bf16.gmra.mxu0 %v1473
        %v3039 = vpop.f32.mrf.mxu0
        %v3040 = vadd.f32 %v2991, %v3039
        %v3041 = vpop.f32.mrf.mxu0
        %v3042 = vadd.f32 %v2993, %v3041
        %3043 = vmatmul.bf16.gmra.mxu0 %v1477
        %v3044 = vpop.f32.mrf.mxu0
        %v3045 = vadd.f32 %v2996, %v3044
        %v3046 = vpop.f32.mrf.mxu0
        %v3047 = vadd.f32 %v2998, %v3046
        %3048 = vmatmul.bf16.gmra.mxu0 %v1481
        %v3049 = vpop.f32.mrf.mxu0
        %v3050 = vadd.f32 %v3001, %v3049
        %v3051 = vpop.f32.mrf.mxu0
        %v3052 = vadd.f32 %v3003, %v3051
        %3053 = vdwg.mxu0
        %3054 = vmatpush.bf16.msra.mxu0 %v2676
        %3055 = vmatpush.bf16.msra.mxu0 %v2669
        %3056 = vmatpush.bf16.msra.mxu0 %v2662
        %3057 = vmatpush.bf16.msra.mxu0 %v2655
        %3058 = vmatpush.bf16.msra.mxu0 %v2648
        %3059 = vmatpush.bf16.msra.mxu0 %v2641
        %3060 = vmatpush.bf16.msra.mxu0 %v2634
        %3061 = vmatpush.bf16.msra.mxu0 %v2627
        %3062 = vmatmul.bf16.gmra.mxu0 %v1454
        %v3063 = vpop.f32.mrf.mxu0
        %v3064 = vadd.f32 %v3015, %v3063
        %v3065 = vpop.f32.mrf.mxu0
        %v3066 = vadd.f32 %v3017, %v3065
        %3067 = vmatmul.bf16.gmra.mxu0 %v1458
        %v3068 = vpop.f32.mrf.mxu0
        %v3069 = vadd.f32 %v3020, %v3068
        %v3070 = vpop.f32.mrf.mxu0
        %v3071 = vadd.f32 %v3022, %v3070
        %3072 = vmatmul.bf16.gmra.mxu0 %v1462
        %v3073 = vpop.f32.mrf.mxu0
        %v3074 = vadd.f32 %v3025, %v3073
        %v3075 = vpop.f32.mrf.mxu0
        %v3076 = vadd.f32 %v3027, %v3075
        %3077 = vmatmul.bf16.gmra.mxu0 %v1466
        %v3078 = vpop.f32.mrf.mxu0
        %v3079 = vadd.f32 %v3030, %v3078
        %v3080 = vpop.f32.mrf.mxu0
        %v3081 = vadd.f32 %v3032, %v3080
        %3082 = vmatmul.bf16.gmra.mxu0 %v1470
        %v3083 = vpop.f32.mrf.mxu0
        %v3084 = vadd.f32 %v3035, %v3083
        %v3085 = vpop.f32.mrf.mxu0
        %v3086 = vadd.f32 %v3037, %v3085
        %3087 = vmatmul.bf16.gmra.mxu0 %v1474
        %v3088 = vpop.f32.mrf.mxu0
        %v3089 = vadd.f32 %v3040, %v3088
        %v3090 = vpop.f32.mrf.mxu0
        %v3091 = vadd.f32 %v3042, %v3090
        %3092 = vmatmul.bf16.gmra.mxu0 %v1478
        %v3093 = vpop.f32.mrf.mxu0
        %v3094 = vadd.f32 %v3045, %v3093
        %v3095 = vpop.f32.mrf.mxu0
        %v3096 = vadd.f32 %v3047, %v3095
        %3097 = vmatmul.bf16.gmra.mxu0 %v1482
        %v3098 = vpop.f32.mrf.mxu0
        %v3099 = vadd.f32 %v3050, %v3098
        %v3100 = vpop.f32.mrf.mxu0
        %v3101 = vadd.f32 %v3052, %v3100
        %3102 = vdwg.mxu0
        %3103 = vmatpush.bf16.msra.mxu0 %v2509
        %3104 = vmatpush.bf16.msra.mxu0 %v2502
        %3105 = vmatpush.bf16.msra.mxu0 %v2495
        %3106 = vmatpush.bf16.msra.mxu0 %v2488
        %3107 = vmatpush.bf16.msra.mxu0 %v2481
        %3108 = vmatpush.bf16.msra.mxu0 %v2474
        %3109 = vmatpush.bf16.msra.mxu0 %v2467
        %3110 = vmatpush.bf16.msra.mxu0 %v2460
        %3111 = vmatmul.bf16.gmra.mxu0 %v1451
        %v3112 = vpop.f32.mrf.mxu0
        %v3113 = vadd.f32 %v1742, %v3112
        %v3114 = vpop.f32.mrf.mxu0
        %v3115 = vadd.f32 %v1742, %v3114
        %3116 = vmatmul.bf16.gmra.mxu0 %v1455
        %v3117 = vpop.f32.mrf.mxu0
        %v3118 = vadd.f32 %v1742, %v3117
        %v3119 = vpop.f32.mrf.mxu0
        %v3120 = vadd.f32 %v1742, %v3119
        %3121 = vmatmul.bf16.gmra.mxu0 %v1459
        %v3122 = vpop.f32.mrf.mxu0
        %v3123 = vadd.f32 %v1742, %v3122
        %v3124 = vpop.f32.mrf.mxu0
        %v3125 = vadd.f32 %v1742, %v3124
        %3126 = vmatmul.bf16.gmra.mxu0 %v1463
        %v3127 = vpop.f32.mrf.mxu0
        %v3128 = vadd.f32 %v1742, %v3127
        %v3129 = vpop.f32.mrf.mxu0
        %v3130 = vadd.f32 %v1742, %v3129
        %3131 = vmatmul.bf16.gmra.mxu0 %v1467
        %v3132 = vpop.f32.mrf.mxu0
        %v3133 = vadd.f32 %v1742, %v3132
        %v3134 = vpop.f32.mrf.mxu0
        %v3135 = vadd.f32 %v1742, %v3134
        %3136 = vmatmul.bf16.gmra.mxu0 %v1471
        %v3137 = vpop.f32.mrf.mxu0
        %v3138 = vadd.f32 %v1742, %v3137
        %v3139 = vpop.f32.mrf.mxu0
        %v3140 = vadd.f32 %v1742, %v3139
        %3141 = vmatmul.bf16.gmra.mxu0 %v1475
        %v3142 = vpop.f32.mrf.mxu0
        %v3143 = vadd.f32 %v1742, %v3142
        %v3144 = vpop.f32.mrf.mxu0
        %v3145 = vadd.f32 %v1742, %v3144
        %3146 = vmatmul.bf16.gmra.mxu0 %v1479
        %v3147 = vpop.f32.mrf.mxu0
        %v3148 = vadd.f32 %v1742, %v3147
        %v3149 = vpop.f32.mrf.mxu0
        %v3150 = vadd.f32 %v1742, %v3149
        %3151 = vdwg.mxu0
        %3152 = vmatpush.bf16.msra.mxu0 %v2565
        %3153 = vmatpush.bf16.msra.mxu0 %v2558
        %3154 = vmatpush.bf16.msra.mxu0 %v2551
        %3155 = vmatpush.bf16.msra.mxu0 %v2544
        %3156 = vmatpush.bf16.msra.mxu0 %v2537
        %3157 = vmatpush.bf16.msra.mxu0 %v2530
        %3158 = vmatpush.bf16.msra.mxu0 %v2523
        %3159 = vmatpush.bf16.msra.mxu0 %v2516
        %3160 = vmatmul.bf16.gmra.mxu0 %v1452
        %v3161 = vpop.f32.mrf.mxu0
        %v3162 = vadd.f32 %v3113, %v3161
        %v3163 = vpop.f32.mrf.mxu0
        %v3164 = vadd.f32 %v3115, %v3163
        %3165 = vmatmul.bf16.gmra.mxu0 %v1456
        %v3166 = vpop.f32.mrf.mxu0
        %v3167 = vadd.f32 %v3118, %v3166
        %v3168 = vpop.f32.mrf.mxu0
        %v3169 = vadd.f32 %v3120, %v3168
        %3170 = vmatmul.bf16.gmra.mxu0 %v1460
        %v3171 = vpop.f32.mrf.mxu0
        %v3172 = vadd.f32 %v3123, %v3171
        %v3173 = vpop.f32.mrf.mxu0
        %v3174 = vadd.f32 %v3125, %v3173
        %3175 = vmatmul.bf16.gmra.mxu0 %v1464
        %v3176 = vpop.f32.mrf.mxu0
        %v3177 = vadd.f32 %v3128, %v3176
        %v3178 = vpop.f32.mrf.mxu0
        %v3179 = vadd.f32 %v3130, %v3178
        %3180 = vmatmul.bf16.gmra.mxu0 %v1468
        %v3181 = vpop.f32.mrf.mxu0
        %v3182 = vadd.f32 %v3133, %v3181
        %v3183 = vpop.f32.mrf.mxu0
        %v3184 = vadd.f32 %v3135, %v3183
        %3185 = vmatmul.bf16.gmra.mxu0 %v1472
        %v3186 = vpop.f32.mrf.mxu0
        %v3187 = vadd.f32 %v3138, %v3186
        %v3188 = vpop.f32.mrf.mxu0
        %v3189 = vadd.f32 %v3140, %v3188
        %3190 = vmatmul.bf16.gmra.mxu0 %v1476
        %v3191 = vpop.f32.mrf.mxu0
        %v3192 = vadd.f32 %v3143, %v3191
        %v3193 = vpop.f32.mrf.mxu0
        %v3194 = vadd.f32 %v3145, %v3193
        %3195 = vmatmul.bf16.gmra.mxu0 %v1480
        %v3196 = vpop.f32.mrf.mxu0
        %v3197 = vadd.f32 %v3148, %v3196
        %v3198 = vpop.f32.mrf.mxu0
        %v3199 = vadd.f32 %v3150, %v3198
        %3200 = vdwg.mxu0
        %3201 = vmatpush.bf16.msra.mxu0 %v2621
        %3202 = vmatpush.bf16.msra.mxu0 %v2614
        %3203 = vmatpush.bf16.msra.mxu0 %v2607
        %3204 = vmatpush.bf16.msra.mxu0 %v2600
        %3205 = vmatpush.bf16.msra.mxu0 %v2593
        %3206 = vmatpush.bf16.msra.mxu0 %v2586
        %3207 = vmatpush.bf16.msra.mxu0 %v2579
        %3208 = vmatpush.bf16.msra.mxu0 %v2572
        %3209 = vmatmul.bf16.gmra.mxu0 %v1453
        %v3210 = vpop.f32.mrf.mxu0
        %v3211 = vadd.f32 %v3162, %v3210
        %v3212 = vpop.f32.mrf.mxu0
        %v3213 = vadd.f32 %v3164, %v3212
        %3214 = vmatmul.bf16.gmra.mxu0 %v1457
        %v3215 = vpop.f32.mrf.mxu0
        %v3216 = vadd.f32 %v3167, %v3215
        %v3217 = vpop.f32.mrf.mxu0
        %v3218 = vadd.f32 %v3169, %v3217
        %3219 = vmatmul.bf16.gmra.mxu0 %v1461
        %v3220 = vpop.f32.mrf.mxu0
        %v3221 = vadd.f32 %v3172, %v3220
        %v3222 = vpop.f32.mrf.mxu0
        %v3223 = vadd.f32 %v3174, %v3222
        %3224 = vmatmul.bf16.gmra.mxu0 %v1465
        %v3225 = vpop.f32.mrf.mxu0
        %v3226 = vadd.f32 %v3177, %v3225
        %v3227 = vpop.f32.mrf.mxu0
        %v3228 = vadd.f32 %v3179, %v3227
        %3229 = vmatmul.bf16.gmra.mxu0 %v1469
        %v3230 = vpop.f32.mrf.mxu0
        %v3231 = vadd.f32 %v3182, %v3230
        %v3232 = vpop.f32.mrf.mxu0
        %v3233 = vadd.f32 %v3184, %v3232
        %3234 = vmatmul.bf16.gmra.mxu0 %v1473
        %v3235 = vpop.f32.mrf.mxu0
        %v3236 = vadd.f32 %v3187, %v3235
        %v3237 = vpop.f32.mrf.mxu0
        %v3238 = vadd.f32 %v3189, %v3237
        %3239 = vmatmul.bf16.gmra.mxu0 %v1477
        %v3240 = vpop.f32.mrf.mxu0
        %v3241 = vadd.f32 %v3192, %v3240
        %v3242 = vpop.f32.mrf.mxu0
        %v3243 = vadd.f32 %v3194, %v3242
        %3244 = vmatmul.bf16.gmra.mxu0 %v1481
        %v3245 = vpop.f32.mrf.mxu0
        %v3246 = vadd.f32 %v3197, %v3245
        %v3247 = vpop.f32.mrf.mxu0
        %v3248 = vadd.f32 %v3199, %v3247
        %3249 = vdwg.mxu0
        %3250 = vmatpush.bf16.msra.mxu0 %v2677
        %3251 = vmatpush.bf16.msra.mxu0 %v2670
        %3252 = vmatpush.bf16.msra.mxu0 %v2663
        %3253 = vmatpush.bf16.msra.mxu0 %v2656
        %3254 = vmatpush.bf16.msra.mxu0 %v2649
        %3255 = vmatpush.bf16.msra.mxu0 %v2642
        %3256 = vmatpush.bf16.msra.mxu0 %v2635
        %3257 = vmatpush.bf16.msra.mxu0 %v2628
        %3258 = vmatmul.bf16.gmra.mxu0 %v1454
        %v3259 = vpop.f32.mrf.mxu0
        %v3260 = vadd.f32 %v3211, %v3259
        %v3261 = vpop.f32.mrf.mxu0
        %v3262 = vadd.f32 %v3213, %v3261
        %3263 = vmatmul.bf16.gmra.mxu0 %v1458
        %v3264 = vpop.f32.mrf.mxu0
        %v3265 = vadd.f32 %v3216, %v3264
        %v3266 = vpop.f32.mrf.mxu0
        %v3267 = vadd.f32 %v3218, %v3266
        %3268 = vmatmul.bf16.gmra.mxu0 %v1462
        %v3269 = vpop.f32.mrf.mxu0
        %v3270 = vadd.f32 %v3221, %v3269
        %v3271 = vpop.f32.mrf.mxu0
        %v3272 = vadd.f32 %v3223, %v3271
        %3273 = vmatmul.bf16.gmra.mxu0 %v1466
        %v3274 = vpop.f32.mrf.mxu0
        %v3275 = vadd.f32 %v3226, %v3274
        %v3276 = vpop.f32.mrf.mxu0
        %v3277 = vadd.f32 %v3228, %v3276
        %3278 = vmatmul.bf16.gmra.mxu0 %v1470
        %v3279 = vpop.f32.mrf.mxu0
        %v3280 = vadd.f32 %v3231, %v3279
        %v3281 = vpop.f32.mrf.mxu0
        %v3282 = vadd.f32 %v3233, %v3281
        %3283 = vmatmul.bf16.gmra.mxu0 %v1474
        %v3284 = vpop.f32.mrf.mxu0
        %v3285 = vadd.f32 %v3236, %v3284
        %v3286 = vpop.f32.mrf.mxu0
        %v3287 = vadd.f32 %v3238, %v3286
        %3288 = vmatmul.bf16.gmra.mxu0 %v1478
        %v3289 = vpop.f32.mrf.mxu0
        %v3290 = vadd.f32 %v3241, %v3289
        %v3291 = vpop.f32.mrf.mxu0
        %v3292 = vadd.f32 %v3243, %v3291
        %3293 = vmatmul.bf16.gmra.mxu0 %v1482
        %v3294 = vpop.f32.mrf.mxu0
        %v3295 = vadd.f32 %v3246, %v3294
        %v3296 = vpop.f32.mrf.mxu0
        %v3297 = vadd.f32 %v3248, %v3296
        %3298 = vdwg.mxu0
        %3299 = vmatpush.bf16.msra.mxu0 %v2510
        %3300 = vmatpush.bf16.msra.mxu0 %v2503
        %3301 = vmatpush.bf16.msra.mxu0 %v2496
        %3302 = vmatpush.bf16.msra.mxu0 %v2489
        %3303 = vmatpush.bf16.msra.mxu0 %v2482
        %3304 = vmatpush.bf16.msra.mxu0 %v2475
        %3305 = vmatpush.bf16.msra.mxu0 %v2468
        %3306 = vmatpush.bf16.msra.mxu0 %v2461
        %3307 = vmatmul.bf16.gmra.mxu0 %v1451
        %v3308 = vpop.f32.mrf.mxu0
        %v3309 = vadd.f32 %v1743, %v3308
        %v3310 = vpop.f32.mrf.mxu0
        %v3311 = vadd.f32 %v1743, %v3310
        %3312 = vmatmul.bf16.gmra.mxu0 %v1455
        %v3313 = vpop.f32.mrf.mxu0
        %v3314 = vadd.f32 %v1743, %v3313
        %v3315 = vpop.f32.mrf.mxu0
        %v3316 = vadd.f32 %v1743, %v3315
        %3317 = vmatmul.bf16.gmra.mxu0 %v1459
        %v3318 = vpop.f32.mrf.mxu0
        %v3319 = vadd.f32 %v1743, %v3318
        %v3320 = vpop.f32.mrf.mxu0
        %v3321 = vadd.f32 %v1743, %v3320
        %3322 = vmatmul.bf16.gmra.mxu0 %v1463
        %v3323 = vpop.f32.mrf.mxu0
        %v3324 = vadd.f32 %v1743, %v3323
        %v3325 = vpop.f32.mrf.mxu0
        %v3326 = vadd.f32 %v1743, %v3325
        %3327 = vmatmul.bf16.gmra.mxu0 %v1467
        %v3328 = vpop.f32.mrf.mxu0
        %v3329 = vadd.f32 %v1743, %v3328
        %v3330 = vpop.f32.mrf.mxu0
        %v3331 = vadd.f32 %v1743, %v3330
        %3332 = vmatmul.bf16.gmra.mxu0 %v1471
        %v3333 = vpop.f32.mrf.mxu0
        %v3334 = vadd.f32 %v1743, %v3333
        %v3335 = vpop.f32.mrf.mxu0
        %v3336 = vadd.f32 %v1743, %v3335
        %3337 = vmatmul.bf16.gmra.mxu0 %v1475
        %v3338 = vpop.f32.mrf.mxu0
        %v3339 = vadd.f32 %v1743, %v3338
        %v3340 = vpop.f32.mrf.mxu0
        %v3341 = vadd.f32 %v1743, %v3340
        %3342 = vmatmul.bf16.gmra.mxu0 %v1479
        %v3343 = vpop.f32.mrf.mxu0
        %v3344 = vadd.f32 %v1743, %v3343
        %v3345 = vpop.f32.mrf.mxu0
        %v3346 = vadd.f32 %v1743, %v3345
        %3347 = vdwg.mxu0
        %3348 = vmatpush.bf16.msra.mxu0 %v2566
        %3349 = vmatpush.bf16.msra.mxu0 %v2559
        %3350 = vmatpush.bf16.msra.mxu0 %v2552
        %3351 = vmatpush.bf16.msra.mxu0 %v2545
        %3352 = vmatpush.bf16.msra.mxu0 %v2538
        %3353 = vmatpush.bf16.msra.mxu0 %v2531
        %3354 = vmatpush.bf16.msra.mxu0 %v2524
        %3355 = vmatpush.bf16.msra.mxu0 %v2517
        %3356 = vmatmul.bf16.gmra.mxu0 %v1452
        %v3357 = vpop.f32.mrf.mxu0
        %v3358 = vadd.f32 %v3309, %v3357
        %v3359 = vpop.f32.mrf.mxu0
        %v3360 = vadd.f32 %v3311, %v3359
        %3361 = vmatmul.bf16.gmra.mxu0 %v1456
        %v3362 = vpop.f32.mrf.mxu0
        %v3363 = vadd.f32 %v3314, %v3362
        %v3364 = vpop.f32.mrf.mxu0
        %v3365 = vadd.f32 %v3316, %v3364
        %3366 = vmatmul.bf16.gmra.mxu0 %v1460
        %v3367 = vpop.f32.mrf.mxu0
        %v3368 = vadd.f32 %v3319, %v3367
        %v3369 = vpop.f32.mrf.mxu0
        %v3370 = vadd.f32 %v3321, %v3369
        %3371 = vmatmul.bf16.gmra.mxu0 %v1464
        %v3372 = vpop.f32.mrf.mxu0
        %v3373 = vadd.f32 %v3324, %v3372
        %v3374 = vpop.f32.mrf.mxu0
        %v3375 = vadd.f32 %v3326, %v3374
        %3376 = vmatmul.bf16.gmra.mxu0 %v1468
        %v3377 = vpop.f32.mrf.mxu0
        %v3378 = vadd.f32 %v3329, %v3377
        %v3379 = vpop.f32.mrf.mxu0
        %v3380 = vadd.f32 %v3331, %v3379
        %3381 = vmatmul.bf16.gmra.mxu0 %v1472
        %v3382 = vpop.f32.mrf.mxu0
        %v3383 = vadd.f32 %v3334, %v3382
        %v3384 = vpop.f32.mrf.mxu0
        %v3385 = vadd.f32 %v3336, %v3384
        %3386 = vmatmul.bf16.gmra.mxu0 %v1476
        %v3387 = vpop.f32.mrf.mxu0
        %v3388 = vadd.f32 %v3339, %v3387
        %v3389 = vpop.f32.mrf.mxu0
        %v3390 = vadd.f32 %v3341, %v3389
        %3391 = vmatmul.bf16.gmra.mxu0 %v1480
        %v3392 = vpop.f32.mrf.mxu0
        %v3393 = vadd.f32 %v3344, %v3392
        %v3394 = vpop.f32.mrf.mxu0
        %v3395 = vadd.f32 %v3346, %v3394
        %3396 = vdwg.mxu0
        %3397 = vmatpush.bf16.msra.mxu0 %v2622
        %3398 = vmatpush.bf16.msra.mxu0 %v2615
        %3399 = vmatpush.bf16.msra.mxu0 %v2608
        %3400 = vmatpush.bf16.msra.mxu0 %v2601
        %3401 = vmatpush.bf16.msra.mxu0 %v2594
        %3402 = vmatpush.bf16.msra.mxu0 %v2587
        %3403 = vmatpush.bf16.msra.mxu0 %v2580
        %3404 = vmatpush.bf16.msra.mxu0 %v2573
        %3405 = vmatmul.bf16.gmra.mxu0 %v1453
        %v3406 = vpop.f32.mrf.mxu0
        %v3407 = vadd.f32 %v3358, %v3406
        %v3408 = vpop.f32.mrf.mxu0
        %v3409 = vadd.f32 %v3360, %v3408
        %3410 = vmatmul.bf16.gmra.mxu0 %v1457
        %v3411 = vpop.f32.mrf.mxu0
        %v3412 = vadd.f32 %v3363, %v3411
        %v3413 = vpop.f32.mrf.mxu0
        %v3414 = vadd.f32 %v3365, %v3413
        %3415 = vmatmul.bf16.gmra.mxu0 %v1461
        %v3416 = vpop.f32.mrf.mxu0
        %v3417 = vadd.f32 %v3368, %v3416
        %v3418 = vpop.f32.mrf.mxu0
        %v3419 = vadd.f32 %v3370, %v3418
        %3420 = vmatmul.bf16.gmra.mxu0 %v1465
        %v3421 = vpop.f32.mrf.mxu0
        %v3422 = vadd.f32 %v3373, %v3421
        %v3423 = vpop.f32.mrf.mxu0
        %v3424 = vadd.f32 %v3375, %v3423
        %3425 = vmatmul.bf16.gmra.mxu0 %v1469
        %v3426 = vpop.f32.mrf.mxu0
        %v3427 = vadd.f32 %v3378, %v3426
        %v3428 = vpop.f32.mrf.mxu0
        %v3429 = vadd.f32 %v3380, %v3428
        %3430 = vmatmul.bf16.gmra.mxu0 %v1473
        %v3431 = vpop.f32.mrf.mxu0
        %v3432 = vadd.f32 %v3383, %v3431
        %v3433 = vpop.f32.mrf.mxu0
        %v3434 = vadd.f32 %v3385, %v3433
        %3435 = vmatmul.bf16.gmra.mxu0 %v1477
        %v3436 = vpop.f32.mrf.mxu0
        %v3437 = vadd.f32 %v3388, %v3436
        %v3438 = vpop.f32.mrf.mxu0
        %v3439 = vadd.f32 %v3390, %v3438
        %3440 = vmatmul.bf16.gmra.mxu0 %v1481
        %v3441 = vpop.f32.mrf.mxu0
        %v3442 = vadd.f32 %v3393, %v3441
        %v3443 = vpop.f32.mrf.mxu0
        %v3444 = vadd.f32 %v3395, %v3443
        %3445 = vdwg.mxu0
        %3446 = vmatpush.bf16.msra.mxu0 %v2678
        %3447 = vmatpush.bf16.msra.mxu0 %v2671
        %3448 = vmatpush.bf16.msra.mxu0 %v2664
        %3449 = vmatpush.bf16.msra.mxu0 %v2657
        %3450 = vmatpush.bf16.msra.mxu0 %v2650
        %3451 = vmatpush.bf16.msra.mxu0 %v2643
        %3452 = vmatpush.bf16.msra.mxu0 %v2636
        %3453 = vmatpush.bf16.msra.mxu0 %v2629
        %3454 = vmatmul.bf16.gmra.mxu0 %v1454
        %v3455 = vpop.f32.mrf.mxu0
        %v3456 = vadd.f32 %v3407, %v3455
        %v3457 = vpop.f32.mrf.mxu0
        %v3458 = vadd.f32 %v3409, %v3457
        %3459 = vmatmul.bf16.gmra.mxu0 %v1458
        %v3460 = vpop.f32.mrf.mxu0
        %v3461 = vadd.f32 %v3412, %v3460
        %v3462 = vpop.f32.mrf.mxu0
        %v3463 = vadd.f32 %v3414, %v3462
        %3464 = vmatmul.bf16.gmra.mxu0 %v1462
        %v3465 = vpop.f32.mrf.mxu0
        %v3466 = vadd.f32 %v3417, %v3465
        %v3467 = vpop.f32.mrf.mxu0
        %v3468 = vadd.f32 %v3419, %v3467
        %3469 = vmatmul.bf16.gmra.mxu0 %v1466
        %v3470 = vpop.f32.mrf.mxu0
        %v3471 = vadd.f32 %v3422, %v3470
        %v3472 = vpop.f32.mrf.mxu0
        %v3473 = vadd.f32 %v3424, %v3472
        %3474 = vmatmul.bf16.gmra.mxu0 %v1470
        %v3475 = vpop.f32.mrf.mxu0
        %v3476 = vadd.f32 %v3427, %v3475
        %v3477 = vpop.f32.mrf.mxu0
        %v3478 = vadd.f32 %v3429, %v3477
        %3479 = vmatmul.bf16.gmra.mxu0 %v1474
        %v3480 = vpop.f32.mrf.mxu0
        %v3481 = vadd.f32 %v3432, %v3480
        %v3482 = vpop.f32.mrf.mxu0
        %v3483 = vadd.f32 %v3434, %v3482
        %3484 = vmatmul.bf16.gmra.mxu0 %v1478
        %v3485 = vpop.f32.mrf.mxu0
        %v3486 = vadd.f32 %v3437, %v3485
        %v3487 = vpop.f32.mrf.mxu0
        %v3488 = vadd.f32 %v3439, %v3487
        %3489 = vmatmul.bf16.gmra.mxu0 %v1482
        %v3490 = vpop.f32.mrf.mxu0
        %v3491 = vadd.f32 %v3442, %v3490
        %v3492 = vpop.f32.mrf.mxu0
        %v3493 = vadd.f32 %v3444, %v3492
        %3494 = vdwg.mxu0
        %3495 = vmatpush.bf16.msra.mxu0 %v2511
        %3496 = vmatpush.bf16.msra.mxu0 %v2504
        %3497 = vmatpush.bf16.msra.mxu0 %v2497
        %3498 = vmatpush.bf16.msra.mxu0 %v2490
        %3499 = vmatpush.bf16.msra.mxu0 %v2483
        %3500 = vmatpush.bf16.msra.mxu0 %v2476
        %3501 = vmatpush.bf16.msra.mxu0 %v2469
        %3502 = vmatpush.bf16.msra.mxu0 %v2462
        %3503 = vmatmul.bf16.gmra.mxu0 %v1451
        %v3504 = vpop.f32.mrf.mxu0
        %v3505 = vadd.f32 %v1744, %v3504
        %v3506 = vpop.f32.mrf.mxu0
        %v3507 = vadd.f32 %v1744, %v3506
        %3508 = vmatmul.bf16.gmra.mxu0 %v1455
        %v3509 = vpop.f32.mrf.mxu0
        %v3510 = vadd.f32 %v1744, %v3509
        %v3511 = vpop.f32.mrf.mxu0
        %v3512 = vadd.f32 %v1744, %v3511
        %3513 = vmatmul.bf16.gmra.mxu0 %v1459
        %v3514 = vpop.f32.mrf.mxu0
        %v3515 = vadd.f32 %v1744, %v3514
        %v3516 = vpop.f32.mrf.mxu0
        %v3517 = vadd.f32 %v1744, %v3516
        %3518 = vmatmul.bf16.gmra.mxu0 %v1463
        %v3519 = vpop.f32.mrf.mxu0
        %v3520 = vadd.f32 %v1744, %v3519
        %v3521 = vpop.f32.mrf.mxu0
        %v3522 = vadd.f32 %v1744, %v3521
        %3523 = vmatmul.bf16.gmra.mxu0 %v1467
        %v3524 = vpop.f32.mrf.mxu0
        %v3525 = vadd.f32 %v1744, %v3524
        %v3526 = vpop.f32.mrf.mxu0
        %v3527 = vadd.f32 %v1744, %v3526
        %3528 = vmatmul.bf16.gmra.mxu0 %v1471
        %v3529 = vpop.f32.mrf.mxu0
        %v3530 = vadd.f32 %v1744, %v3529
        %v3531 = vpop.f32.mrf.mxu0
        %v3532 = vadd.f32 %v1744, %v3531
        %3533 = vmatmul.bf16.gmra.mxu0 %v1475
        %v3534 = vpop.f32.mrf.mxu0
        %v3535 = vadd.f32 %v1744, %v3534
        %v3536 = vpop.f32.mrf.mxu0
        %v3537 = vadd.f32 %v1744, %v3536
        %3538 = vmatmul.bf16.gmra.mxu0 %v1479
        %v3539 = vpop.f32.mrf.mxu0
        %v3540 = vadd.f32 %v1744, %v3539
        %v3541 = vpop.f32.mrf.mxu0
        %v3542 = vadd.f32 %v1744, %v3541
        %3543 = vdwg.mxu0
        %3544 = vmatpush.bf16.msra.mxu0 %v2567
        %3545 = vmatpush.bf16.msra.mxu0 %v2560
        %3546 = vmatpush.bf16.msra.mxu0 %v2553
        %3547 = vmatpush.bf16.msra.mxu0 %v2546
        %3548 = vmatpush.bf16.msra.mxu0 %v2539
        %3549 = vmatpush.bf16.msra.mxu0 %v2532
        %3550 = vmatpush.bf16.msra.mxu0 %v2525
        %3551 = vmatpush.bf16.msra.mxu0 %v2518
        %3552 = vmatmul.bf16.gmra.mxu0 %v1452
        %v3553 = vpop.f32.mrf.mxu0
        %v3554 = vadd.f32 %v3505, %v3553
        %v3555 = vpop.f32.mrf.mxu0
        %v3556 = vadd.f32 %v3507, %v3555
        %3557 = vmatmul.bf16.gmra.mxu0 %v1456
        %v3558 = vpop.f32.mrf.mxu0
        %v3559 = vadd.f32 %v3510, %v3558
        %v3560 = vpop.f32.mrf.mxu0
        %v3561 = vadd.f32 %v3512, %v3560
        %3562 = vmatmul.bf16.gmra.mxu0 %v1460
        %v3563 = vpop.f32.mrf.mxu0
        %v3564 = vadd.f32 %v3515, %v3563
        %v3565 = vpop.f32.mrf.mxu0
        %v3566 = vadd.f32 %v3517, %v3565
        %3567 = vmatmul.bf16.gmra.mxu0 %v1464
        %v3568 = vpop.f32.mrf.mxu0
        %v3569 = vadd.f32 %v3520, %v3568
        %v3570 = vpop.f32.mrf.mxu0
        %v3571 = vadd.f32 %v3522, %v3570
        %3572 = vmatmul.bf16.gmra.mxu0 %v1468
        %v3573 = vpop.f32.mrf.mxu0
        %v3574 = vadd.f32 %v3525, %v3573
        %v3575 = vpop.f32.mrf.mxu0
        %v3576 = vadd.f32 %v3527, %v3575
        %3577 = vmatmul.bf16.gmra.mxu0 %v1472
        %v3578 = vpop.f32.mrf.mxu0
        %v3579 = vadd.f32 %v3530, %v3578
        %v3580 = vpop.f32.mrf.mxu0
        %v3581 = vadd.f32 %v3532, %v3580
        %3582 = vmatmul.bf16.gmra.mxu0 %v1476
        %v3583 = vpop.f32.mrf.mxu0
        %v3584 = vadd.f32 %v3535, %v3583
        %v3585 = vpop.f32.mrf.mxu0
        %v3586 = vadd.f32 %v3537, %v3585
        %3587 = vmatmul.bf16.gmra.mxu0 %v1480
        %v3588 = vpop.f32.mrf.mxu0
        %v3589 = vadd.f32 %v3540, %v3588
        %v3590 = vpop.f32.mrf.mxu0
        %v3591 = vadd.f32 %v3542, %v3590
        %3592 = vdwg.mxu0
        %3593 = vmatpush.bf16.msra.mxu0 %v2623
        %3594 = vmatpush.bf16.msra.mxu0 %v2616
        %3595 = vmatpush.bf16.msra.mxu0 %v2609
        %3596 = vmatpush.bf16.msra.mxu0 %v2602
        %3597 = vmatpush.bf16.msra.mxu0 %v2595
        %3598 = vmatpush.bf16.msra.mxu0 %v2588
        %3599 = vmatpush.bf16.msra.mxu0 %v2581
        %3600 = vmatpush.bf16.msra.mxu0 %v2574
        %3601 = vmatmul.bf16.gmra.mxu0 %v1453
        %v3602 = vpop.f32.mrf.mxu0
        %v3603 = vadd.f32 %v3554, %v3602
        %v3604 = vpop.f32.mrf.mxu0
        %v3605 = vadd.f32 %v3556, %v3604
        %3606 = vmatmul.bf16.gmra.mxu0 %v1457
        %v3607 = vpop.f32.mrf.mxu0
        %v3608 = vadd.f32 %v3559, %v3607
        %v3609 = vpop.f32.mrf.mxu0
        %v3610 = vadd.f32 %v3561, %v3609
        %3611 = vmatmul.bf16.gmra.mxu0 %v1461
        %v3612 = vpop.f32.mrf.mxu0
        %v3613 = vadd.f32 %v3564, %v3612
        %v3614 = vpop.f32.mrf.mxu0
        %v3615 = vadd.f32 %v3566, %v3614
        %3616 = vmatmul.bf16.gmra.mxu0 %v1465
        %v3617 = vpop.f32.mrf.mxu0
        %v3618 = vadd.f32 %v3569, %v3617
        %v3619 = vpop.f32.mrf.mxu0
        %v3620 = vadd.f32 %v3571, %v3619
        %3621 = vmatmul.bf16.gmra.mxu0 %v1469
        %v3622 = vpop.f32.mrf.mxu0
        %v3623 = vadd.f32 %v3574, %v3622
        %v3624 = vpop.f32.mrf.mxu0
        %v3625 = vadd.f32 %v3576, %v3624
        %3626 = vmatmul.bf16.gmra.mxu0 %v1473
        %v3627 = vpop.f32.mrf.mxu0
        %v3628 = vadd.f32 %v3579, %v3627
        %v3629 = vpop.f32.mrf.mxu0
        %v3630 = vadd.f32 %v3581, %v3629
        %3631 = vmatmul.bf16.gmra.mxu0 %v1477
        %v3632 = vpop.f32.mrf.mxu0
        %v3633 = vadd.f32 %v3584, %v3632
        %v3634 = vpop.f32.mrf.mxu0
        %v3635 = vadd.f32 %v3586, %v3634
        %3636 = vmatmul.bf16.gmra.mxu0 %v1481
        %v3637 = vpop.f32.mrf.mxu0
        %v3638 = vadd.f32 %v3589, %v3637
        %v3639 = vpop.f32.mrf.mxu0
        %v3640 = vadd.f32 %v3591, %v3639
        %3641 = vdwg.mxu0
        %3642 = vmatpush.bf16.msra.mxu0 %v2679
        %3643 = vmatpush.bf16.msra.mxu0 %v2672
        %3644 = vmatpush.bf16.msra.mxu0 %v2665
        %3645 = vmatpush.bf16.msra.mxu0 %v2658
        %3646 = vmatpush.bf16.msra.mxu0 %v2651
        %3647 = vmatpush.bf16.msra.mxu0 %v2644
        %3648 = vmatpush.bf16.msra.mxu0 %v2637
        %3649 = vmatpush.bf16.msra.mxu0 %v2630
        %3650 = vmatmul.bf16.gmra.mxu0 %v1454
        %v3651 = vpop.f32.mrf.mxu0
        %v3652 = vadd.f32 %v3603, %v3651
        %v3653 = vpop.f32.mrf.mxu0
        %v3654 = vadd.f32 %v3605, %v3653
        %3655 = vmatmul.bf16.gmra.mxu0 %v1458
        %v3656 = vpop.f32.mrf.mxu0
        %v3657 = vadd.f32 %v3608, %v3656
        %v3658 = vpop.f32.mrf.mxu0
        %v3659 = vadd.f32 %v3610, %v3658
        %3660 = vmatmul.bf16.gmra.mxu0 %v1462
        %v3661 = vpop.f32.mrf.mxu0
        %v3662 = vadd.f32 %v3613, %v3661
        %v3663 = vpop.f32.mrf.mxu0
        %v3664 = vadd.f32 %v3615, %v3663
        %3665 = vmatmul.bf16.gmra.mxu0 %v1466
        %v3666 = vpop.f32.mrf.mxu0
        %v3667 = vadd.f32 %v3618, %v3666
        %v3668 = vpop.f32.mrf.mxu0
        %v3669 = vadd.f32 %v3620, %v3668
        %3670 = vmatmul.bf16.gmra.mxu0 %v1470
        %v3671 = vpop.f32.mrf.mxu0
        %v3672 = vadd.f32 %v3623, %v3671
        %v3673 = vpop.f32.mrf.mxu0
        %v3674 = vadd.f32 %v3625, %v3673
        %3675 = vmatmul.bf16.gmra.mxu0 %v1474
        %v3676 = vpop.f32.mrf.mxu0
        %v3677 = vadd.f32 %v3628, %v3676
        %v3678 = vpop.f32.mrf.mxu0
        %v3679 = vadd.f32 %v3630, %v3678
        %3680 = vmatmul.bf16.gmra.mxu0 %v1478
        %v3681 = vpop.f32.mrf.mxu0
        %v3682 = vadd.f32 %v3633, %v3681
        %v3683 = vpop.f32.mrf.mxu0
        %v3684 = vadd.f32 %v3635, %v3683
        %3685 = vmatmul.bf16.gmra.mxu0 %v1482
        %v3686 = vpop.f32.mrf.mxu0
        %v3687 = vadd.f32 %v3638, %v3686
        %v3688 = vpop.f32.mrf.mxu0
        %v3689 = vadd.f32 %v3640, %v3688
        %3690 = vdwg.mxu0
        %3691 = vmatpush.bf16.msra.mxu0 %v2512
        %3692 = vmatpush.bf16.msra.mxu0 %v2505
        %3693 = vmatpush.bf16.msra.mxu0 %v2498
        %3694 = vmatpush.bf16.msra.mxu0 %v2491
        %3695 = vmatpush.bf16.msra.mxu0 %v2484
        %3696 = vmatpush.bf16.msra.mxu0 %v2477
        %3697 = vmatpush.bf16.msra.mxu0 %v2470
        %3698 = vmatpush.bf16.msra.mxu0 %v2463
        %3699 = vmatmul.bf16.gmra.mxu0 %v1451
        %v3700 = vpop.f32.mrf.mxu0
        %v3701 = vadd.f32 %v1745, %v3700
        %v3702 = vpop.f32.mrf.mxu0
        %v3703 = vadd.f32 %v1745, %v3702
        %3704 = vmatmul.bf16.gmra.mxu0 %v1455
        %v3705 = vpop.f32.mrf.mxu0
        %v3706 = vadd.f32 %v1745, %v3705
        %v3707 = vpop.f32.mrf.mxu0
        %v3708 = vadd.f32 %v1745, %v3707
        %3709 = vmatmul.bf16.gmra.mxu0 %v1459
        %v3710 = vpop.f32.mrf.mxu0
        %v3711 = vadd.f32 %v1745, %v3710
        %v3712 = vpop.f32.mrf.mxu0
        %v3713 = vadd.f32 %v1745, %v3712
        %3714 = vmatmul.bf16.gmra.mxu0 %v1463
        %v3715 = vpop.f32.mrf.mxu0
        %v3716 = vadd.f32 %v1745, %v3715
        %v3717 = vpop.f32.mrf.mxu0
        %v3718 = vadd.f32 %v1745, %v3717
        %3719 = vmatmul.bf16.gmra.mxu0 %v1467
        %v3720 = vpop.f32.mrf.mxu0
        %v3721 = vadd.f32 %v1745, %v3720
        %v3722 = vpop.f32.mrf.mxu0
        %v3723 = vadd.f32 %v1745, %v3722
        %3724 = vmatmul.bf16.gmra.mxu0 %v1471
        %v3725 = vpop.f32.mrf.mxu0
        %v3726 = vadd.f32 %v1745, %v3725
        %v3727 = vpop.f32.mrf.mxu0
        %v3728 = vadd.f32 %v1745, %v3727
        %3729 = vmatmul.bf16.gmra.mxu0 %v1475
        %v3730 = vpop.f32.mrf.mxu0
        %v3731 = vadd.f32 %v1745, %v3730
        %v3732 = vpop.f32.mrf.mxu0
        %v3733 = vadd.f32 %v1745, %v3732
        %3734 = vmatmul.bf16.gmra.mxu0 %v1479
        %v3735 = vpop.f32.mrf.mxu0
        %v3736 = vadd.f32 %v1745, %v3735
        %v3737 = vpop.f32.mrf.mxu0
        %v3738 = vadd.f32 %v1745, %v3737
        %3739 = vdwg.mxu0
        %3740 = vmatpush.bf16.msra.mxu0 %v2568
        %3741 = vmatpush.bf16.msra.mxu0 %v2561
        %3742 = vmatpush.bf16.msra.mxu0 %v2554
        %3743 = vmatpush.bf16.msra.mxu0 %v2547
        %3744 = vmatpush.bf16.msra.mxu0 %v2540
        %3745 = vmatpush.bf16.msra.mxu0 %v2533
        %3746 = vmatpush.bf16.msra.mxu0 %v2526
        %3747 = vmatpush.bf16.msra.mxu0 %v2519
        %3748 = vmatmul.bf16.gmra.mxu0 %v1452
        %v3749 = vpop.f32.mrf.mxu0
        %v3750 = vadd.f32 %v3701, %v3749
        %v3751 = vpop.f32.mrf.mxu0
        %v3752 = vadd.f32 %v3703, %v3751
        %3753 = vmatmul.bf16.gmra.mxu0 %v1456
        %v3754 = vpop.f32.mrf.mxu0
        %v3755 = vadd.f32 %v3706, %v3754
        %v3756 = vpop.f32.mrf.mxu0
        %v3757 = vadd.f32 %v3708, %v3756
        %3758 = vmatmul.bf16.gmra.mxu0 %v1460
        %v3759 = vpop.f32.mrf.mxu0
        %v3760 = vadd.f32 %v3711, %v3759
        %v3761 = vpop.f32.mrf.mxu0
        %v3762 = vadd.f32 %v3713, %v3761
        %3763 = vmatmul.bf16.gmra.mxu0 %v1464
        %v3764 = vpop.f32.mrf.mxu0
        %v3765 = vadd.f32 %v3716, %v3764
        %v3766 = vpop.f32.mrf.mxu0
        %v3767 = vadd.f32 %v3718, %v3766
        %3768 = vmatmul.bf16.gmra.mxu0 %v1468
        %v3769 = vpop.f32.mrf.mxu0
        %v3770 = vadd.f32 %v3721, %v3769
        %v3771 = vpop.f32.mrf.mxu0
        %v3772 = vadd.f32 %v3723, %v3771
        %3773 = vmatmul.bf16.gmra.mxu0 %v1472
        %v3774 = vpop.f32.mrf.mxu0
        %v3775 = vadd.f32 %v3726, %v3774
        %v3776 = vpop.f32.mrf.mxu0
        %v3777 = vadd.f32 %v3728, %v3776
        %3778 = vmatmul.bf16.gmra.mxu0 %v1476
        %v3779 = vpop.f32.mrf.mxu0
        %v3780 = vadd.f32 %v3731, %v3779
        %v3781 = vpop.f32.mrf.mxu0
        %v3782 = vadd.f32 %v3733, %v3781
        %3783 = vmatmul.bf16.gmra.mxu0 %v1480
        %v3784 = vpop.f32.mrf.mxu0
        %v3785 = vadd.f32 %v3736, %v3784
        %v3786 = vpop.f32.mrf.mxu0
        %v3787 = vadd.f32 %v3738, %v3786
        %3788 = vdwg.mxu0
        %3789 = vmatpush.bf16.msra.mxu0 %v2624
        %3790 = vmatpush.bf16.msra.mxu0 %v2617
        %3791 = vmatpush.bf16.msra.mxu0 %v2610
        %3792 = vmatpush.bf16.msra.mxu0 %v2603
        %3793 = vmatpush.bf16.msra.mxu0 %v2596
        %3794 = vmatpush.bf16.msra.mxu0 %v2589
        %3795 = vmatpush.bf16.msra.mxu0 %v2582
        %3796 = vmatpush.bf16.msra.mxu0 %v2575
        %3797 = vmatmul.bf16.gmra.mxu0 %v1453
        %v3798 = vpop.f32.mrf.mxu0
        %v3799 = vadd.f32 %v3750, %v3798
        %v3800 = vpop.f32.mrf.mxu0
        %v3801 = vadd.f32 %v3752, %v3800
        %3802 = vmatmul.bf16.gmra.mxu0 %v1457
        %v3803 = vpop.f32.mrf.mxu0
        %v3804 = vadd.f32 %v3755, %v3803
        %v3805 = vpop.f32.mrf.mxu0
        %v3806 = vadd.f32 %v3757, %v3805
        %3807 = vmatmul.bf16.gmra.mxu0 %v1461
        %v3808 = vpop.f32.mrf.mxu0
        %v3809 = vadd.f32 %v3760, %v3808
        %v3810 = vpop.f32.mrf.mxu0
        %v3811 = vadd.f32 %v3762, %v3810
        %3812 = vmatmul.bf16.gmra.mxu0 %v1465
        %v3813 = vpop.f32.mrf.mxu0
        %v3814 = vadd.f32 %v3765, %v3813
        %v3815 = vpop.f32.mrf.mxu0
        %v3816 = vadd.f32 %v3767, %v3815
        %3817 = vmatmul.bf16.gmra.mxu0 %v1469
        %v3818 = vpop.f32.mrf.mxu0
        %v3819 = vadd.f32 %v3770, %v3818
        %v3820 = vpop.f32.mrf.mxu0
        %v3821 = vadd.f32 %v3772, %v3820
        %3822 = vmatmul.bf16.gmra.mxu0 %v1473
        %v3823 = vpop.f32.mrf.mxu0
        %v3824 = vadd.f32 %v3775, %v3823
        %v3825 = vpop.f32.mrf.mxu0
        %v3826 = vadd.f32 %v3777, %v3825
        %3827 = vmatmul.bf16.gmra.mxu0 %v1477
        %v3828 = vpop.f32.mrf.mxu0
        %v3829 = vadd.f32 %v3780, %v3828
        %v3830 = vpop.f32.mrf.mxu0
        %v3831 = vadd.f32 %v3782, %v3830
        %3832 = vmatmul.bf16.gmra.mxu0 %v1481
        %v3833 = vpop.f32.mrf.mxu0
        %v3834 = vadd.f32 %v3785, %v3833
        %v3835 = vpop.f32.mrf.mxu0
        %v3836 = vadd.f32 %v3787, %v3835
        %3837 = vdwg.mxu0
        %3838 = vmatpush.bf16.msra.mxu0 %v2680
        %3839 = vmatpush.bf16.msra.mxu0 %v2673
        %3840 = vmatpush.bf16.msra.mxu0 %v2666
        %3841 = vmatpush.bf16.msra.mxu0 %v2659
        %3842 = vmatpush.bf16.msra.mxu0 %v2652
        %3843 = vmatpush.bf16.msra.mxu0 %v2645
        %3844 = vmatpush.bf16.msra.mxu0 %v2638
        %3845 = vmatpush.bf16.msra.mxu0 %v2631
        %3846 = vmatmul.bf16.gmra.mxu0 %v1454
        %v3847 = vpop.f32.mrf.mxu0
        %v3848 = vadd.f32 %v3799, %v3847
        %v3849 = vpop.f32.mrf.mxu0
        %v3850 = vadd.f32 %v3801, %v3849
        %3851 = vmatmul.bf16.gmra.mxu0 %v1458
        %v3852 = vpop.f32.mrf.mxu0
        %v3853 = vadd.f32 %v3804, %v3852
        %v3854 = vpop.f32.mrf.mxu0
        %v3855 = vadd.f32 %v3806, %v3854
        %3856 = vmatmul.bf16.gmra.mxu0 %v1462
        %v3857 = vpop.f32.mrf.mxu0
        %v3858 = vadd.f32 %v3809, %v3857
        %v3859 = vpop.f32.mrf.mxu0
        %v3860 = vadd.f32 %v3811, %v3859
        %3861 = vmatmul.bf16.gmra.mxu0 %v1466
        %v3862 = vpop.f32.mrf.mxu0
        %v3863 = vadd.f32 %v3814, %v3862
        %v3864 = vpop.f32.mrf.mxu0
        %v3865 = vadd.f32 %v3816, %v3864
        %3866 = vmatmul.bf16.gmra.mxu0 %v1470
        %v3867 = vpop.f32.mrf.mxu0
        %v3868 = vadd.f32 %v3819, %v3867
        %v3869 = vpop.f32.mrf.mxu0
        %v3870 = vadd.f32 %v3821, %v3869
        %3871 = vmatmul.bf16.gmra.mxu0 %v1474
        %v3872 = vpop.f32.mrf.mxu0
        %v3873 = vadd.f32 %v3824, %v3872
        %v3874 = vpop.f32.mrf.mxu0
        %v3875 = vadd.f32 %v3826, %v3874
        %3876 = vmatmul.bf16.gmra.mxu0 %v1478
        %v3877 = vpop.f32.mrf.mxu0
        %v3878 = vadd.f32 %v3829, %v3877
        %v3879 = vpop.f32.mrf.mxu0
        %v3880 = vadd.f32 %v3831, %v3879
        %3881 = vmatmul.bf16.gmra.mxu0 %v1482
        %v3882 = vpop.f32.mrf.mxu0
        %v3883 = vadd.f32 %v3834, %v3882
        %v3884 = vpop.f32.mrf.mxu0
        %v3885 = vadd.f32 %v3836, %v3884
        %3886 = vdwg.mxu0
        %3887 = vmatpush.bf16.msra.mxu0 %v2513
        %3888 = vmatpush.bf16.msra.mxu0 %v2506
        %3889 = vmatpush.bf16.msra.mxu0 %v2499
        %3890 = vmatpush.bf16.msra.mxu0 %v2492
        %3891 = vmatpush.bf16.msra.mxu0 %v2485
        %3892 = vmatpush.bf16.msra.mxu0 %v2478
        %3893 = vmatpush.bf16.msra.mxu0 %v2471
        %3894 = vmatpush.bf16.msra.mxu0 %v2464
        %3895 = vmatmul.bf16.gmra.mxu0 %v1451
        %v3896 = vpop.f32.mrf.mxu0
        %v3897 = vadd.f32 %v1746, %v3896
        %v3898 = vpop.f32.mrf.mxu0
        %v3899 = vadd.f32 %v1746, %v3898
        %3900 = vmatmul.bf16.gmra.mxu0 %v1455
        %v3901 = vpop.f32.mrf.mxu0
        %v3902 = vadd.f32 %v1746, %v3901
        %v3903 = vpop.f32.mrf.mxu0
        %v3904 = vadd.f32 %v1746, %v3903
        %3905 = vmatmul.bf16.gmra.mxu0 %v1459
        %v3906 = vpop.f32.mrf.mxu0
        %v3907 = vadd.f32 %v1746, %v3906
        %v3908 = vpop.f32.mrf.mxu0
        %v3909 = vadd.f32 %v1746, %v3908
        %3910 = vmatmul.bf16.gmra.mxu0 %v1463
        %v3911 = vpop.f32.mrf.mxu0
        %v3912 = vadd.f32 %v1746, %v3911
        %v3913 = vpop.f32.mrf.mxu0
        %v3914 = vadd.f32 %v1746, %v3913
        %3915 = vmatmul.bf16.gmra.mxu0 %v1467
        %v3916 = vpop.f32.mrf.mxu0
        %v3917 = vadd.f32 %v1746, %v3916
        %v3918 = vpop.f32.mrf.mxu0
        %v3919 = vadd.f32 %v1746, %v3918
        %3920 = vmatmul.bf16.gmra.mxu0 %v1471
        %v3921 = vpop.f32.mrf.mxu0
        %v3922 = vadd.f32 %v1746, %v3921
        %v3923 = vpop.f32.mrf.mxu0
        %v3924 = vadd.f32 %v1746, %v3923
        %3925 = vmatmul.bf16.gmra.mxu0 %v1475
        %v3926 = vpop.f32.mrf.mxu0
        %v3927 = vadd.f32 %v1746, %v3926
        %v3928 = vpop.f32.mrf.mxu0
        %v3929 = vadd.f32 %v1746, %v3928
        %3930 = vmatmul.bf16.gmra.mxu0 %v1479
        %v3931 = vpop.f32.mrf.mxu0
        %v3932 = vadd.f32 %v1746, %v3931
        %v3933 = vpop.f32.mrf.mxu0
        %v3934 = vadd.f32 %v1746, %v3933
        %3935 = vdwg.mxu0
        %3936 = vmatpush.bf16.msra.mxu0 %v2569
        %3937 = vmatpush.bf16.msra.mxu0 %v2562
        %3938 = vmatpush.bf16.msra.mxu0 %v2555
        %3939 = vmatpush.bf16.msra.mxu0 %v2548
        %3940 = vmatpush.bf16.msra.mxu0 %v2541
        %3941 = vmatpush.bf16.msra.mxu0 %v2534
        %3942 = vmatpush.bf16.msra.mxu0 %v2527
        %3943 = vmatpush.bf16.msra.mxu0 %v2520
        %3944 = vmatmul.bf16.gmra.mxu0 %v1452
        %v3945 = vpop.f32.mrf.mxu0
        %v3946 = vadd.f32 %v3897, %v3945
        %v3947 = vpop.f32.mrf.mxu0
        %v3948 = vadd.f32 %v3899, %v3947
        %3949 = vmatmul.bf16.gmra.mxu0 %v1456
        %v3950 = vpop.f32.mrf.mxu0
        %v3951 = vadd.f32 %v3902, %v3950
        %v3952 = vpop.f32.mrf.mxu0
        %v3953 = vadd.f32 %v3904, %v3952
        %3954 = vmatmul.bf16.gmra.mxu0 %v1460
        %v3955 = vpop.f32.mrf.mxu0
        %v3956 = vadd.f32 %v3907, %v3955
        %v3957 = vpop.f32.mrf.mxu0
        %v3958 = vadd.f32 %v3909, %v3957
        %3959 = vmatmul.bf16.gmra.mxu0 %v1464
        %v3960 = vpop.f32.mrf.mxu0
        %v3961 = vadd.f32 %v3912, %v3960
        %v3962 = vpop.f32.mrf.mxu0
        %v3963 = vadd.f32 %v3914, %v3962
        %3964 = vmatmul.bf16.gmra.mxu0 %v1468
        %v3965 = vpop.f32.mrf.mxu0
        %v3966 = vadd.f32 %v3917, %v3965
        %v3967 = vpop.f32.mrf.mxu0
        %v3968 = vadd.f32 %v3919, %v3967
        %3969 = vmatmul.bf16.gmra.mxu0 %v1472
        %v3970 = vpop.f32.mrf.mxu0
        %v3971 = vadd.f32 %v3922, %v3970
        %v3972 = vpop.f32.mrf.mxu0
        %v3973 = vadd.f32 %v3924, %v3972
        %3974 = vmatmul.bf16.gmra.mxu0 %v1476
        %v3975 = vpop.f32.mrf.mxu0
        %v3976 = vadd.f32 %v3927, %v3975
        %v3977 = vpop.f32.mrf.mxu0
        %v3978 = vadd.f32 %v3929, %v3977
        %3979 = vmatmul.bf16.gmra.mxu0 %v1480
        %v3980 = vpop.f32.mrf.mxu0
        %v3981 = vadd.f32 %v3932, %v3980
        %v3982 = vpop.f32.mrf.mxu0
        %v3983 = vadd.f32 %v3934, %v3982
        %3984 = vdwg.mxu0
        %3985 = vmatpush.bf16.msra.mxu0 %v2625
        %3986 = vmatpush.bf16.msra.mxu0 %v2618
        %3987 = vmatpush.bf16.msra.mxu0 %v2611
        %3988 = vmatpush.bf16.msra.mxu0 %v2604
        %3989 = vmatpush.bf16.msra.mxu0 %v2597
        %3990 = vmatpush.bf16.msra.mxu0 %v2590
        %3991 = vmatpush.bf16.msra.mxu0 %v2583
        %3992 = vmatpush.bf16.msra.mxu0 %v2576
        %3993 = vmatmul.bf16.gmra.mxu0 %v1453
        %v3994 = vpop.f32.mrf.mxu0
        %v3995 = vadd.f32 %v3946, %v3994
        %v3996 = vpop.f32.mrf.mxu0
        %v3997 = vadd.f32 %v3948, %v3996
        %3998 = vmatmul.bf16.gmra.mxu0 %v1457
        %v3999 = vpop.f32.mrf.mxu0
        %v4000 = vadd.f32 %v3951, %v3999
        %v4001 = vpop.f32.mrf.mxu0
        %v4002 = vadd.f32 %v3953, %v4001
        %4003 = vmatmul.bf16.gmra.mxu0 %v1461
        %v4004 = vpop.f32.mrf.mxu0
        %v4005 = vadd.f32 %v3956, %v4004
        %v4006 = vpop.f32.mrf.mxu0
        %v4007 = vadd.f32 %v3958, %v4006
        %4008 = vmatmul.bf16.gmra.mxu0 %v1465
        %v4009 = vpop.f32.mrf.mxu0
        %v4010 = vadd.f32 %v3961, %v4009
        %v4011 = vpop.f32.mrf.mxu0
        %v4012 = vadd.f32 %v3963, %v4011
        %4013 = vmatmul.bf16.gmra.mxu0 %v1469
        %v4014 = vpop.f32.mrf.mxu0
        %v4015 = vadd.f32 %v3966, %v4014
        %v4016 = vpop.f32.mrf.mxu0
        %v4017 = vadd.f32 %v3968, %v4016
        %4018 = vmatmul.bf16.gmra.mxu0 %v1473
        %v4019 = vpop.f32.mrf.mxu0
        %v4020 = vadd.f32 %v3971, %v4019
        %v4021 = vpop.f32.mrf.mxu0
        %v4022 = vadd.f32 %v3973, %v4021
        %4023 = vmatmul.bf16.gmra.mxu0 %v1477
        %v4024 = vpop.f32.mrf.mxu0
        %v4025 = vadd.f32 %v3976, %v4024
        %v4026 = vpop.f32.mrf.mxu0
        %v4027 = vadd.f32 %v3978, %v4026
        %4028 = vmatmul.bf16.gmra.mxu0 %v1481
        %v4029 = vpop.f32.mrf.mxu0
        %v4030 = vadd.f32 %v3981, %v4029
        %v4031 = vpop.f32.mrf.mxu0
        %v4032 = vadd.f32 %v3983, %v4031
        %4033 = vdwg.mxu0
        %4034 = vmatpush.bf16.msra.mxu0 %v2681
        %4035 = vmatpush.bf16.msra.mxu0 %v2674
        %4036 = vmatpush.bf16.msra.mxu0 %v2667
        %4037 = vmatpush.bf16.msra.mxu0 %v2660
        %4038 = vmatpush.bf16.msra.mxu0 %v2653
        %4039 = vmatpush.bf16.msra.mxu0 %v2646
        %4040 = vmatpush.bf16.msra.mxu0 %v2639
        %4041 = vmatpush.bf16.msra.mxu0 %v2632
        %4042 = vmatmul.bf16.gmra.mxu0 %v1454
        %v4043 = vpop.f32.mrf.mxu0
        %v4044 = vadd.f32 %v3995, %v4043
        %v4045 = vpop.f32.mrf.mxu0
        %v4046 = vadd.f32 %v3997, %v4045
        %4047 = vmatmul.bf16.gmra.mxu0 %v1458
        %v4048 = vpop.f32.mrf.mxu0
        %v4049 = vadd.f32 %v4000, %v4048
        %v4050 = vpop.f32.mrf.mxu0
        %v4051 = vadd.f32 %v4002, %v4050
        %4052 = vmatmul.bf16.gmra.mxu0 %v1462
        %v4053 = vpop.f32.mrf.mxu0
        %v4054 = vadd.f32 %v4005, %v4053
        %v4055 = vpop.f32.mrf.mxu0
        %v4056 = vadd.f32 %v4007, %v4055
        %4057 = vmatmul.bf16.gmra.mxu0 %v1466
        %v4058 = vpop.f32.mrf.mxu0
        %v4059 = vadd.f32 %v4010, %v4058
        %v4060 = vpop.f32.mrf.mxu0
        %v4061 = vadd.f32 %v4012, %v4060
        %4062 = vmatmul.bf16.gmra.mxu0 %v1470
        %v4063 = vpop.f32.mrf.mxu0
        %v4064 = vadd.f32 %v4015, %v4063
        %v4065 = vpop.f32.mrf.mxu0
        %v4066 = vadd.f32 %v4017, %v4065
        %4067 = vmatmul.bf16.gmra.mxu0 %v1474
        %v4068 = vpop.f32.mrf.mxu0
        %v4069 = vadd.f32 %v4020, %v4068
        %v4070 = vpop.f32.mrf.mxu0
        %v4071 = vadd.f32 %v4022, %v4070
        %4072 = vmatmul.bf16.gmra.mxu0 %v1478
        %v4073 = vpop.f32.mrf.mxu0
        %v4074 = vadd.f32 %v4025, %v4073
        %v4075 = vpop.f32.mrf.mxu0
        %v4076 = vadd.f32 %v4027, %v4075
        %4077 = vmatmul.bf16.gmra.mxu0 %v1482
        %v4078 = vpop.f32.mrf.mxu0
        %v4079 = vadd.f32 %v4030, %v4078
        %v4080 = vpop.f32.mrf.mxu0
        %v4081 = vadd.f32 %v4032, %v4080
        %4082 = vdwg.mxu0
        %4083 = vmatpush.bf16.msra.mxu0 %v2514
        %4084 = vmatpush.bf16.msra.mxu0 %v2507
        %4085 = vmatpush.bf16.msra.mxu0 %v2500
        %4086 = vmatpush.bf16.msra.mxu0 %v2493
        %4087 = vmatpush.bf16.msra.mxu0 %v2486
        %4088 = vmatpush.bf16.msra.mxu0 %v2479
        %4089 = vmatpush.bf16.msra.mxu0 %v2472
        %4090 = vmatpush.bf16.msra.mxu0 %v2465
        %4091 = vmatmul.bf16.gmra.mxu0 %v1451
        %v4092 = vpop.f32.mrf.mxu0
        %v4093 = vadd.f32 %v1747, %v4092
        %v4094 = vpop.f32.mrf.mxu0
        %v4095 = vadd.f32 %v1747, %v4094
        %4096 = vmatmul.bf16.gmra.mxu0 %v1455
        %v4097 = vpop.f32.mrf.mxu0
        %v4098 = vadd.f32 %v1747, %v4097
        %v4099 = vpop.f32.mrf.mxu0
        %v4100 = vadd.f32 %v1747, %v4099
        %4101 = vmatmul.bf16.gmra.mxu0 %v1459
        %v4102 = vpop.f32.mrf.mxu0
        %v4103 = vadd.f32 %v1747, %v4102
        %v4104 = vpop.f32.mrf.mxu0
        %v4105 = vadd.f32 %v1747, %v4104
        %4106 = vmatmul.bf16.gmra.mxu0 %v1463
        %v4107 = vpop.f32.mrf.mxu0
        %v4108 = vadd.f32 %v1747, %v4107
        %v4109 = vpop.f32.mrf.mxu0
        %v4110 = vadd.f32 %v1747, %v4109
        %4111 = vmatmul.bf16.gmra.mxu0 %v1467
        %v4112 = vpop.f32.mrf.mxu0
        %v4113 = vadd.f32 %v1747, %v4112
        %v4114 = vpop.f32.mrf.mxu0
        %v4115 = vadd.f32 %v1747, %v4114
        %4116 = vmatmul.bf16.gmra.mxu0 %v1471
        %v4117 = vpop.f32.mrf.mxu0
        %v4118 = vadd.f32 %v1747, %v4117
        %v4119 = vpop.f32.mrf.mxu0
        %v4120 = vadd.f32 %v1747, %v4119
        %4121 = vmatmul.bf16.gmra.mxu0 %v1475
        %v4122 = vpop.f32.mrf.mxu0
        %v4123 = vadd.f32 %v1747, %v4122
        %v4124 = vpop.f32.mrf.mxu0
        %v4125 = vadd.f32 %v1747, %v4124
        %4126 = vmatmul.bf16.gmra.mxu0 %v1479
        %v4127 = vpop.f32.mrf.mxu0
        %v4128 = vadd.f32 %v1747, %v4127
        %v4129 = vpop.f32.mrf.mxu0
        %v4130 = vadd.f32 %v1747, %v4129
        %4131 = vdwg.mxu0
        %4132 = vmatpush.bf16.msra.mxu0 %v2570
        %4133 = vmatpush.bf16.msra.mxu0 %v2563
        %4134 = vmatpush.bf16.msra.mxu0 %v2556
        %4135 = vmatpush.bf16.msra.mxu0 %v2549
        %4136 = vmatpush.bf16.msra.mxu0 %v2542
        %4137 = vmatpush.bf16.msra.mxu0 %v2535
        %4138 = vmatpush.bf16.msra.mxu0 %v2528
        %4139 = vmatpush.bf16.msra.mxu0 %v2521
        %4140 = vmatmul.bf16.gmra.mxu0 %v1452
        %v4141 = vpop.f32.mrf.mxu0
        %v4142 = vadd.f32 %v4093, %v4141
        %v4143 = vpop.f32.mrf.mxu0
        %v4144 = vadd.f32 %v4095, %v4143
        %4145 = vmatmul.bf16.gmra.mxu0 %v1456
        %v4146 = vpop.f32.mrf.mxu0
        %v4147 = vadd.f32 %v4098, %v4146
        %v4148 = vpop.f32.mrf.mxu0
        %v4149 = vadd.f32 %v4100, %v4148
        %4150 = vmatmul.bf16.gmra.mxu0 %v1460
        %v4151 = vpop.f32.mrf.mxu0
        %v4152 = vadd.f32 %v4103, %v4151
        %v4153 = vpop.f32.mrf.mxu0
        %v4154 = vadd.f32 %v4105, %v4153
        %4155 = vmatmul.bf16.gmra.mxu0 %v1464
        %v4156 = vpop.f32.mrf.mxu0
        %v4157 = vadd.f32 %v4108, %v4156
        %v4158 = vpop.f32.mrf.mxu0
        %v4159 = vadd.f32 %v4110, %v4158
        %4160 = vmatmul.bf16.gmra.mxu0 %v1468
        %v4161 = vpop.f32.mrf.mxu0
        %v4162 = vadd.f32 %v4113, %v4161
        %v4163 = vpop.f32.mrf.mxu0
        %v4164 = vadd.f32 %v4115, %v4163
        %4165 = vmatmul.bf16.gmra.mxu0 %v1472
        %v4166 = vpop.f32.mrf.mxu0
        %v4167 = vadd.f32 %v4118, %v4166
        %v4168 = vpop.f32.mrf.mxu0
        %v4169 = vadd.f32 %v4120, %v4168
        %4170 = vmatmul.bf16.gmra.mxu0 %v1476
        %v4171 = vpop.f32.mrf.mxu0
        %v4172 = vadd.f32 %v4123, %v4171
        %v4173 = vpop.f32.mrf.mxu0
        %v4174 = vadd.f32 %v4125, %v4173
        %4175 = vmatmul.bf16.gmra.mxu0 %v1480
        %v4176 = vpop.f32.mrf.mxu0
        %v4177 = vadd.f32 %v4128, %v4176
        %v4178 = vpop.f32.mrf.mxu0
        %v4179 = vadd.f32 %v4130, %v4178
        %4180 = vdwg.mxu0
        %4181 = vmatpush.bf16.msra.mxu0 %v2626
        %4182 = vmatpush.bf16.msra.mxu0 %v2619
        %4183 = vmatpush.bf16.msra.mxu0 %v2612
        %4184 = vmatpush.bf16.msra.mxu0 %v2605
        %4185 = vmatpush.bf16.msra.mxu0 %v2598
        %4186 = vmatpush.bf16.msra.mxu0 %v2591
        %4187 = vmatpush.bf16.msra.mxu0 %v2584
        %4188 = vmatpush.bf16.msra.mxu0 %v2577
        %4189 = vmatmul.bf16.gmra.mxu0 %v1453
        %v4190 = vpop.f32.mrf.mxu0
        %v4191 = vadd.f32 %v4142, %v4190
        %v4192 = vpop.f32.mrf.mxu0
        %v4193 = vadd.f32 %v4144, %v4192
        %4194 = vmatmul.bf16.gmra.mxu0 %v1457
        %v4195 = vpop.f32.mrf.mxu0
        %v4196 = vadd.f32 %v4147, %v4195
        %v4197 = vpop.f32.mrf.mxu0
        %v4198 = vadd.f32 %v4149, %v4197
        %4199 = vmatmul.bf16.gmra.mxu0 %v1461
        %v4200 = vpop.f32.mrf.mxu0
        %v4201 = vadd.f32 %v4152, %v4200
        %v4202 = vpop.f32.mrf.mxu0
        %v4203 = vadd.f32 %v4154, %v4202
        %4204 = vmatmul.bf16.gmra.mxu0 %v1465
        %v4205 = vpop.f32.mrf.mxu0
        %v4206 = vadd.f32 %v4157, %v4205
        %v4207 = vpop.f32.mrf.mxu0
        %v4208 = vadd.f32 %v4159, %v4207
        %4209 = vmatmul.bf16.gmra.mxu0 %v1469
        %v4210 = vpop.f32.mrf.mxu0
        %v4211 = vadd.f32 %v4162, %v4210
        %v4212 = vpop.f32.mrf.mxu0
        %v4213 = vadd.f32 %v4164, %v4212
        %4214 = vmatmul.bf16.gmra.mxu0 %v1473
        %v4215 = vpop.f32.mrf.mxu0
        %v4216 = vadd.f32 %v4167, %v4215
        %v4217 = vpop.f32.mrf.mxu0
        %v4218 = vadd.f32 %v4169, %v4217
        %4219 = vmatmul.bf16.gmra.mxu0 %v1477
        %v4220 = vpop.f32.mrf.mxu0
        %v4221 = vadd.f32 %v4172, %v4220
        %v4222 = vpop.f32.mrf.mxu0
        %v4223 = vadd.f32 %v4174, %v4222
        %4224 = vmatmul.bf16.gmra.mxu0 %v1481
        %v4225 = vpop.f32.mrf.mxu0
        %v4226 = vadd.f32 %v4177, %v4225
        %v4227 = vpop.f32.mrf.mxu0
        %v4228 = vadd.f32 %v4179, %v4227
        %4229 = vdwg.mxu0
        %4230 = vmatpush.bf16.msra.mxu0 %v2682
        %4231 = vmatpush.bf16.msra.mxu0 %v2675
        %4232 = vmatpush.bf16.msra.mxu0 %v2668
        %4233 = vmatpush.bf16.msra.mxu0 %v2661
        %4234 = vmatpush.bf16.msra.mxu0 %v2654
        %4235 = vmatpush.bf16.msra.mxu0 %v2647
        %4236 = vmatpush.bf16.msra.mxu0 %v2640
        %4237 = vmatpush.bf16.msra.mxu0 %v2633
        %4238 = vmatmul.bf16.gmra.mxu0 %v1454
        %v4239 = vpop.f32.mrf.mxu0
        %v4240 = vadd.f32 %v4191, %v4239
        %v4241 = vpop.f32.mrf.mxu0
        %v4242 = vadd.f32 %v4193, %v4241
        %4243 = vmatmul.bf16.gmra.mxu0 %v1458
        %v4244 = vpop.f32.mrf.mxu0
        %v4245 = vadd.f32 %v4196, %v4244
        %v4246 = vpop.f32.mrf.mxu0
        %v4247 = vadd.f32 %v4198, %v4246
        %4248 = vmatmul.bf16.gmra.mxu0 %v1462
        %v4249 = vpop.f32.mrf.mxu0
        %v4250 = vadd.f32 %v4201, %v4249
        %v4251 = vpop.f32.mrf.mxu0
        %v4252 = vadd.f32 %v4203, %v4251
        %4253 = vmatmul.bf16.gmra.mxu0 %v1466
        %v4254 = vpop.f32.mrf.mxu0
        %v4255 = vadd.f32 %v4206, %v4254
        %v4256 = vpop.f32.mrf.mxu0
        %v4257 = vadd.f32 %v4208, %v4256
        %4258 = vmatmul.bf16.gmra.mxu0 %v1470
        %v4259 = vpop.f32.mrf.mxu0
        %v4260 = vadd.f32 %v4211, %v4259
        %v4261 = vpop.f32.mrf.mxu0
        %v4262 = vadd.f32 %v4213, %v4261
        %4263 = vmatmul.bf16.gmra.mxu0 %v1474
        %v4264 = vpop.f32.mrf.mxu0
        %v4265 = vadd.f32 %v4216, %v4264
        %v4266 = vpop.f32.mrf.mxu0
        %v4267 = vadd.f32 %v4218, %v4266
        %4268 = vmatmul.bf16.gmra.mxu0 %v1478
        %v4269 = vpop.f32.mrf.mxu0
        %v4270 = vadd.f32 %v4221, %v4269
        %v4271 = vpop.f32.mrf.mxu0
        %v4272 = vadd.f32 %v4223, %v4271
        %4273 = vmatmul.bf16.gmra.mxu0 %v1482
        %v4274 = vpop.f32.mrf.mxu0
        %v4275 = vadd.f32 %v4226, %v4274
        %v4276 = vpop.f32.mrf.mxu0
        %v4277 = vadd.f32 %v4228, %v4276
        %4278 = vdwg.mxu0
        %v4279 = vtanh.pop %v3064
        %v4280 = vtanh.pop %v3260
        %v4281 = vtanh.pop %v3456
        %v4282 = vtanh.pop %v3652
        %v4283 = vtanh.pop %v3848
        %v4284 = vtanh.pop %v4044
        %v4285 = vtanh.pop %v4240
        %v4286 = vtanh.pop %v3066
        %v4287 = vtanh.pop %v3262
        %v4288 = vtanh.pop %v3458
        %v4289 = vtanh.pop %v3654
        %v4290 = vtanh.pop %v3850
        %v4291 = vtanh.pop %v4046
        %v4292 = vtanh.pop %v4242
        %v4293 = vtanh.pop %v3069
        %v4294 = vtanh.pop %v3265
        %v4295 = vtanh.pop %v3461
        %v4296 = vtanh.pop %v3657
        %v4297 = vtanh.pop %v3853
        %v4298 = vtanh.pop %v4049
        %v4299 = vtanh.pop %v4245
        %v4300 = vtanh.pop %v3071
        %v4301 = vtanh.pop %v3267
        %v4302 = vtanh.pop %v3463
        %v4303 = vtanh.pop %v3659
        %v4304 = vtanh.pop %v3855
        %v4305 = vtanh.pop %v4051
        %v4306 = vtanh.pop %v4247
        %v4307 = vtanh.pop %v3074
        %v4308 = vtanh.pop %v3270
        %v4309 = vtanh.pop %v3466
        %v4310 = vtanh.pop %v3662
        %v4311 = vtanh.pop %v3858
        %v4312 = vtanh.pop %v4054
        %v4313 = vtanh.pop %v4250
        %v4314 = vtanh.pop %v3076
        %v4315 = vtanh.pop %v3272
        %v4316 = vtanh.pop %v3468
        %v4317 = vtanh.pop %v3664
        %v4318 = vtanh.pop %v3860
        %v4319 = vtanh.pop %v4056
        %v4320 = vtanh.pop %v4252
        %v4321 = vtanh.pop %v3079
        %v4322 = vtanh.pop %v3275
        %v4323 = vtanh.pop %v3471
        %v4324 = vtanh.pop %v3667
        %v4325 = vtanh.pop %v3863
        %v4326 = vtanh.pop %v4059
        %v4327 = vtanh.pop %v4255
        %v4328 = vtanh.pop %v3081
        %v4329 = vtanh.pop %v3277
        %v4330 = vtanh.pop %v3473
        %v4331 = vtanh.pop %v3669
        %v4332 = vtanh.pop %v3865
        %v4333 = vtanh.pop %v4061
        %v4334 = vtanh.pop %v4257
        %v4335 = vtanh.pop %v3084
        %v4336 = vtanh.pop %v3280
        %v4337 = vtanh.pop %v3476
        %v4338 = vtanh.pop %v3672
        %v4339 = vtanh.pop %v3868
        %v4340 = vtanh.pop %v4064
        %v4341 = vtanh.pop %v4260
        %v4342 = vtanh.pop %v3086
        %v4343 = vtanh.pop %v3282
        %v4344 = vtanh.pop %v3478
        %v4345 = vtanh.pop %v3674
        %v4346 = vtanh.pop %v3870
        %v4347 = vtanh.pop %v4066
        %v4348 = vtanh.pop %v4262
        %v4349 = vtanh.pop %v3089
        %v4350 = vtanh.pop %v3285
        %v4351 = vtanh.pop %v3481
        %v4352 = vtanh.pop %v3677
        %v4353 = vtanh.pop %v3873
        %v4354 = vtanh.pop %v4069
        %v4355 = vtanh.pop %v4265
        %v4356 = vtanh.pop %v3091
        %v4357 = vtanh.pop %v3287
        %v4358 = vtanh.pop %v3483
        %v4359 = vtanh.pop %v3679
        %v4360 = vtanh.pop %v3875
        %v4361 = vtanh.pop %v4071
        %v4362 = vtanh.pop %v4267
        %v4363 = vtanh.pop %v3094
        %v4364 = vtanh.pop %v3290
        %v4365 = vtanh.pop %v3486
        %v4366 = vtanh.pop %v3682
        %v4367 = vtanh.pop %v3878
        %v4368 = vtanh.pop %v4074
        %v4369 = vtanh.pop %v4270
        %v4370 = vtanh.pop %v3096
        %v4371 = vtanh.pop %v3292
        %v4372 = vtanh.pop %v3488
        %v4373 = vtanh.pop %v3684
        %v4374 = vtanh.pop %v3880
        %v4375 = vtanh.pop %v4076
        %v4376 = vtanh.pop %v4272
        %v4377 = vtanh.pop %v3099
        %v4378 = vtanh.pop %v3295
        %v4379 = vtanh.pop %v3491
        %v4380 = vtanh.pop %v3687
        %v4381 = vtanh.pop %v3883
        %v4382 = vtanh.pop %v4079
        %v4383 = vtanh.pop %v4275
        %v4384 = vtanh.pop %v3101
        %v4385 = vtanh.pop %v3297
        %v4386 = vtanh.pop %v3493
        %v4387 = vtanh.pop %v3689
        %v4388 = vtanh.pop %v3885
        %v4389 = vtanh.pop %v4081
        %v4390 = vtanh.pop %v4277
        %4391 = vst [vmem:[%s306] sm:$0xff] %v4279
        %4392 = vst [vmem:[%s306 + $0x8] sm:$0xff] %v4280
        %4393 = vst [vmem:[%s306 + $0x10] sm:$0xff] %v4281
        %4394 = vst [vmem:[%s306 + $0x18] sm:$0xff] %v4282
        %4395 = vst [vmem:[%s306 + $0x20] sm:$0xff] %v4283
        %4396 = vst [vmem:[%s306 + $0x28] sm:$0xff] %v4284
        %4397 = vst [vmem:[%s306 + $0x30] sm:$0xff] %v4285
        %4398 = vst [vmem:[%s306 + $0x38] sm:$0xff] %v4286
        %4399 = vst [vmem:[%s306 + $0x40] sm:$0xff] %v4287
        %4400 = vst [vmem:[%s306 + $0x48] sm:$0xff] %v4288
        %4401 = vst [vmem:[%s306 + $0x50] sm:$0xff] %v4289
        %4402 = vst [vmem:[%s306 + $0x58] sm:$0xff] %v4290
        %4403 = vst [vmem:[%s306 + $0x60] sm:$0xff] %v4291
        %4404 = vst [vmem:[%s306 + $0x68] sm:$0xff] %v4292
        %4405 = vst [vmem:[%s306 + $0x70] sm:$0xff] %v4293
        %4406 = vst [vmem:[%s306 + $0x78] sm:$0xff] %v4294
        %4407 = vst [vmem:[%s306 + $0x80] sm:$0xff] %v4295
        %4408 = vst [vmem:[%s306 + $0x88] sm:$0xff] %v4296
        %4409 = vst [vmem:[%s306 + $0x90] sm:$0xff] %v4297
        %4410 = vst [vmem:[%s306 + $0x98] sm:$0xff] %v4298
        %4411 = vst [vmem:[%s306 + $0xa0] sm:$0xff] %v4299
        %4412 = vst [vmem:[%s306 + $0xa8] sm:$0xff] %v4300
        %4413 = vst [vmem:[%s306 + $0xb0] sm:$0xff] %v4301
        %4414 = vst [vmem:[%s306 + $0xb8] sm:$0xff] %v4302
        %4415 = vst [vmem:[%s306 + $0xc0] sm:$0xff] %v4303
        %4416 = vst [vmem:[%s306 + $0xc8] sm:$0xff] %v4304
        %4417 = vst [vmem:[%s306 + $0xd0] sm:$0xff] %v4305
        %4418 = vst [vmem:[%s306 + $0xd8] sm:$0xff] %v4306
        %4419 = vst [vmem:[%s306 + $0xe0] sm:$0xff] %v4307
        %4420 = vst [vmem:[%s306 + $0xe8] sm:$0xff] %v4308
        %4421 = vst [vmem:[%s306 + $0xf0] sm:$0xff] %v4309
        %4422 = vst [vmem:[%s306 + $0xf8] sm:$0xff] %v4310
        %4423 = vst [vmem:[%s306 + $0x100] sm:$0xff] %v4311
        %4424 = vst [vmem:[%s306 + $0x108] sm:$0xff] %v4312
        %4425 = vst [vmem:[%s306 + $0x110] sm:$0xff] %v4313
        %4426 = vst [vmem:[%s306 + $0x118] sm:$0xff] %v4314
        %4427 = vst [vmem:[%s306 + $0x120] sm:$0xff] %v4315
        %4428 = vst [vmem:[%s306 + $0x128] sm:$0xff] %v4316
        %4429 = vst [vmem:[%s306 + $0x130] sm:$0xff] %v4317
        %4430 = vst [vmem:[%s306 + $0x138] sm:$0xff] %v4318
        %4431 = vst [vmem:[%s306 + $0x140] sm:$0xff] %v4319
        %4432 = vst [vmem:[%s306 + $0x148] sm:$0xff] %v4320
        %4433 = vst [vmem:[%s306 + $0x150] sm:$0xff] %v4321
        %4434 = vst [vmem:[%s306 + $0x158] sm:$0xff] %v4322
        %4435 = vst [vmem:[%s306 + $0x160] sm:$0xff] %v4323
        %4436 = vst [vmem:[%s306 + $0x168] sm:$0xff] %v4324
        %4437 = vst [vmem:[%s306 + $0x170] sm:$0xff] %v4325
        %4438 = vst [vmem:[%s306 + $0x178] sm:$0xff] %v4326
        %4439 = vst [vmem:[%s306 + $0x180] sm:$0xff] %v4327
        %4440 = vst [vmem:[%s306 + $0x188] sm:$0xff] %v4328
        %4441 = vst [vmem:[%s306 + $0x190] sm:$0xff] %v4329
        %4442 = vst [vmem:[%s306 + $0x198] sm:$0xff] %v4330
        %4443 = vst [vmem:[%s306 + $0x1a0] sm:$0xff] %v4331
        %4444 = vst [vmem:[%s306 + $0x1a8] sm:$0xff] %v4332
        %4445 = vst [vmem:[%s306 + $0x1b0] sm:$0xff] %v4333
        %4446 = vst [vmem:[%s306 + $0x1b8] sm:$0xff] %v4334
        %4447 = vst [vmem:[%s306 + $0x1c0] sm:$0xff] %v4335
        %4448 = vst [vmem:[%s306 + $0x1c8] sm:$0xff] %v4336
        %4449 = vst [vmem:[%s306 + $0x1d0] sm:$0xff] %v4337
        %4450 = vst [vmem:[%s306 + $0x1d8] sm:$0xff] %v4338
        %4451 = vst [vmem:[%s306 + $0x1e0] sm:$0xff] %v4339
        %4452 = vst [vmem:[%s306 + $0x1e8] sm:$0xff] %v4340
        %4453 = vst [vmem:[%s306 + $0x1f0] sm:$0xff] %v4341
        %4454 = vst [vmem:[%s306 + $0x1f8] sm:$0xff] %v4342
        %4455 = vst [vmem:[%s306 + $0x200] sm:$0xff] %v4343
        %4456 = vst [vmem:[%s306 + $0x208] sm:$0xff] %v4344
        %4457 = vst [vmem:[%s306 + $0x210] sm:$0xff] %v4345
        %4458 = vst [vmem:[%s306 + $0x218] sm:$0xff] %v4346
        %4459 = vst [vmem:[%s306 + $0x220] sm:$0xff] %v4347
        %4460 = vst [vmem:[%s306 + $0x228] sm:$0xff] %v4348
        %4461 = vst [vmem:[%s306 + $0x230] sm:$0xff] %v4349
        %4462 = vst [vmem:[%s306 + $0x238] sm:$0xff] %v4350
        %4463 = vst [vmem:[%s306 + $0x240] sm:$0xff] %v4351
        %4464 = vst [vmem:[%s306 + $0x248] sm:$0xff] %v4352
        %4465 = vst [vmem:[%s306 + $0x250] sm:$0xff] %v4353
        %4466 = vst [vmem:[%s306 + $0x258] sm:$0xff] %v4354
        %4467 = vst [vmem:[%s306 + $0x260] sm:$0xff] %v4355
        %4468 = vst [vmem:[%s306 + $0x268] sm:$0xff] %v4356
        %4469 = vst [vmem:[%s306 + $0x270] sm:$0xff] %v4357
        %4470 = vst [vmem:[%s306 + $0x278] sm:$0xff] %v4358
        %4471 = vst [vmem:[%s306 + $0x280] sm:$0xff] %v4359
        %4472 = vst [vmem:[%s306 + $0x288] sm:$0xff] %v4360
        %4473 = vst [vmem:[%s306 + $0x290] sm:$0xff] %v4361
        %4474 = vst [vmem:[%s306 + $0x298] sm:$0xff] %v4362
        %4475 = vst [vmem:[%s306 + $0x2a0] sm:$0xff] %v4363
        %4476 = vst [vmem:[%s306 + $0x2a8] sm:$0xff] %v4364
        %4477 = vst [vmem:[%s306 + $0x2b0] sm:$0xff] %v4365
        %4478 = vst [vmem:[%s306 + $0x2b8] sm:$0xff] %v4366
        %4479 = vst [vmem:[%s306 + $0x2c0] sm:$0xff] %v4367
        %4480 = vst [vmem:[%s306 + $0x2c8] sm:$0xff] %v4368
        %4481 = vst [vmem:[%s306 + $0x2d0] sm:$0xff] %v4369
        %4482 = vst [vmem:[%s306 + $0x2d8] sm:$0xff] %v4370
        %4483 = vst [vmem:[%s306 + $0x2e0] sm:$0xff] %v4371
        %4484 = vst [vmem:[%s306 + $0x2e8] sm:$0xff] %v4372
        %4485 = vst [vmem:[%s306 + $0x2f0] sm:$0xff] %v4373
        %4486 = vst [vmem:[%s306 + $0x2f8] sm:$0xff] %v4374
        %4487 = vst [vmem:[%s306 + $0x300] sm:$0xff] %v4375
        %4488 = vst [vmem:[%s306 + $0x308] sm:$0xff] %v4376
        %4489 = vst [vmem:[%s306 + $0x310] sm:$0xff] %v4377
        %4490 = vst [vmem:[%s306 + $0x318] sm:$0xff] %v4378
        %4491 = vst [vmem:[%s306 + $0x320] sm:$0xff] %v4379
        %4492 = vst [vmem:[%s306 + $0x328] sm:$0xff] %v4380
        %4493 = vst [vmem:[%s306 + $0x330] sm:$0xff] %v4381
        %4494 = vst [vmem:[%s306 + $0x338] sm:$0xff] %v4382
        %4495 = vst [vmem:[%s306 + $0x340] sm:$0xff] %v4383
        %4496 = vst [vmem:[%s306 + $0x348] sm:$0xff] %v4384
        %4497 = vst [vmem:[%s306 + $0x350] sm:$0xff] %v4385
        %4498 = vst [vmem:[%s306 + $0x358] sm:$0xff] %v4386
        %4499 = vst [vmem:[%s306 + $0x360] sm:$0xff] %v4387
        %4500 = vst [vmem:[%s306 + $0x368] sm:$0xff] %v4388
        %4501 = vst [vmem:[%s306 + $0x370] sm:$0xff] %v4389
        %4502 = vst [vmem:[%s306 + $0x378] sm:$0xff] %v4390
        %s4503 = sand.u32 %s183, 1
        %s4504 = scalar_lea.sflag [#allocation4], %s4503
        %s4505 = sand.u32 %s183, 1
        %s4506 = smul.addr %s4505, 896
        %s4507 = scalar_lea.vmem [#allocation7], %s4506
        // Predicated region
        $region57: #{tpu_custom_call.1} parent=47 // pred_check
          %p4508 = pneg %p193
        $region58: #{tpu_custom_call.1} parent=47 // pred_check_branch
          %4510 = sbr.rel (%p4508) target = $region60
        $region59: #{tpu_custom_call.1} parent=47 // pred_region
          %s4511 = smul.u32 16, %s23
          %4513 = vsyncadd %s4504, 0
          %s4514 = smul.addr %s4511, 7
          %s4515 = smul.addr %s4514, 8
          %s4516 = scalar_lea.hbm %s7, %s4515
          %s4517 = sshll.u32 %s4507, 4
          %s4518 = int_to_ptr.vmem [resolvable:$true] %s4517
          %s4519 = sshll.u32 %s4516, 4
          %s4520 = int_to_ptr.hbm [resolvable:$true] %s4519
          %4525 = dma.vmem_to_hbm [thread:$0]  %s4518, 14336, %s4520, %s4504, 896, 896, 56
        $region60: #{tpu_custom_call.1} parent=47 // pred_fallthru
          _
      $region48: #{tpu_custom_call.1} parent=5 // pred_fallthru
        _
      %p4526 = scmp.le.s32.totalorder 2, %s18
      // Predicated region
      $region61: #{tpu_custom_call.1} parent=5 // pred_check
        %p4527 = pneg %p4526
      $region62: #{tpu_custom_call.1} parent=5 // pred_check_branch
        %4529 = sbr.rel (%p4527) target = $region64
      $region63: #{tpu_custom_call.1} parent=5 // pred_region
        %s4530 = ssub.s32 %s18, 2
        // Predicated region
        $region65: #{tpu_custom_call.1} parent=63 // pred_check
          %p4531 = pneg %p199
        $region66: #{tpu_custom_call.1} parent=63 // pred_check_branch
          %4533 = sbr.rel (%p4531) target = $region68
        $region67: #{tpu_custom_call.1} parent=63 // pred_region
          %s4534 = sand.u32 %s184, 1
          %s4535 = scalar_lea.sflag [#allocation4], %s4534
          %s4536 = sand.u32 %s184, 1
          %s4537 = smul.addr %s4536, 896
          %s4538 = scalar_lea.vmem [#allocation7], %s4537
          %4540 = dma.done %s4535, 14336
        $region68: #{tpu_custom_call.1} parent=63 // pred_fallthru
          _
      $region64: #{tpu_custom_call.1} parent=5 // pred_fallthru
        _
    $region6: #{tpu_custom_call.1} parent=1 // loop_footer
      %s22 = sadd.s32 1, %s18
    $region7: #{tpu_custom_call.1} parent=1 // loop_footer_branch
      %17 = sbr.rel target = $region3
    $region8: #{tpu_custom_call.1} parent=1 // loop_exit
      _
    %4541 = vsyncpa [#allocation3], 1
    %s4542 = scalar_lea.sflag [#allocation3], 1
    %4543 = vsyncpa %s4542, 1
    %4544 = vsyncpa [#allocation6], 1
    %4545 = vsyncpa [#allocation4], 1
    %s4546 = scalar_lea.sflag [#allocation4], 1
    %4547 = vsyncpa %s4546, 1

</llo_original>
